<compile_context>
chip_gen: v5e
topology: v5e:2x2
jax: 0.10.0
libtpu: 0.0.40
codegen_flags: <defaults>
</compile_context>

<pallas_src>
import functools
import math

import jax
import jax.numpy as jnp
import numpy as np
from jax import lax
from jax.experimental import pallas as pl
from jax.experimental.pallas import tpu as pltpu


# -----------------------------------------------------------------------------
# Kernel: grid = (batch tiles, agents).  Agent axis is sequential ("arbitrary");
# online softmax over agents lives in VMEM scratch.
# -----------------------------------------------------------------------------
def qatten_kernel(
    state_ref, obs_ref, q_ref,
    w1s_ref, b1s_ref, w2s_ref, b2s_ref,
    w1k_ref, b1k_ref, w2k_ref, b2k_ref,
    red_ref,
    out_ref,
    eq_sc, wb_sc, m_sc, l_sc, acc_sc,
    *, n_heads, h2, approx_recip,
):
    f32 = jnp.float32
    EQ = n_heads * h2
    cdt = w1s_ref.dtype                       # MXU streaming dtype (bf16 or f32)
    a_idx = pl.program_id(1)
    n_ag = pl.num_programs(1)

    # ---- state path: once per batch tile (first agent step) -------------------
    @pl.when(a_idx == 0)
    def _state_path():
        s = state_ref[...]                                            # (TB, S)
        h1 = jnp.dot(s, w1s_ref[...], preferred_element_type=f32) + b1s_ref[...]
        h1 = jnp.maximum(h1, 0.0)
        z = jnp.dot(h1.astype(cdt), w2s_ref[...],
                    preferred_element_type=f32) + b2s_ref[...]
        # z columns: [EQ Q-head embeds | n_heads head weights | 1 state bias]
        eq_sc[...] = z[:, :EQ]
        wb_sc[...] = z[:, EQ:]
        m_sc[...] = jnp.full_like(m_sc, -jnp.inf)
        l_sc[...] = jnp.zeros_like(l_sc)
        acc_sc[...] = jnp.zeros_like(acc_sc)

    # ---- obs (K-embedding) path for this agent, agent-shared weights ----------
    o = obs_ref[0]                                                    # (TB, O)
    h1k = jnp.dot(o, w1k_ref[...], preferred_element_type=f32) + b1k_ref[...]
    h1k = jnp.maximum(h1k, 0.0)
    ek = jnp.dot(h1k.astype(cdt), w2k_ref[...],
                 preferred_element_type=f32) + b2k_ref[...]           # (TB, EQ)

    # Per-head attention logits; `red` carries the 1/sqrt(d) scale (pack time).
    logits = jnp.dot(ek * eq_sc[...], red_ref[...],
                     preferred_element_type=f32)                      # (TB, n_heads)

    # ---- online softmax over the agent grid axis (exact per-head max) ---------
    q_a = q_ref[0].astype(f32)                                        # (TB, 1)
    m_prev = m_sc[...]
    m_new = jnp.maximum(m_prev, logits)
    alpha = jnp.exp(m_prev - m_new)
    p = jnp.exp(logits - m_new)
    l_sc[...] = alpha * l_sc[...] + p
    acc_sc[...] = alpha * acc_sc[...] + p * q_a
    m_sc[...] = m_new

    # ---- finalize on the last agent: head mixing, lane-dense (1, TB) row ------
    @pl.when(a_idx == n_ag - 1)
    def _finalize():
        # l >= 1 by construction (max term contributes exp(0)), so reciprocal
        # is always well conditioned, even on padded rows.
        q_h = acc_sc[...] * pl.reciprocal(l_sc[...], approx=approx_recip)
        wb = wb_sc[...]                                               # (TB, H+1)
        contrib = jnp.concatenate([wb[:, :n_heads] * q_h, wb[:, n_heads:]],
                                  axis=-1)                            # (TB, H+1)
        ones_row = jnp.ones((1, n_heads + 1), f32)
        q_tot_row = lax.dot_general(                                  # (1, TB)
            ones_row, contrib,
            dimension_numbers=(((1,), (1,)), ((), ())),
            preferred_element_type=f32)
        out_ref[...] = q_tot_row.reshape(out_ref.shape)


# -----------------------------------------------------------------------------
# Tile / spec helpers.
# -----------------------------------------------------------------------------
_TILE_CANDIDATES = (512, 256, 128)


def _choose_tile(batch):
    # Never below 128: keeps the (1, TB) output row lane-dense and the grid
    # small.  Prefer the largest tile that still gives >= 2 batch-grid steps.
    for tb in _TILE_CANDIDATES:
        if batch >= 2 * tb:
            return tb
    return _TILE_CANDIDATES[-1]


_BUFFERED = getattr(pl, "Buffered", None)


def _weight_spec(arr, single_buffer):
    nd = arr.ndim
    idx = lambda i, a, _nd=nd: (0,) * _nd
    if single_buffer and _BUFFERED is not None:
        try:
            # Block index never changes -> one VMEM buffer is enough.
            return pl.BlockSpec(arr.shape, idx, pipeline_mode=_BUFFERED(1))
        except TypeError:
            pass
    return pl.BlockSpec(arr.shape, idx)


# -----------------------------------------------------------------------------
# Wrapper: flatten / transpose / pad in XLA, set up grid + specs, reshape out.
# -----------------------------------------------------------------------------
def qatten_forward(packed, state, obs, q_vals, *, hidden_shape, n_heads,
                   approx_recip=None, even_grid=True):
    n_eps, ep_limit, S = state.shape
    A = q_vals.shape[-1]
    O = obs.shape[-1]
    H = hidden_shape
    H2 = H // 2
    EQ = n_heads * H2
    batch = n_eps * ep_limit

    io_dtype = packed["w1s"].dtype            # streaming dtype baked into packing
    if approx_recip is None:
        approx_recip = io_dtype == jnp.bfloat16

    TB = _choose_tile(batch)
    grid_n = (batch + TB - 1) // TB
    if even_grid and grid_n % 2:
        grid_n += 1                           # even split across v7x's two TCs
    padded = grid_n * TB
    pad = padded - batch

    # All reshapes / transposes / padding / dtype casts happen in XLA.
    state2 = state.reshape(batch, S).astype(io_dtype)
    obs_r = obs.reshape(batch, A, O).transpose(1, 0, 2).astype(io_dtype)  # (A,B,O)
    q_r = q_vals.reshape(batch, A).T.astype(jnp.float32)                  # (A,B)
    if pad:
        state2 = jnp.pad(state2, ((0, pad), (0, 0)))
        obs_r = jnp.pad(obs_r, ((0, 0), (0, pad), (0, 0)))
        q_r = jnp.pad(q_r, ((0, 0), (0, pad)))
    q_r = q_r.reshape(A, padded, 1)

    weight_order = ("w1s", "b1s", "w2s", "b2s", "w1k", "b1k", "w2k", "b2k", "red")
    wargs = [packed[k] for k in weight_order]
    weight_bytes = sum(int(w.size) * w.dtype.itemsize for w in wargs)
    io_bytes = jnp.dtype(io_dtype).itemsize

    # Advisory cost estimate (helps XLA schedule the surrounding reshape/pad).
    in2 = n_heads * H + H + H2
    out2 = EQ + n_heads + 1
    flops_row = (2 * S * in2 + 2 * in2 * out2
                 + A * (2 * O * n_heads * H + 2 * n_heads * H * EQ + 2 * EQ * n_heads)
                 + A * 8 * n_heads + 2 * (n_heads + 1))
    cost = pl.CostEstimate(
        flops=int(padded * flops_row),
        transcendentals=int(padded * A * 2 * n_heads),
        bytes_accessed=int(padded * (S * io_bytes + A * O * io_bytes + A * 4 + 4)
                           + weight_bytes))

    # Explicit VMEM budget: double-buffered batch tiles + weights + scratch, 4x margin.
    tile_bytes = 2 * TB * (S * io_bytes + O * io_bytes + 4 + 4)
    scratch_bytes = TB * (EQ + (n_heads + 1) + 3 * n_heads) * 4
    vmem_limit = int(min(32 << 20,
                         max(8 << 20,
                             4 * (tile_bytes + 2 * weight_bytes + scratch_bytes))))

    kern = functools.partial(qatten_kernel, n_heads=n_heads, h2=H2,
                             approx_recip=approx_recip)

    def run(single_buffer_weights):
        in_specs = [
            pl.BlockSpec((TB, S), lambda i, a: (i, 0)),        # state: 1 DMA / tile
            pl.BlockSpec((1, TB, O), lambda i, a: (a, i, 0)),  # obs: per-agent stream
            pl.BlockSpec((1, TB, 1), lambda i, a: (a, i, 0)),  # q:   per-agent stream
        ] + [_weight_spec(w, single_buffer_weights) for w in wargs]
        return pl.pallas_call(
            kern,
            out_shape=jax.ShapeDtypeStruct((grid_n, 1, TB), jnp.float32),
            grid_spec=pltpu.PrefetchScalarGridSpec(
                num_scalar_prefetch=0,
                grid=(grid_n, A),
                in_specs=in_specs,
                out_specs=pl.BlockSpec((1, 1, TB), lambda i, a: (i, 0, 0)),
                scratch_shapes=[
                    pltpu.VMEM((TB, EQ), jnp.float32),            # eq (scaled Q-embeds)
                    pltpu.VMEM((TB, n_heads + 1), jnp.float32),   # [w_h | b_h]
                    pltpu.VMEM((TB, n_heads), jnp.float32),       # running max
                    pltpu.VMEM((TB, n_heads), jnp.float32),       # running denom
                    pltpu.VMEM((TB, n_heads), jnp.float32),       # running weighted Q
                ]),
            compiler_params=pltpu.CompilerParams(
                dimension_semantics=("parallel", "arbitrary"),
                vmem_limit_bytes=vmem_limit),
            cost_estimate=cost,
        )(state2, obs_r, q_r, *wargs)

    try:
        out = jax.block_until_ready(run(True))
    except Exception:
        # pl.Buffered(1) unsupported on this jax/libtpu: fall back to default
        # double-buffered weight specs (pure VMEM headroom, identical math).
        out = run(False)

    out_flat = out.reshape(grid_n * TB)[:batch]
    return out_flat.reshape(n_eps, ep_limit)


# -----------------------------------------------------------------------------
# Parameter init (per-head, torch-style shapes stored as (in, out) = W^T).
# -----------------------------------------------------------------------------
def init_params(key, state_shape, obs_shape, hidden_shape, n_agents, n_heads):
    H = hidden_shape
    H2 = hidden_shape // 2
    ks = jax.random.split(key, 16)

    def w(k, shape, fan_in):
        return jax.random.normal(k, shape, jnp.float32) / np.sqrt(fan_in)

    return {
        # per-head Q embed: Linear(S->H), ReLU, Linear(H->H2)
        "wq1": w(ks[0], (n_heads, state_shape, H), state_shape),
        "bq1": w(ks[1], (n_heads, 1, H), H),
        "wq2": w(ks[2], (n_heads, H, H2), H),
        "bq2": w(ks[3], (n_heads, 1, H2), H2),
        # per-head K embed: Linear(O->H), ReLU, Linear(H->H2)
        "wk1": w(ks[4], (n_heads, obs_shape, H), obs_shape),
        "bk1": w(ks[5], (n_heads, 1, H), H),
        "wk2": w(ks[6], (n_heads, H, H2), H),
        "bk2": w(ks[7], (n_heads, 1, H2), H2),
        # wlayer: Linear(S->H), ReLU, Linear(H->n_heads)
        "ww1": w(ks[8], (state_shape, H), state_shape),
        "bw1": w(ks[9], (1, H), H),
        "ww2": w(ks[10], (H, n_heads), H),
        "bw2": w(ks[11], (1, n_heads), n_heads),
        # blayer: Linear(S->H2), ReLU, Linear(H2->1)
        "wb1": w(ks[12], (state_shape, H2), state_shape),
        "bb1": w(ks[13], (1, H2), H2),
        "wb2": w(ks[14], (H2, 1), H2),
        "bb2": w(ks[15], (1, 1), 1),
    }


# -----------------------------------------------------------------------------
# Pack per-head weights into fused slabs + the constant per-head reduction
# matrix.  The K-path slabs are shared across agents (O(1) in n_agents).
# -----------------------------------------------------------------------------
def pack_params(params, *, state_shape, obs_shape, hidden_shape, n_agents,
                n_heads, io_dtype=jnp.bfloat16):
    del n_agents  # packing no longer depends on the agent count
    del state_shape, obs_shape
    H = hidden_shape
    H2 = H // 2
    EQ = n_heads * H2
    inv_d = 1.0 / math.sqrt(H2)
    p = {k: np.asarray(v, np.float32) for k, v in params.items()}

    # -- state slab: [Q-head 0..n-1 | wlayer | blayer] --------------------------
    w1s = np.concatenate([p["wq1"][h] for h in range(n_heads)]
                         + [p["ww1"], p["wb1"]], axis=1)        # (S, nH*H + H + H2)
    b1s = np.concatenate([p["bq1"][h] for h in range(n_heads)]
                         + [p["bw1"], p["bb1"]], axis=1)
    in2 = n_heads * H + H + H2
    out2 = EQ + n_heads + 1
    w2s = np.zeros((in2, out2), np.float32)
    for h in range(n_heads):
        w2s[h * H:(h + 1) * H, h * H2:(h + 1) * H2] = p["wq2"][h]
    w2s[n_heads * H:n_heads * H + H, EQ:EQ + n_heads] = p["ww2"]
    w2s[n_heads * H + H:, EQ + n_heads:] = p["wb2"]
    b2s = np.concatenate([p["bq2"][h] for h in range(n_heads)]
                         + [p["bw2"], p["bb2"]], axis=1)        # (1, out2)

    # -- obs slab (single agent-shared copy): heads concatenated ----------------
    w1k = np.concatenate([p["wk1"][h] for h in range(n_heads)], axis=1)   # (O, nH*H)
    b1k = np.concatenate([p["bk1"][h] for h in range(n_heads)], axis=1)   # (1, nH*H)
    w2k = np.zeros((n_heads * H, EQ), np.float32)
    for h in range(n_heads):
        w2k[h * H:(h + 1) * H, h * H2:(h + 1) * H2] = p["wk2"][h]
    b2k = np.concatenate([p["bk2"][h] for h in range(n_heads)], axis=1)   # (1, EQ)

    # -- per-head sum-over-embedding matrix; carries 1/sqrt(d) ------------------
    red = np.zeros((EQ, n_heads), np.float32)
    for h in range(n_heads):
        red[h * H2:(h + 1) * H2, h] = inv_d

    return {
        "w1s": jnp.asarray(w1s, io_dtype), "b1s": jnp.asarray(b1s, jnp.float32),
        "w2s": jnp.asarray(w2s, io_dtype), "b2s": jnp.asarray(b2s, jnp.float32),
        "w1k": jnp.asarray(w1k, io_dtype), "b1k": jnp.asarray(b1k, jnp.float32),
        "w2k": jnp.asarray(w2k, io_dtype), "b2k": jnp.asarray(b2k, jnp.float32),
        "red": jnp.asarray(red, jnp.float32),
    }


# -----------------------------------------------------------------------------
# Pure-JAX reference (mirrors the torch forward exactly) for validation.
# -----------------------------------------------------------------------------
def ref_forward(params, state, obs, q_vals, *, hidden_shape, n_heads):
    n_eps, ep_limit, S = state.shape
    A = q_vals.shape[-1]
    O = obs.shape[-1]
    batch = n_eps * ep_limit
    d = np.sqrt(hidden_shape // 2)

    s = state.reshape(batch, S)
    o = obs.reshape(batch * A, O)
    q = q_vals.reshape(batch, A)

    lams = []
    for h in range(n_heads):
        eq = jnp.maximum(s @ params["wq1"][h] + params["bq1"][h], 0.0)
        eq = eq @ params["wq2"][h] + params["bq2"][h]
        ek = jnp.maximum(o @ params["wk1"][h] + params["bk1"][h], 0.0)
        ek = ek @ params["wk2"][h] + params["bk2"][h]
        eq = eq.reshape(batch, 1, -1)
        ek = ek.reshape(batch, A, -1).transpose(0, 2, 1)
        lam = jnp.matmul(eq, ek) / d
        lam = jax.nn.softmax(lam, axis=-1)
        lams.append(lam[:, 0, :])
    lam_list = jnp.stack(lams, axis=1)                     # (B, n_heads, A)
    q_h = jnp.matmul(lam_list, q[..., None])               # (B, n_heads, 1)
    w_h = jnp.maximum(s @ params["ww1"] + params["bw1"], 0.0) @ params["ww2"] + params["bw2"]
    b_h = jnp.maximum(s @ params["wb1"] + params["bb1"], 0.0) @ params["wb2"] + params["bb2"]
    q_tot = jnp.matmul(w_h[:, None, :], q_h)[..., 0] + b_h
    return q_tot.reshape(n_eps, -1)


if __name__ == "__main__":
    # Small, module-consistent shapes.  batch = 120 -> TB = 128, grid_n rounded
    # to 2 (even split for v7x), inner agent grid of 4.
    n_episodes, episode_limit = 4, 30
    state_shape, obs_shape = 24, 16
    hidden_shape = 32
    n_agents, n_heads = 4, 4

    key = jax.random.PRNGKey(0)
    k_state, k_obs, k_q, k_params = jax.random.split(key, 4)
    state = jax.random.normal(k_state, (n_episodes, episode_limit, state_shape), jnp.float32)
    obs = jax.random.normal(k_obs, (n_episodes, episode_limit, n_agents, obs_shape), jnp.float32)
    q_vals = jax.random.normal(k_q, (n_episodes, episode_limit, n_agents), jnp.float32)

    params = init_params(k_params, state_shape, obs_shape, hidden_shape, n_agents, n_heads)
    ref = ref_forward(params, state, obs, q_vals,
                      hidden_shape=hidden_shape, n_heads=n_heads)

    # ---- f32 streaming path: tight validation ----
    packed32 = pack_params(params, state_shape=state_shape, obs_shape=obs_shape,
                           hidden_shape=hidden_shape, n_agents=n_agents,
                           n_heads=n_heads, io_dtype=jnp.float32)
    out32 = qatten_forward(packed32, state, obs, q_vals,
                           hidden_shape=hidden_shape, n_heads=n_heads)
    out32 = jax.block_until_ready(out32)
    np.testing.assert_allclose(np.asarray(out32), np.asarray(ref), rtol=2e-4, atol=2e-4)

    # ---- bf16 streaming path (default): loose validation against a reference
    # computed on the same bf16-quantized inputs/weights (q stays f32) ----
    params_q = jax.tree_util.tree_map(
        lambda a: a.astype(jnp.bfloat16).astype(jnp.float32), params)
    ref16 = ref_forward(params_q,
                        state.astype(jnp.bfloat16).astype(jnp.float32),
                        obs.astype(jnp.bfloat16).astype(jnp.float32),
                        q_vals,
                        hidden_shape=hidden_shape, n_heads=n_heads)
    packed16 = pack_params(params, state_shape=state_shape, obs_shape=obs_shape,
                           hidden_shape=hidden_shape, n_agents=n_agents,
                           n_heads=n_heads)                       # bf16 default
    out16 = qatten_forward(packed16, state, obs, q_vals,
                           hidden_shape=hidden_shape, n_heads=n_heads)
    out16 = jax.block_until_ready(out16)
    np.testing.assert_allclose(np.asarray(out16), np.asarray(ref16), rtol=5e-2, atol=5e-2)

    print("KERNEL_OK")
</pallas_src>

<mosaic_0001>
module attributes {stable_mosaic.version = 11 : i64} {
  func.func @qatten_kernel(%arg0: i32, %arg1: i32, %arg2: memref<128x24xf32, #tpu.memory_space<vmem>>, %arg3: memref<1x128x16xf32, #tpu.memory_space<vmem>>, %arg4: memref<1x128x1xf32, #tpu.memory_space<vmem>>, %arg5: memref<24x176xf32, #tpu.memory_space<vmem>>, %arg6: memref<1x176xf32, #tpu.memory_space<vmem>>, %arg7: memref<176x69xf32, #tpu.memory_space<vmem>>, %arg8: memref<1x69xf32, #tpu.memory_space<vmem>>, %arg9: memref<16x128xf32, #tpu.memory_space<vmem>>, %arg10: memref<1x128xf32, #tpu.memory_space<vmem>>, %arg11: memref<128x64xf32, #tpu.memory_space<vmem>>, %arg12: memref<1x64xf32, #tpu.memory_space<vmem>>, %arg13: memref<64x4xf32, #tpu.memory_space<vmem>>, %arg14: memref<1x1x128xf32, #tpu.memory_space<vmem>>, %arg15: memref<128x64xf32, #tpu.memory_space<vmem>>, %arg16: memref<128x5xf32, #tpu.memory_space<vmem>>, %arg17: memref<128x4xf32, #tpu.memory_space<vmem>>, %arg18: memref<128x4xf32, #tpu.memory_space<vmem>>, %arg19: memref<128x4xf32, #tpu.memory_space<vmem>>) attributes {dimension_semantics = [#tpu.dimension_semantics<parallel>, #tpu.dimension_semantics<arbitrary>], iteration_bounds = array<i64: 2, 4>, scalar_prefetch = 0 : i64, scratch_operands = 5 : i64, tpu.core_type = #tpu.core_type<tc>, window_params = [{transform_indices = @transform_0, window_bounds = array<i64: 128, 24>}, {transform_indices = @transform_1, window_bounds = array<i64: 1, 128, 16>}, {transform_indices = @transform_2, window_bounds = array<i64: 1, 128, 1>}, {pipeline_mode = #tpu.pipeline_mode<synchronous>, transform_indices = @transform_3, window_bounds = array<i64: 24, 176>}, {pipeline_mode = #tpu.pipeline_mode<synchronous>, transform_indices = @transform_4, window_bounds = array<i64: 1, 176>}, {pipeline_mode = #tpu.pipeline_mode<synchronous>, transform_indices = @transform_5, window_bounds = array<i64: 176, 69>}, {pipeline_mode = #tpu.pipeline_mode<synchronous>, transform_indices = @transform_6, window_bounds = array<i64: 1, 69>}, {pipeline_mode = #tpu.pipeline_mode<synchronous>, transform_indices = @transform_7, window_bounds = array<i64: 16, 128>}, {pipeline_mode = #tpu.pipeline_mode<synchronous>, transform_indices = @transform_8, window_bounds = array<i64: 1, 128>}, {pipeline_mode = #tpu.pipeline_mode<synchronous>, transform_indices = @transform_9, window_bounds = array<i64: 128, 64>}, {pipeline_mode = #tpu.pipeline_mode<synchronous>, transform_indices = @transform_10, window_bounds = array<i64: 1, 64>}, {pipeline_mode = #tpu.pipeline_mode<synchronous>, transform_indices = @transform_11, window_bounds = array<i64: 64, 4>}, {transform_indices = @transform_12, window_bounds = array<i64: 1, 1, 128>}]} {
    %c0_i32 = arith.constant 0 : i32
    %0 = arith.cmpi eq, %arg1, %c0_i32 : i32
    %1 = arith.extui %0 : i1 to i32
    %c0_i32_0 = arith.constant 0 : i32
    %2 = arith.cmpi ne, %1, %c0_i32_0 : i32
    scf.if %2 {
      %c0_34 = arith.constant 0 : index
      %c0_35 = arith.constant 0 : index
      %43 = vector.load %arg2[%c0_34, %c0_35] : memref<128x24xf32, #tpu.memory_space<vmem>>, vector<128x24xf32>
      %c0_36 = arith.constant 0 : index
      %c0_37 = arith.constant 0 : index
      %44 = vector.load %arg5[%c0_36, %c0_37] : memref<24x176xf32, #tpu.memory_space<vmem>>, vector<24x176xf32>
      %cst_38 = arith.constant dense<0.000000e+00> : vector<128x176xf32>
      %45 = tpu.matmul %43, %44, %cst_38 {dimension_numbers = #tpu.dot_dimension_numbers<[1], [0], [0], [1], [0, 0, 1, 1], [], []>} : vector<128x24xf32>, vector<24x176xf32>, vector<128x176xf32> -> vector<128x176xf32>
      %c0_39 = arith.constant 0 : index
      %c0_40 = arith.constant 0 : index
      %46 = vector.load %arg6[%c0_39, %c0_40] : memref<1x176xf32, #tpu.memory_space<vmem>>, vector<1x176xf32>
      %47 = vector.broadcast %46 : vector<1x176xf32> to vector<128x176xf32>
      %48 = arith.addf %45, %47 : vector<128x176xf32>
      %cst_41 = arith.constant 0.000000e+00 : f32
      %49 = vector.broadcast %cst_41 : f32 to vector<128x176xf32>
      %50 = arith.maximumf %48, %49 : vector<128x176xf32>
      %c0_42 = arith.constant 0 : index
      %c0_43 = arith.constant 0 : index
      %51 = vector.load %arg7[%c0_42, %c0_43] : memref<176x69xf32, #tpu.memory_space<vmem>>, vector<176x69xf32>
      %cst_44 = arith.constant dense<0.000000e+00> : vector<128x69xf32>
      %52 = tpu.matmul %50, %51, %cst_44 {dimension_numbers = #tpu.dot_dimension_numbers<[1], [0], [0], [1], [0, 0, 1, 1], [], []>} : vector<128x176xf32>, vector<176x69xf32>, vector<128x69xf32> -> vector<128x69xf32>
      %c0_45 = arith.constant 0 : index
      %c0_46 = arith.constant 0 : index
      %53 = vector.load %arg8[%c0_45, %c0_46] : memref<1x69xf32, #tpu.memory_space<vmem>>, vector<1x69xf32>
      %54 = vector.broadcast %53 : vector<1x69xf32> to vector<128x69xf32>
      %55 = arith.addf %52, %54 : vector<128x69xf32>
      %56 = vector.extract_strided_slice %55 {offsets = [0, 0], sizes = [128, 64], strides = [1, 1]} : vector<128x69xf32> to vector<128x64xf32>
      %c0_47 = arith.constant 0 : index
      %c0_48 = arith.constant 0 : index
      %57 = vector.load %arg15[%c0_47, %c0_48] : memref<128x64xf32, #tpu.memory_space<vmem>>, vector<128x64xf32>
      tpu.vector_store %arg15[%c0_47, %c0_48], %56 {strides = array<i32>} : memref<128x64xf32, #tpu.memory_space<vmem>>, vector<128x64xf32>,
      %58 = vector.extract_strided_slice %55 {offsets = [0, 64], sizes = [128, 5], strides = [1, 1]} : vector<128x69xf32> to vector<128x5xf32>
      %c0_49 = arith.constant 0 : index
      %c0_50 = arith.constant 0 : index
      %59 = vector.load %arg16[%c0_49, %c0_50] : memref<128x5xf32, #tpu.memory_space<vmem>>, vector<128x5xf32>
      tpu.vector_store %arg16[%c0_49, %c0_50], %58 {strides = array<i32>} : memref<128x5xf32, #tpu.memory_space<vmem>>, vector<128x5xf32>,
      %cst_51 = arith.constant 0xFF800000 : f32
      %60 = vector.broadcast %cst_51 : f32 to vector<128x4xf32>
      %c0_52 = arith.constant 0 : index
      %c0_53 = arith.constant 0 : index
      %61 = vector.load %arg17[%c0_52, %c0_53] : memref<128x4xf32, #tpu.memory_space<vmem>>, vector<128x4xf32>
      tpu.vector_store %arg17[%c0_52, %c0_53], %60 {strides = array<i32>} : memref<128x4xf32, #tpu.memory_space<vmem>>, vector<128x4xf32>,
      %cst_54 = arith.constant 0.000000e+00 : f32
      %62 = vector.broadcast %cst_54 : f32 to vector<128x4xf32>
      %c0_55 = arith.constant 0 : index
      %c0_56 = arith.constant 0 : index
      %63 = vector.load %arg18[%c0_55, %c0_56] : memref<128x4xf32, #tpu.memory_space<vmem>>, vector<128x4xf32>
      tpu.vector_store %arg18[%c0_55, %c0_56], %62 {strides = array<i32>} : memref<128x4xf32, #tpu.memory_space<vmem>>, vector<128x4xf32>,
      %cst_57 = arith.constant 0.000000e+00 : f32
      %64 = vector.broadcast %cst_57 : f32 to vector<128x4xf32>
      %c0_58 = arith.constant 0 : index
      %c0_59 = arith.constant 0 : index
      %65 = vector.load %arg19[%c0_58, %c0_59] : memref<128x4xf32, #tpu.memory_space<vmem>>, vector<128x4xf32>
      tpu.vector_store %arg19[%c0_58, %c0_59], %64 {strides = array<i32>} : memref<128x4xf32, #tpu.memory_space<vmem>>, vector<128x4xf32>,
    } else {
    }
    %c0 = arith.constant 0 : index
    %c0_1 = arith.constant 0 : index
    %c0_2 = arith.constant 0 : index
    %3 = vector.load %arg3[%c0, %c0_1, %c0_2] : memref<1x128x16xf32, #tpu.memory_space<vmem>>, vector<1x128x16xf32>
    %4 = vector.shape_cast %3 : vector<1x128x16xf32> to vector<128x16xf32>
    %c0_3 = arith.constant 0 : index
    %c0_4 = arith.constant 0 : index
    %5 = vector.load %arg9[%c0_3, %c0_4] : memref<16x128xf32, #tpu.memory_space<vmem>>, vector<16x128xf32>
    %cst = arith.constant dense<0.000000e+00> : vector<128x128xf32>
    %6 = tpu.matmul %4, %5, %cst {dimension_numbers = #tpu.dot_dimension_numbers<[1], [0], [0], [1], [0, 0, 1, 1], [], []>} : vector<128x16xf32>, vector<16x128xf32>, vector<128x128xf32> -> vector<128x128xf32>
    %c0_5 = arith.constant 0 : index
    %c0_6 = arith.constant 0 : index
    %7 = vector.load %arg10[%c0_5, %c0_6] : memref<1x128xf32, #tpu.memory_space<vmem>>, vector<1x128xf32>
    %8 = vector.broadcast %7 : vector<1x128xf32> to vector<128x128xf32>
    %9 = arith.addf %6, %8 : vector<128x128xf32>
    %cst_7 = arith.constant 0.000000e+00 : f32
    %10 = vector.broadcast %cst_7 : f32 to vector<128x128xf32>
    %11 = arith.maximumf %9, %10 : vector<128x128xf32>
    %c0_8 = arith.constant 0 : index
    %c0_9 = arith.constant 0 : index
    %12 = vector.load %arg11[%c0_8, %c0_9] : memref<128x64xf32, #tpu.memory_space<vmem>>, vector<128x64xf32>
    %cst_10 = arith.constant dense<0.000000e+00> : vector<128x64xf32>
    %13 = tpu.matmul %11, %12, %cst_10 {dimension_numbers = #tpu.dot_dimension_numbers<[1], [0], [0], [1], [0, 0, 1, 1], [], []>} : vector<128x128xf32>, vector<128x64xf32>, vector<128x64xf32> -> vector<128x64xf32>
    %c0_11 = arith.constant 0 : index
    %c0_12 = arith.constant 0 : index
    %14 = vector.load %arg12[%c0_11, %c0_12] : memref<1x64xf32, #tpu.memory_space<vmem>>, vector<1x64xf32>
    %15 = vector.broadcast %14 : vector<1x64xf32> to vector<128x64xf32>
    %16 = arith.addf %13, %15 : vector<128x64xf32>
    %c0_13 = arith.constant 0 : index
    %c0_14 = arith.constant 0 : index
    %17 = vector.load %arg15[%c0_13, %c0_14] : memref<128x64xf32, #tpu.memory_space<vmem>>, vector<128x64xf32>
    %18 = arith.mulf %16, %17 : vector<128x64xf32>
    %c0_15 = arith.constant 0 : index
    %c0_16 = arith.constant 0 : index
    %19 = vector.load %arg13[%c0_15, %c0_16] : memref<64x4xf32, #tpu.memory_space<vmem>>, vector<64x4xf32>
    %cst_17 = arith.constant dense<0.000000e+00> : vector<128x4xf32>
    %20 = tpu.matmul %18, %19, %cst_17 {dimension_numbers = #tpu.dot_dimension_numbers<[1], [0], [0], [1], [0, 0, 1, 1], [], []>} : vector<128x64xf32>, vector<64x4xf32>, vector<128x4xf32> -> vector<128x4xf32>
    %c0_18 = arith.constant 0 : index
    %c0_19 = arith.constant 0 : index
    %c0_20 = arith.constant 0 : index
    %21 = vector.load %arg4[%c0_18, %c0_19, %c0_20] : memref<1x128x1xf32, #tpu.memory_space<vmem>>, vector<1x128x1xf32>
    %22 = vector.shape_cast %21 : vector<1x128x1xf32> to vector<128x1xf32>
    %c0_21 = arith.constant 0 : index
    %c0_22 = arith.constant 0 : index
    %23 = vector.load %arg17[%c0_21, %c0_22] : memref<128x4xf32, #tpu.memory_space<vmem>>, vector<128x4xf32>
    %24 = arith.maximumf %23, %20 : vector<128x4xf32>
    %25 = arith.subf %23, %24 : vector<128x4xf32>
    %26 = math.exp %25 : vector<128x4xf32>
    %27 = arith.subf %20, %24 : vector<128x4xf32>
    %28 = math.exp %27 : vector<128x4xf32>
    %c0_23 = arith.constant 0 : index
    %c0_24 = arith.constant 0 : index
    %29 = vector.load %arg18[%c0_23, %c0_24] : memref<128x4xf32, #tpu.memory_space<vmem>>, vector<128x4xf32>
    %30 = arith.mulf %26, %29 : vector<128x4xf32>
    %31 = arith.addf %30, %28 : vector<128x4xf32>
    %c0_25 = arith.constant 0 : index
    %c0_26 = arith.constant 0 : index
    %32 = vector.load %arg18[%c0_25, %c0_26] : memref<128x4xf32, #tpu.memory_space<vmem>>, vector<128x4xf32>
    tpu.vector_store %arg18[%c0_25, %c0_26], %31 {strides = array<i32>} : memref<128x4xf32, #tpu.memory_space<vmem>>, vector<128x4xf32>,
    %c0_27 = arith.constant 0 : index
    %c0_28 = arith.constant 0 : index
    %33 = vector.load %arg19[%c0_27, %c0_28] : memref<128x4xf32, #tpu.memory_space<vmem>>, vector<128x4xf32>
    %34 = arith.mulf %26, %33 : vector<128x4xf32>
    %35 = vector.broadcast %22 : vector<128x1xf32> to vector<128x4xf32>
    %36 = arith.mulf %28, %35 : vector<128x4xf32>
    %37 = arith.addf %34, %36 : vector<128x4xf32>
    %c0_29 = arith.constant 0 : index
    %c0_30 = arith.constant 0 : index
    %38 = vector.load %arg19[%c0_29, %c0_30] : memref<128x4xf32, #tpu.memory_space<vmem>>, vector<128x4xf32>
    tpu.vector_store %arg19[%c0_29, %c0_30], %37 {strides = array<i32>} : memref<128x4xf32, #tpu.memory_space<vmem>>, vector<128x4xf32>,
    %c0_31 = arith.constant 0 : index
    %c0_32 = arith.constant 0 : index
    %39 = vector.load %arg17[%c0_31, %c0_32] : memref<128x4xf32, #tpu.memory_space<vmem>>, vector<128x4xf32>
    tpu.vector_store %arg17[%c0_31, %c0_32], %24 {strides = array<i32>} : memref<128x4xf32, #tpu.memory_space<vmem>>, vector<128x4xf32>,
    %c3_i32 = arith.constant 3 : i32
    %40 = arith.cmpi eq, %arg1, %c3_i32 : i32
    %41 = arith.extui %40 : i1 to i32
    %c0_i32_33 = arith.constant 0 : i32
    %42 = arith.cmpi ne, %41, %c0_i32_33 : i32
    scf.if %42 {
      %c0_34 = arith.constant 0 : index
      %c0_35 = arith.constant 0 : index
      %43 = vector.load %arg19[%c0_34, %c0_35] : memref<128x4xf32, #tpu.memory_space<vmem>>, vector<128x4xf32>
      %c0_36 = arith.constant 0 : index
      %c0_37 = arith.constant 0 : index
      %44 = vector.load %arg18[%c0_36, %c0_37] : memref<128x4xf32, #tpu.memory_space<vmem>>, vector<128x4xf32>
      %45 = tpu.reciprocal %44 : vector<128x4xf32> -> vector<128x4xf32>
      %46 = arith.mulf %43, %45 : vector<128x4xf32>
      %c0_38 = arith.constant 0 : index
      %c0_39 = arith.constant 0 : index
      %47 = vector.load %arg16[%c0_38, %c0_39] : memref<128x5xf32, #tpu.memory_space<vmem>>, vector<128x5xf32>
      %48 = vector.extract_strided_slice %47 {offsets = [0, 0], sizes = [128, 4], strides = [1, 1]} : vector<128x5xf32> to vector<128x4xf32>
      %49 = arith.mulf %48, %46 : vector<128x4xf32>
      %50 = vector.extract_strided_slice %47 {offsets = [0, 4], sizes = [128, 1], strides = [1, 1]} : vector<128x5xf32> to vector<128x1xf32>
      %51 = tpu.concatenate %49, %50 in 1 : vector<128x4xf32>, vector<128x1xf32> -> vector<128x5xf32>
      %cst_40 = arith.constant 1.000000e+00 : f32
      %52 = vector.broadcast %cst_40 : f32 to vector<1x5xf32>
      %cst_41 = arith.constant dense<0.000000e+00> : vector<1x128xf32>
      %53 = tpu.matmul %52, %51, %cst_41 {dimension_numbers = #tpu.dot_dimension_numbers<[1], [1], [0], [0], [0, 0, 1, 0], [], []>} : vector<1x5xf32>, vector<128x5xf32>, vector<1x128xf32> -> vector<1x128xf32>
      %54 = vector.shape_cast %53 : vector<1x128xf32> to vector<1x1x128xf32>
      %c0_42 = arith.constant 0 : index
      %c0_43 = arith.constant 0 : index
      %c0_44 = arith.constant 0 : index
      %55 = vector.load %arg14[%c0_42, %c0_43, %c0_44] : memref<1x1x128xf32, #tpu.memory_space<vmem>>, vector<1x1x128xf32>
      tpu.vector_store %arg14[%c0_42, %c0_43, %c0_44], %54 {strides = array<i32>} : memref<1x1x128xf32, #tpu.memory_space<vmem>>, vector<1x1x128xf32>,
    } else {
    }
    return
  }
  func.func @transform_0(%arg0: i32, %arg1: i32) -> (i32, i32) {
    %c0_i32 = arith.constant 0 : i32
    %c0_i32_0 = arith.constant 0 : i32
    return %arg0, %c0_i32 : i32, i32
  }
  func.func @transform_1(%arg0: i32, %arg1: i32) -> (i32, i32, i32) {
    %c0_i32 = arith.constant 0 : i32
    %c0_i32_0 = arith.constant 0 : i32
    return %arg1, %arg0, %c0_i32 : i32, i32, i32
  }
  func.func @transform_2(%arg0: i32, %arg1: i32) -> (i32, i32, i32) {
    %c0_i32 = arith.constant 0 : i32
    %c0_i32_0 = arith.constant 0 : i32
    return %arg1, %arg0, %c0_i32 : i32, i32, i32
  }
  func.func @transform_3(%arg0: i32, %arg1: i32) -> (i32, i32) {
    %c0_i32 = arith.constant 0 : i32
    %c0_i32_0 = arith.constant 0 : i32
    %c0_i32_1 = arith.constant 0 : i32
    return %c0_i32, %c0_i32_0 : i32, i32
  }
  func.func @transform_4(%arg0: i32, %arg1: i32) -> (i32, i32) {
    %c0_i32 = arith.constant 0 : i32
    %c0_i32_0 = arith.constant 0 : i32
    %c0_i32_1 = arith.constant 0 : i32
    return %c0_i32, %c0_i32_0 : i32, i32
  }
  func.func @transform_5(%arg0: i32, %arg1: i32) -> (i32, i32) {
    %c0_i32 = arith.constant 0 : i32
    %c0_i32_0 = arith.constant 0 : i32
    %c0_i32_1 = arith.constant 0 : i32
    return %c0_i32, %c0_i32_0 : i32, i32
  }
  func.func @transform_6(%arg0: i32, %arg1: i32) -> (i32, i32) {
    %c0_i32 = arith.constant 0 : i32
    %c0_i32_0 = arith.constant 0 : i32
    %c0_i32_1 = arith.constant 0 : i32
    return %c0_i32, %c0_i32_0 : i32, i32
  }
  func.func @transform_7(%arg0: i32, %arg1: i32) -> (i32, i32) {
    %c0_i32 = arith.constant 0 : i32
    %c0_i32_0 = arith.constant 0 : i32
    %c0_i32_1 = arith.constant 0 : i32
    return %c0_i32, %c0_i32_0 : i32, i32
  }
  func.func @transform_8(%arg0: i32, %arg1: i32) -> (i32, i32) {
    %c0_i32 = arith.constant 0 : i32
    %c0_i32_0 = arith.constant 0 : i32
    %c0_i32_1 = arith.constant 0 : i32
    return %c0_i32, %c0_i32_0 : i32, i32
  }
  func.func @transform_9(%arg0: i32, %arg1: i32) -> (i32, i32) {
    %c0_i32 = arith.constant 0 : i32
    %c0_i32_0 = arith.constant 0 : i32
    %c0_i32_1 = arith.constant 0 : i32
    return %c0_i32, %c0_i32_0 : i32, i32
  }
  func.func @transform_10(%arg0: i32, %arg1: i32) -> (i32, i32) {
    %c0_i32 = arith.constant 0 : i32
    %c0_i32_0 = arith.constant 0 : i32
    %c0_i32_1 = arith.constant 0 : i32
    return %c0_i32, %c0_i32_0 : i32, i32
  }
  func.func @transform_11(%arg0: i32, %arg1: i32) -> (i32, i32) {
    %c0_i32 = arith.constant 0 : i32
    %c0_i32_0 = arith.constant 0 : i32
    %c0_i32_1 = arith.constant 0 : i32
    return %c0_i32, %c0_i32_0 : i32, i32
  }
  func.func @transform_12(%arg0: i32, %arg1: i32) -> (i32, i32, i32) {
    %c0_i32 = arith.constant 0 : i32
    %c0_i32_0 = arith.constant 0 : i32
    %c0_i32_1 = arith.constant 0 : i32
    return %arg0, %c0_i32, %c0_i32_0 : i32, i32, i32
  }
}

module attributes {stable_mosaic.version = 11 : i64} {
  func.func @qatten_kernel(%arg0: i32, %arg1: i32, %arg2: memref<128x24xf32, #tpu.memory_space<vmem>>, %arg3: memref<1x128x16xf32, #tpu.memory_space<vmem>>, %arg4: memref<1x128x1xf32, #tpu.memory_space<vmem>>, %arg5: memref<24x176xf32, #tpu.memory_space<vmem>>, %arg6: memref<1x176xf32, #tpu.memory_space<vmem>>, %arg7: memref<176x69xf32, #tpu.memory_space<vmem>>, %arg8: memref<1x69xf32, #tpu.memory_space<vmem>>, %arg9: memref<16x128xf32, #tpu.memory_space<vmem>>, %arg10: memref<1x128xf32, #tpu.memory_space<vmem>>, %arg11: memref<128x64xf32, #tpu.memory_space<vmem>>, %arg12: memref<1x64xf32, #tpu.memory_space<vmem>>, %arg13: memref<64x4xf32, #tpu.memory_space<vmem>>, %arg14: memref<1x1x128xf32, #tpu.memory_space<vmem>>, %arg15: memref<128x64xf32, #tpu.memory_space<vmem>>, %arg16: memref<128x5xf32, #tpu.memory_space<vmem>>, %arg17: memref<128x4xf32, #tpu.memory_space<vmem>>, %arg18: memref<128x4xf32, #tpu.memory_space<vmem>>, %arg19: memref<128x4xf32, #tpu.memory_space<vmem>>) attributes {dimension_semantics = [#tpu.dimension_semantics<parallel>, #tpu.dimension_semantics<arbitrary>], iteration_bounds = array<i64: 2, 4>, scalar_prefetch = 0 : i64, scratch_operands = 5 : i64, tpu.core_type = #tpu.core_type<tc>, window_params = [{transform_indices = @transform_0, window_bounds = array<i64: 128, 24>}, {transform_indices = @transform_1, window_bounds = array<i64: 1, 128, 16>}, {transform_indices = @transform_2, window_bounds = array<i64: 1, 128, 1>}, {pipeline_mode = #tpu.pipeline_mode<synchronous>, transform_indices = @transform_3, window_bounds = array<i64: 24, 176>}, {pipeline_mode = #tpu.pipeline_mode<synchronous>, transform_indices = @transform_4, window_bounds = array<i64: 1, 176>}, {pipeline_mode = #tpu.pipeline_mode<synchronous>, transform_indices = @transform_5, window_bounds = array<i64: 176, 69>}, {pipeline_mode = #tpu.pipeline_mode<synchronous>, transform_indices = @transform_6, window_bounds = array<i64: 1, 69>}, {pipeline_mode = #tpu.pipeline_mode<synchronous>, transform_indices = @transform_7, window_bounds = array<i64: 16, 128>}, {pipeline_mode = #tpu.pipeline_mode<synchronous>, transform_indices = @transform_8, window_bounds = array<i64: 1, 128>}, {pipeline_mode = #tpu.pipeline_mode<synchronous>, transform_indices = @transform_9, window_bounds = array<i64: 128, 64>}, {pipeline_mode = #tpu.pipeline_mode<synchronous>, transform_indices = @transform_10, window_bounds = array<i64: 1, 64>}, {pipeline_mode = #tpu.pipeline_mode<synchronous>, transform_indices = @transform_11, window_bounds = array<i64: 64, 4>}, {transform_indices = @transform_12, window_bounds = array<i64: 1, 1, 128>}]} {
    %c0_i32 = arith.constant 0 : i32
    %0 = arith.cmpi eq, %arg1, %c0_i32 : i32
    %1 = arith.extui %0 : i1 to i32
    %c0_i32_0 = arith.constant 0 : i32
    %2 = arith.cmpi ne, %1, %c0_i32_0 : i32
    scf.if %2 {
      %c0_34 = arith.constant 0 : index
      %c0_35 = arith.constant 0 : index
      %43 = vector.load %arg2[%c0_34, %c0_35] : memref<128x24xf32, #tpu.memory_space<vmem>>, vector<128x24xf32>
      %c0_36 = arith.constant 0 : index
      %c0_37 = arith.constant 0 : index
      %44 = vector.load %arg5[%c0_36, %c0_37] : memref<24x176xf32, #tpu.memory_space<vmem>>, vector<24x176xf32>
      %cst_38 = arith.constant dense<0.000000e+00> : vector<128x176xf32>
      %45 = tpu.matmul %43, %44, %cst_38 {dimension_numbers = #tpu.dot_dimension_numbers<[1], [0], [0], [1], [0, 0, 1, 1], [], []>} : vector<128x24xf32>, vector<24x176xf32>, vector<128x176xf32> -> vector<128x176xf32>
      %c0_39 = arith.constant 0 : index
      %c0_40 = arith.constant 0 : index
      %46 = vector.load %arg6[%c0_39, %c0_40] : memref<1x176xf32, #tpu.memory_space<vmem>>, vector<1x176xf32>
      %47 = vector.broadcast %46 : vector<1x176xf32> to vector<128x176xf32>
      %48 = arith.addf %45, %47 : vector<128x176xf32>
      %cst_41 = arith.constant 0.000000e+00 : f32
      %49 = vector.broadcast %cst_41 : f32 to vector<128x176xf32>
      %50 = arith.maximumf %48, %49 : vector<128x176xf32>
      %c0_42 = arith.constant 0 : index
      %c0_43 = arith.constant 0 : index
      %51 = vector.load %arg7[%c0_42, %c0_43] : memref<176x69xf32, #tpu.memory_space<vmem>>, vector<176x69xf32>
      %cst_44 = arith.constant dense<0.000000e+00> : vector<128x69xf32>
      %52 = tpu.matmul %50, %51, %cst_44 {dimension_numbers = #tpu.dot_dimension_numbers<[1], [0], [0], [1], [0, 0, 1, 1], [], []>} : vector<128x176xf32>, vector<176x69xf32>, vector<128x69xf32> -> vector<128x69xf32>
      %c0_45 = arith.constant 0 : index
      %c0_46 = arith.constant 0 : index
      %53 = vector.load %arg8[%c0_45, %c0_46] : memref<1x69xf32, #tpu.memory_space<vmem>>, vector<1x69xf32>
      %54 = vector.broadcast %53 : vector<1x69xf32> to vector<128x69xf32>
      %55 = arith.addf %52, %54 : vector<128x69xf32>
      %56 = vector.extract_strided_slice %55 {offsets = [0, 0], sizes = [128, 64], strides = [1, 1]} : vector<128x69xf32> to vector<128x64xf32>
      %c0_47 = arith.constant 0 : index
      %c0_48 = arith.constant 0 : index
      %57 = vector.load %arg15[%c0_47, %c0_48] : memref<128x64xf32, #tpu.memory_space<vmem>>, vector<128x64xf32>
      tpu.vector_store %arg15[%c0_47, %c0_48], %56 {strides = array<i32>} : memref<128x64xf32, #tpu.memory_space<vmem>>, vector<128x64xf32>,
      %58 = vector.extract_strided_slice %55 {offsets = [0, 64], sizes = [128, 5], strides = [1, 1]} : vector<128x69xf32> to vector<128x5xf32>
      %c0_49 = arith.constant 0 : index
      %c0_50 = arith.constant 0 : index
      %59 = vector.load %arg16[%c0_49, %c0_50] : memref<128x5xf32, #tpu.memory_space<vmem>>, vector<128x5xf32>
      tpu.vector_store %arg16[%c0_49, %c0_50], %58 {strides = array<i32>} : memref<128x5xf32, #tpu.memory_space<vmem>>, vector<128x5xf32>,
      %cst_51 = arith.constant 0xFF800000 : f32
      %60 = vector.broadcast %cst_51 : f32 to vector<128x4xf32>
      %c0_52 = arith.constant 0 : index
      %c0_53 = arith.constant 0 : index
      %61 = vector.load %arg17[%c0_52, %c0_53] : memref<128x4xf32, #tpu.memory_space<vmem>>, vector<128x4xf32>
      tpu.vector_store %arg17[%c0_52, %c0_53], %60 {strides = array<i32>} : memref<128x4xf32, #tpu.memory_space<vmem>>, vector<128x4xf32>,
      %cst_54 = arith.constant 0.000000e+00 : f32
      %62 = vector.broadcast %cst_54 : f32 to vector<128x4xf32>
      %c0_55 = arith.constant 0 : index
      %c0_56 = arith.constant 0 : index
      %63 = vector.load %arg18[%c0_55, %c0_56] : memref<128x4xf32, #tpu.memory_space<vmem>>, vector<128x4xf32>
      tpu.vector_store %arg18[%c0_55, %c0_56], %62 {strides = array<i32>} : memref<128x4xf32, #tpu.memory_space<vmem>>, vector<128x4xf32>,
      %cst_57 = arith.constant 0.000000e+00 : f32
      %64 = vector.broadcast %cst_57 : f32 to vector<128x4xf32>
      %c0_58 = arith.constant 0 : index
      %c0_59 = arith.constant 0 : index
      %65 = vector.load %arg19[%c0_58, %c0_59] : memref<128x4xf32, #tpu.memory_space<vmem>>, vector<128x4xf32>
      tpu.vector_store %arg19[%c0_58, %c0_59], %64 {strides = array<i32>} : memref<128x4xf32, #tpu.memory_space<vmem>>, vector<128x4xf32>,
    } else {
    }
    %c0 = arith.constant 0 : index
    %c0_1 = arith.constant 0 : index
    %c0_2 = arith.constant 0 : index
    %3 = vector.load %arg3[%c0, %c0_1, %c0_2] : memref<1x128x16xf32, #tpu.memory_space<vmem>>, vector<1x128x16xf32>
    %4 = vector.shape_cast %3 : vector<1x128x16xf32> to vector<128x16xf32>
    %c0_3 = arith.constant 0 : index
    %c0_4 = arith.constant 0 : index
    %5 = vector.load %arg9[%c0_3, %c0_4] : memref<16x128xf32, #tpu.memory_space<vmem>>, vector<16x128xf32>
    %cst = arith.constant dense<0.000000e+00> : vector<128x128xf32>
    %6 = tpu.matmul %4, %5, %cst {dimension_numbers = #tpu.dot_dimension_numbers<[1], [0], [0], [1], [0, 0, 1, 1], [], []>} : vector<128x16xf32>, vector<16x128xf32>, vector<128x128xf32> -> vector<128x128xf32>
    %c0_5 = arith.constant 0 : index
    %c0_6 = arith.constant 0 : index
    %7 = vector.load %arg10[%c0_5, %c0_6] : memref<1x128xf32, #tpu.memory_space<vmem>>, vector<1x128xf32>
    %8 = vector.broadcast %7 : vector<1x128xf32> to vector<128x128xf32>
    %9 = arith.addf %6, %8 : vector<128x128xf32>
    %cst_7 = arith.constant 0.000000e+00 : f32
    %10 = vector.broadcast %cst_7 : f32 to vector<128x128xf32>
    %11 = arith.maximumf %9, %10 : vector<128x128xf32>
    %c0_8 = arith.constant 0 : index
    %c0_9 = arith.constant 0 : index
    %12 = vector.load %arg11[%c0_8, %c0_9] : memref<128x64xf32, #tpu.memory_space<vmem>>, vector<128x64xf32>
    %cst_10 = arith.constant dense<0.000000e+00> : vector<128x64xf32>
    %13 = tpu.matmul %11, %12, %cst_10 {dimension_numbers = #tpu.dot_dimension_numbers<[1], [0], [0], [1], [0, 0, 1, 1], [], []>} : vector<128x128xf32>, vector<128x64xf32>, vector<128x64xf32> -> vector<128x64xf32>
    %c0_11 = arith.constant 0 : index
    %c0_12 = arith.constant 0 : index
    %14 = vector.load %arg12[%c0_11, %c0_12] : memref<1x64xf32, #tpu.memory_space<vmem>>, vector<1x64xf32>
    %15 = vector.broadcast %14 : vector<1x64xf32> to vector<128x64xf32>
    %16 = arith.addf %13, %15 : vector<128x64xf32>
    %c0_13 = arith.constant 0 : index
    %c0_14 = arith.constant 0 : index
    %17 = vector.load %arg15[%c0_13, %c0_14] : memref<128x64xf32, #tpu.memory_space<vmem>>, vector<128x64xf32>
    %18 = arith.mulf %16, %17 : vector<128x64xf32>
    %c0_15 = arith.constant 0 : index
    %c0_16 = arith.constant 0 : index
    %19 = vector.load %arg13[%c0_15, %c0_16] : memref<64x4xf32, #tpu.memory_space<vmem>>, vector<64x4xf32>
    %cst_17 = arith.constant dense<0.000000e+00> : vector<128x4xf32>
    %20 = tpu.matmul %18, %19, %cst_17 {dimension_numbers = #tpu.dot_dimension_numbers<[1], [0], [0], [1], [0, 0, 1, 1], [], []>} : vector<128x64xf32>, vector<64x4xf32>, vector<128x4xf32> -> vector<128x4xf32>
    %c0_18 = arith.constant 0 : index
    %c0_19 = arith.constant 0 : index
    %c0_20 = arith.constant 0 : index
    %21 = vector.load %arg4[%c0_18, %c0_19, %c0_20] : memref<1x128x1xf32, #tpu.memory_space<vmem>>, vector<1x128x1xf32>
    %22 = vector.shape_cast %21 : vector<1x128x1xf32> to vector<128x1xf32>
    %c0_21 = arith.constant 0 : index
    %c0_22 = arith.constant 0 : index
    %23 = vector.load %arg17[%c0_21, %c0_22] : memref<128x4xf32, #tpu.memory_space<vmem>>, vector<128x4xf32>
    %24 = arith.maximumf %23, %20 : vector<128x4xf32>
    %25 = arith.subf %23, %24 : vector<128x4xf32>
    %26 = math.exp %25 : vector<128x4xf32>
    %27 = arith.subf %20, %24 : vector<128x4xf32>
    %28 = math.exp %27 : vector<128x4xf32>
    %c0_23 = arith.constant 0 : index
    %c0_24 = arith.constant 0 : index
    %29 = vector.load %arg18[%c0_23, %c0_24] : memref<128x4xf32, #tpu.memory_space<vmem>>, vector<128x4xf32>
    %30 = arith.mulf %26, %29 : vector<128x4xf32>
    %31 = arith.addf %30, %28 : vector<128x4xf32>
    %c0_25 = arith.constant 0 : index
    %c0_26 = arith.constant 0 : index
    %32 = vector.load %arg18[%c0_25, %c0_26] : memref<128x4xf32, #tpu.memory_space<vmem>>, vector<128x4xf32>
    tpu.vector_store %arg18[%c0_25, %c0_26], %31 {strides = array<i32>} : memref<128x4xf32, #tpu.memory_space<vmem>>, vector<128x4xf32>,
    %c0_27 = arith.constant 0 : index
    %c0_28 = arith.constant 0 : index
    %33 = vector.load %arg19[%c0_27, %c0_28] : memref<128x4xf32, #tpu.memory_space<vmem>>, vector<128x4xf32>
    %34 = arith.mulf %26, %33 : vector<128x4xf32>
    %35 = vector.broadcast %22 : vector<128x1xf32> to vector<128x4xf32>
    %36 = arith.mulf %28, %35 : vector<128x4xf32>
    %37 = arith.addf %34, %36 : vector<128x4xf32>
    %c0_29 = arith.constant 0 : index
    %c0_30 = arith.constant 0 : index
    %38 = vector.load %arg19[%c0_29, %c0_30] : memref<128x4xf32, #tpu.memory_space<vmem>>, vector<128x4xf32>
    tpu.vector_store %arg19[%c0_29, %c0_30], %37 {strides = array<i32>} : memref<128x4xf32, #tpu.memory_space<vmem>>, vector<128x4xf32>,
    %c0_31 = arith.constant 0 : index
    %c0_32 = arith.constant 0 : index
    %39 = vector.load %arg17[%c0_31, %c0_32] : memref<128x4xf32, #tpu.memory_space<vmem>>, vector<128x4xf32>
    tpu.vector_store %arg17[%c0_31, %c0_32], %24 {strides = array<i32>} : memref<128x4xf32, #tpu.memory_space<vmem>>, vector<128x4xf32>,
    %c3_i32 = arith.constant 3 : i32
    %40 = arith.cmpi eq, %arg1, %c3_i32 : i32
    %41 = arith.extui %40 : i1 to i32
    %c0_i32_33 = arith.constant 0 : i32
    %42 = arith.cmpi ne, %41, %c0_i32_33 : i32
    scf.if %42 {
      %c0_34 = arith.constant 0 : index
      %c0_35 = arith.constant 0 : index
      %43 = vector.load %arg19[%c0_34, %c0_35] : memref<128x4xf32, #tpu.memory_space<vmem>>, vector<128x4xf32>
      %c0_36 = arith.constant 0 : index
      %c0_37 = arith.constant 0 : index
      %44 = vector.load %arg18[%c0_36, %c0_37] : memref<128x4xf32, #tpu.memory_space<vmem>>, vector<128x4xf32>
      %45 = tpu.reciprocal %44 : vector<128x4xf32> -> vector<128x4xf32>
      %46 = arith.mulf %43, %45 : vector<128x4xf32>
      %c0_38 = arith.constant 0 : index
      %c0_39 = arith.constant 0 : index
      %47 = vector.load %arg16[%c0_38, %c0_39] : memref<128x5xf32, #tpu.memory_space<vmem>>, vector<128x5xf32>
      %48 = vector.extract_strided_slice %47 {offsets = [0, 0], sizes = [128, 4], strides = [1, 1]} : vector<128x5xf32> to vector<128x4xf32>
      %49 = arith.mulf %48, %46 : vector<128x4xf32>
      %50 = vector.extract_strided_slice %47 {offsets = [0, 4], sizes = [128, 1], strides = [1, 1]} : vector<128x5xf32> to vector<128x1xf32>
      %51 = tpu.concatenate %49, %50 in 1 : vector<128x4xf32>, vector<128x1xf32> -> vector<128x5xf32>
      %cst_40 = arith.constant 1.000000e+00 : f32
      %52 = vector.broadcast %cst_40 : f32 to vector<1x5xf32>
      %cst_41 = arith.constant dense<0.000000e+00> : vector<1x128xf32>
      %53 = tpu.matmul %52, %51, %cst_41 {dimension_numbers = #tpu.dot_dimension_numbers<[1], [1], [0], [0], [0, 0, 1, 0], [], []>} : vector<1x5xf32>, vector<128x5xf32>, vector<1x128xf32> -> vector<1x128xf32>
      %54 = vector.shape_cast %53 : vector<1x128xf32> to vector<1x1x128xf32>
      %c0_42 = arith.constant 0 : index
      %c0_43 = arith.constant 0 : index
      %c0_44 = arith.constant 0 : index
      %55 = vector.load %arg14[%c0_42, %c0_43, %c0_44] : memref<1x1x128xf32, #tpu.memory_space<vmem>>, vector<1x1x128xf32>
      tpu.vector_store %arg14[%c0_42, %c0_43, %c0_44], %54 {strides = array<i32>} : memref<1x1x128xf32, #tpu.memory_space<vmem>>, vector<1x1x128xf32>,
    } else {
    }
    return
  }
  func.func @transform_0(%arg0: i32, %arg1: i32) -> (i32, i32) {
    %c0_i32 = arith.constant 0 : i32
    %c0_i32_0 = arith.constant 0 : i32
    return %arg0, %c0_i32 : i32, i32
  }
  func.func @transform_1(%arg0: i32, %arg1: i32) -> (i32, i32, i32) {
    %c0_i32 = arith.constant 0 : i32
    %c0_i32_0 = arith.constant 0 : i32
    return %arg1, %arg0, %c0_i32 : i32, i32, i32
  }
  func.func @transform_2(%arg0: i32, %arg1: i32) -> (i32, i32, i32) {
    %c0_i32 = arith.constant 0 : i32
    %c0_i32_0 = arith.constant 0 : i32
    return %arg1, %arg0, %c0_i32 : i32, i32, i32
  }
  func.func @transform_3(%arg0: i32, %arg1: i32) -> (i32, i32) {
    %c0_i32 = arith.constant 0 : i32
    %c0_i32_0 = arith.constant 0 : i32
    %c0_i32_1 = arith.constant 0 : i32
    return %c0_i32, %c0_i32_0 : i32, i32
  }
  func.func @transform_4(%arg0: i32, %arg1: i32) -> (i32, i32) {
    %c0_i32 = arith.constant 0 : i32
    %c0_i32_0 = arith.constant 0 : i32
    %c0_i32_1 = arith.constant 0 : i32
    return %c0_i32, %c0_i32_0 : i32, i32
  }
  func.func @transform_5(%arg0: i32, %arg1: i32) -> (i32, i32) {
    %c0_i32 = arith.constant 0 : i32
    %c0_i32_0 = arith.constant 0 : i32
    %c0_i32_1 = arith.constant 0 : i32
    return %c0_i32, %c0_i32_0 : i32, i32
  }
  func.func @transform_6(%arg0: i32, %arg1: i32) -> (i32, i32) {
    %c0_i32 = arith.constant 0 : i32
    %c0_i32_0 = arith.constant 0 : i32
    %c0_i32_1 = arith.constant 0 : i32
    return %c0_i32, %c0_i32_0 : i32, i32
  }
  func.func @transform_7(%arg0: i32, %arg1: i32) -> (i32, i32) {
    %c0_i32 = arith.constant 0 : i32
    %c0_i32_0 = arith.constant 0 : i32
    %c0_i32_1 = arith.constant 0 : i32
    return %c0_i32, %c0_i32_0 : i32, i32
  }
  func.func @transform_8(%arg0: i32, %arg1: i32) -> (i32, i32) {
    %c0_i32 = arith.constant 0 : i32
    %c0_i32_0 = arith.constant 0 : i32
    %c0_i32_1 = arith.constant 0 : i32
    return %c0_i32, %c0_i32_0 : i32, i32
  }
  func.func @transform_9(%arg0: i32, %arg1: i32) -> (i32, i32) {
    %c0_i32 = arith.constant 0 : i32
    %c0_i32_0 = arith.constant 0 : i32
    %c0_i32_1 = arith.constant 0 : i32
    return %c0_i32, %c0_i32_0 : i32, i32
  }
  func.func @transform_10(%arg0: i32, %arg1: i32) -> (i32, i32) {
    %c0_i32 = arith.constant 0 : i32
    %c0_i32_0 = arith.constant 0 : i32
    %c0_i32_1 = arith.constant 0 : i32
    return %c0_i32, %c0_i32_0 : i32, i32
  }
  func.func @transform_11(%arg0: i32, %arg1: i32) -> (i32, i32) {
    %c0_i32 = arith.constant 0 : i32
    %c0_i32_0 = arith.constant 0 : i32
    %c0_i32_1 = arith.constant 0 : i32
    return %c0_i32, %c0_i32_0 : i32, i32
  }
  func.func @transform_12(%arg0: i32, %arg1: i32) -> (i32, i32, i32) {
    %c0_i32 = arith.constant 0 : i32
    %c0_i32_0 = arith.constant 0 : i32
    %c0_i32_1 = arith.constant 0 : i32
    return %arg0, %c0_i32, %c0_i32_0 : i32, i32, i32
  }
}

</mosaic_0001>

<llo_original>
// kernel: tpu_custom_call.1
$region0: #{tpu_custom_call.1}
  #allocation0 [shape = 'u32[]', space=smem, size = 0x4, offset = 0x4, fixed_abs, tag = 'smem constant byte address 0x4 - core index']
  #allocation1 [shape = 'u32[72,128]{1,0:T(1,128)}', space=vmem, size = 0x9000, scoped, tag = 'internal scratch']
  #allocation2 [shape = 'f32[128,64]{1,0:T(8,128)}', space=vmem, size = 0x10000, scoped, tag = 'scratch operand']
  #allocation3 [shape = 'f32[128,5]{1,0:T(8,128)}', space=vmem, size = 0x10000, scoped, tag = 'scratch operand']
  #allocation4 [shape = 'f32[128,4]{1,0:T(8,128)}', space=vmem, size = 0x10000, scoped, tag = 'scratch operand']
  #allocation5 [shape = 'f32[128,4]{1,0:T(8,128)}', space=vmem, size = 0x10000, scoped, tag = 'scratch operand']
  #allocation6 [shape = 'f32[128,4]{1,0:T(8,128)}', space=vmem, size = 0x10000, scoped, tag = 'scratch operand']
  %s0 = inlined_call_operand.vmem [shape: f32[256,24], index: 0, kind: input, shape index: {}]
  %s1 = inlined_call_operand.vmem [shape: f32[4,256,16], index: 1, kind: input, shape index: {}]
  %s2 = inlined_call_operand.vmem [shape: f32[4,256,1], index: 2, kind: input, shape index: {}]
  %s3 = inlined_call_operand.vmem [shape: f32[24,176], index: 3, kind: input, shape index: {}]
  %s4 = inlined_call_operand.vmem [shape: f32[1,176], index: 4, kind: input, shape index: {}]
  %s5 = inlined_call_operand.vmem [shape: f32[176,69], index: 5, kind: input, shape index: {}]
  %s6 = inlined_call_operand.vmem [shape: f32[1,69], index: 6, kind: input, shape index: {}]
  %s7 = inlined_call_operand.vmem [shape: f32[16,128], index: 7, kind: input, shape index: {}]
  %s8 = inlined_call_operand.vmem [shape: f32[1,128], index: 8, kind: input, shape index: {}]
  %s9 = inlined_call_operand.vmem [shape: f32[128,64], index: 9, kind: input, shape index: {}]
  %s10 = inlined_call_operand.vmem [shape: f32[1,64], index: 10, kind: input, shape index: {}]
  %s11 = inlined_call_operand.vmem [shape: f32[64,4], index: 11, kind: input, shape index: {}]
  %s12 = inlined_call_operand.hbm [shape: f32[2,1,128], index: 12, kind: output, shape index: {}]
  %s13 = sld [smem:[#allocation0]]
  $region89: #{tpu_custom_call.1} parent=0
    _
  %s15 = ssub.s32 1, %s13
  %s16 = scalar_select 0, %s15, %s13
  $region1: #{tpu_custom_call.1} parent=0
    #allocation7 [shape = 'u8[1024]{0}', space=vmem, size = 0x400, scoped, tag = 'output window, operand 0']
    #allocation8 [shape = 's32[2]{0}', space=sflag, size = 0x8, scoped, tag = 'scoped memory for tpu_custom_call.1']
    %17 = vsyncpa [#allocation8], 0
    %s18 = scalar_lea.sflag [#allocation8], 1
    %19 = vsyncpa %s18, 0
    loop: start=0, step=1, limit=10
    $region2: #{tpu_custom_call.1} parent=1 // loop_pre_header
      _
    $region3: #{tpu_custom_call.1} parent=1 // loop_header
      %s21 = sphi 0, %s25
      %p22 = scmp.ge.s32.totalorder %s21, 10
      %s28 = sphi 0, %s40
      %s29 = sphi 0, %s36
      %s30 = sphi 0, %s28
      %s31 = sphi 0, %s29
      %s32 = sphi 0, %s30
      %s33 = sphi 0, %s31
      %s43 = sphi 0, %s45
      %s46 = sphi 0, %s43
      %s47 = sphi 0, %s46
      %s63 = sphi 0, %s47
      %s71 = sphi 0, %s73
      %s74 = sphi 0, %s71
      %s75 = sphi 0, %s74
      %s91 = sphi 0, %s75
      %s99 = sphi 0, %s101
      %s102 = sphi 0, %s99
      %s103 = sphi 0, %s102
      %s119 = sphi 0, %s103
      %s123 = sphi 0, %s123
      %s125 = sphi 0, %s123
      %s126 = sphi 0, %s125
      %s140 = sphi 0, %s126
      %s144 = sphi 0, %s144
      %s146 = sphi 0, %s144
      %s147 = sphi 0, %s146
      %s161 = sphi 0, %s147
      %s165 = sphi 0, %s165
      %s167 = sphi 0, %s165
      %s168 = sphi 0, %s167
      %s182 = sphi 0, %s168
      %s186 = sphi 0, %s186
      %s188 = sphi 0, %s186
      %s189 = sphi 0, %s188
      %s203 = sphi 0, %s189
      %s207 = sphi 0, %s207
      %s209 = sphi 0, %s207
      %s210 = sphi 0, %s209
      %s224 = sphi 0, %s210
      %s228 = sphi 0, %s228
      %s230 = sphi 0, %s228
      %s231 = sphi 0, %s230
      %s245 = sphi 0, %s231
      %s249 = sphi 0, %s249
      %s251 = sphi 0, %s249
      %s252 = sphi 0, %s251
      %s266 = sphi 0, %s252
      %s270 = sphi 0, %s270
      %s272 = sphi 0, %s270
      %s273 = sphi 0, %s272
      %s287 = sphi 0, %s273
      %s291 = sphi 0, %s291
      %s293 = sphi 0, %s291
      %s294 = sphi 0, %s293
      %s308 = sphi 0, %s294
      %s314 = sphi 0, %s316
      %s317 = sphi 0, %s314
      %s318 = sphi 0, %s317
      %s334 = sphi 0, %s318
    $region4: #{tpu_custom_call.1} parent=1 // loop_header_branch
      %24 = sbr.rel (%p22) target = $region8
    $region5: #{tpu_custom_call.1} parent=1 // loop_body
      %s26 = ssub.s32 %s21, 1
      %s27 = ssub.s32 %s21, 2
      %s34 = sadd.s32 1, %s29
      %p35 = scmp.ge.s32.totalorder %s34, 4
      %s36 = scalar_select %p35, 0, %s34
      %s37 = sadd.s32 1, %s28
      %s38 = scalar_select %p35, %s37, %s28
      %p39 = scmp.ge.s32.totalorder %s38, 2
      %s40 = scalar_select %p39, 0, %s38
      %s41 = ssub.s32 %s28, %s40
      %p42 = scmp.eq.s32.totalorder %s41, 0
      %s44 = sadd.s32 %s43, 1
      %s45 = scalar_select %p42, %s43, %s44
      %p48 = pneg %p42
      %p49 = scmp.eq.s32.totalorder %s21, 7
      %p50 = por %p48, %p49
      %p51 = scmp.ne.s32.totalorder %s43, %s46
      %p52 = scmp.eq.s32.totalorder %s21, 0
      %p53 = por %p51, %p52
      %p54 = scmp.ne.s32.totalorder %s43, %s46
      %p55 = scmp.eq.s32.totalorder %s26, 7
      %p56 = por %p54, %p55
      %p57 = scmp.ne.s32.totalorder %s46, %s47
      %p58 = scmp.eq.s32.totalorder %s26, 0
      %p59 = por %p57, %p58
      %p60 = scmp.ne.s32.totalorder %s46, %s47
      %p61 = scmp.eq.s32.totalorder %s27, 7
      %p62 = por %p60, %p61
      %p64 = scmp.ne.s32.totalorder %s47, %s63
      %p65 = scmp.eq.s32.totalorder %s27, 0
      %p66 = por %p64, %p65
      %s67 = ssub.s32 %s29, %s36
      %s68 = ssub.s32 %s28, %s40
      %s69 = sor.u32 %s67, %s68
      %p70 = scmp.eq.s32.totalorder %s69, 0
      %s72 = sadd.s32 %s71, 1
      %s73 = scalar_select %p70, %s71, %s72
      %p76 = pneg %p70
      %p77 = scmp.eq.s32.totalorder %s21, 7
      %p78 = por %p76, %p77
      %p79 = scmp.ne.s32.totalorder %s71, %s74
      %p80 = scmp.eq.s32.totalorder %s21, 0
      %p81 = por %p79, %p80
      %p82 = scmp.ne.s32.totalorder %s71, %s74
      %p83 = scmp.eq.s32.totalorder %s26, 7
      %p84 = por %p82, %p83
      %p85 = scmp.ne.s32.totalorder %s74, %s75
      %p86 = scmp.eq.s32.totalorder %s26, 0
      %p87 = por %p85, %p86
      %p88 = scmp.ne.s32.totalorder %s74, %s75
      %p89 = scmp.eq.s32.totalorder %s27, 7
      %p90 = por %p88, %p89
      %p92 = scmp.ne.s32.totalorder %s75, %s91
      %p93 = scmp.eq.s32.totalorder %s27, 0
      %p94 = por %p92, %p93
      %s95 = ssub.s32 %s29, %s36
      %s96 = ssub.s32 %s28, %s40
      %s97 = sor.u32 %s95, %s96
      %p98 = scmp.eq.s32.totalorder %s97, 0
      %s100 = sadd.s32 %s99, 1
      %s101 = scalar_select %p98, %s99, %s100
      %p104 = pneg %p98
      %p105 = scmp.eq.s32.totalorder %s21, 7
      %p106 = por %p104, %p105
      %p107 = scmp.ne.s32.totalorder %s99, %s102
      %p108 = scmp.eq.s32.totalorder %s21, 0
      %p109 = por %p107, %p108
      %p110 = scmp.ne.s32.totalorder %s99, %s102
      %p111 = scmp.eq.s32.totalorder %s26, 7
      %p112 = por %p110, %p111
      %p113 = scmp.ne.s32.totalorder %s102, %s103
      %p114 = scmp.eq.s32.totalorder %s26, 0
      %p115 = por %p113, %p114
      %p116 = scmp.ne.s32.totalorder %s102, %s103
      %p117 = scmp.eq.s32.totalorder %s27, 7
      %p118 = por %p116, %p117
      %p120 = scmp.ne.s32.totalorder %s103, %s119
      %p121 = scmp.eq.s32.totalorder %s27, 0
      %p122 = por %p120, %p121
      %s124 = sadd.s32 %s123, 1
      %p127 = scmp.eq.s32.totalorder %s21, 7
      %p128 = scmp.ne.s32.totalorder %s123, %s125
      %p129 = scmp.eq.s32.totalorder %s21, 0
      %p130 = por %p128, %p129
      %p131 = scmp.ne.s32.totalorder %s123, %s125
      %p132 = scmp.eq.s32.totalorder %s26, 7
      %p133 = por %p131, %p132
      %p134 = scmp.ne.s32.totalorder %s125, %s126
      %p135 = scmp.eq.s32.totalorder %s26, 0
      %p136 = por %p134, %p135
      %p137 = scmp.ne.s32.totalorder %s125, %s126
      %p138 = scmp.eq.s32.totalorder %s27, 7
      %p139 = por %p137, %p138
      %p141 = scmp.ne.s32.totalorder %s126, %s140
      %p142 = scmp.eq.s32.totalorder %s27, 0
      %p143 = por %p141, %p142
      %s145 = sadd.s32 %s144, 1
      %p148 = scmp.eq.s32.totalorder %s21, 7
      %p149 = scmp.ne.s32.totalorder %s144, %s146
      %p150 = scmp.eq.s32.totalorder %s21, 0
      %p151 = por %p149, %p150
      %p152 = scmp.ne.s32.totalorder %s144, %s146
      %p153 = scmp.eq.s32.totalorder %s26, 7
      %p154 = por %p152, %p153
      %p155 = scmp.ne.s32.totalorder %s146, %s147
      %p156 = scmp.eq.s32.totalorder %s26, 0
      %p157 = por %p155, %p156
      %p158 = scmp.ne.s32.totalorder %s146, %s147
      %p159 = scmp.eq.s32.totalorder %s27, 7
      %p160 = por %p158, %p159
      %p162 = scmp.ne.s32.totalorder %s147, %s161
      %p163 = scmp.eq.s32.totalorder %s27, 0
      %p164 = por %p162, %p163
      %s166 = sadd.s32 %s165, 1
      %p169 = scmp.eq.s32.totalorder %s21, 7
      %p170 = scmp.ne.s32.totalorder %s165, %s167
      %p171 = scmp.eq.s32.totalorder %s21, 0
      %p172 = por %p170, %p171
      %p173 = scmp.ne.s32.totalorder %s165, %s167
      %p174 = scmp.eq.s32.totalorder %s26, 7
      %p175 = por %p173, %p174
      %p176 = scmp.ne.s32.totalorder %s167, %s168
      %p177 = scmp.eq.s32.totalorder %s26, 0
      %p178 = por %p176, %p177
      %p179 = scmp.ne.s32.totalorder %s167, %s168
      %p180 = scmp.eq.s32.totalorder %s27, 7
      %p181 = por %p179, %p180
      %p183 = scmp.ne.s32.totalorder %s168, %s182
      %p184 = scmp.eq.s32.totalorder %s27, 0
      %p185 = por %p183, %p184
      %s187 = sadd.s32 %s186, 1
      %p190 = scmp.eq.s32.totalorder %s21, 7
      %p191 = scmp.ne.s32.totalorder %s186, %s188
      %p192 = scmp.eq.s32.totalorder %s21, 0
      %p193 = por %p191, %p192
      %p194 = scmp.ne.s32.totalorder %s186, %s188
      %p195 = scmp.eq.s32.totalorder %s26, 7
      %p196 = por %p194, %p195
      %p197 = scmp.ne.s32.totalorder %s188, %s189
      %p198 = scmp.eq.s32.totalorder %s26, 0
      %p199 = por %p197, %p198
      %p200 = scmp.ne.s32.totalorder %s188, %s189
      %p201 = scmp.eq.s32.totalorder %s27, 7
      %p202 = por %p200, %p201
      %p204 = scmp.ne.s32.totalorder %s189, %s203
      %p205 = scmp.eq.s32.totalorder %s27, 0
      %p206 = por %p204, %p205
      %s208 = sadd.s32 %s207, 1
      %p211 = scmp.eq.s32.totalorder %s21, 7
      %p212 = scmp.ne.s32.totalorder %s207, %s209
      %p213 = scmp.eq.s32.totalorder %s21, 0
      %p214 = por %p212, %p213
      %p215 = scmp.ne.s32.totalorder %s207, %s209
      %p216 = scmp.eq.s32.totalorder %s26, 7
      %p217 = por %p215, %p216
      %p218 = scmp.ne.s32.totalorder %s209, %s210
      %p219 = scmp.eq.s32.totalorder %s26, 0
      %p220 = por %p218, %p219
      %p221 = scmp.ne.s32.totalorder %s209, %s210
      %p222 = scmp.eq.s32.totalorder %s27, 7
      %p223 = por %p221, %p222
      %p225 = scmp.ne.s32.totalorder %s210, %s224
      %p226 = scmp.eq.s32.totalorder %s27, 0
      %p227 = por %p225, %p226
      %s229 = sadd.s32 %s228, 1
      %p232 = scmp.eq.s32.totalorder %s21, 7
      %p233 = scmp.ne.s32.totalorder %s228, %s230
      %p234 = scmp.eq.s32.totalorder %s21, 0
      %p235 = por %p233, %p234
      %p236 = scmp.ne.s32.totalorder %s228, %s230
      %p237 = scmp.eq.s32.totalorder %s26, 7
      %p238 = por %p236, %p237
      %p239 = scmp.ne.s32.totalorder %s230, %s231
      %p240 = scmp.eq.s32.totalorder %s26, 0
      %p241 = por %p239, %p240
      %p242 = scmp.ne.s32.totalorder %s230, %s231
      %p243 = scmp.eq.s32.totalorder %s27, 7
      %p244 = por %p242, %p243
      %p246 = scmp.ne.s32.totalorder %s231, %s245
      %p247 = scmp.eq.s32.totalorder %s27, 0
      %p248 = por %p246, %p247
      %s250 = sadd.s32 %s249, 1
      %p253 = scmp.eq.s32.totalorder %s21, 7
      %p254 = scmp.ne.s32.totalorder %s249, %s251
      %p255 = scmp.eq.s32.totalorder %s21, 0
      %p256 = por %p254, %p255
      %p257 = scmp.ne.s32.totalorder %s249, %s251
      %p258 = scmp.eq.s32.totalorder %s26, 7
      %p259 = por %p257, %p258
      %p260 = scmp.ne.s32.totalorder %s251, %s252
      %p261 = scmp.eq.s32.totalorder %s26, 0
      %p262 = por %p260, %p261
      %p263 = scmp.ne.s32.totalorder %s251, %s252
      %p264 = scmp.eq.s32.totalorder %s27, 7
      %p265 = por %p263, %p264
      %p267 = scmp.ne.s32.totalorder %s252, %s266
      %p268 = scmp.eq.s32.totalorder %s27, 0
      %p269 = por %p267, %p268
      %s271 = sadd.s32 %s270, 1
      %p274 = scmp.eq.s32.totalorder %s21, 7
      %p275 = scmp.ne.s32.totalorder %s270, %s272
      %p276 = scmp.eq.s32.totalorder %s21, 0
      %p277 = por %p275, %p276
      %p278 = scmp.ne.s32.totalorder %s270, %s272
      %p279 = scmp.eq.s32.totalorder %s26, 7
      %p280 = por %p278, %p279
      %p281 = scmp.ne.s32.totalorder %s272, %s273
      %p282 = scmp.eq.s32.totalorder %s26, 0
      %p283 = por %p281, %p282
      %p284 = scmp.ne.s32.totalorder %s272, %s273
      %p285 = scmp.eq.s32.totalorder %s27, 7
      %p286 = por %p284, %p285
      %p288 = scmp.ne.s32.totalorder %s273, %s287
      %p289 = scmp.eq.s32.totalorder %s27, 0
      %p290 = por %p288, %p289
      %s292 = sadd.s32 %s291, 1
      %p295 = scmp.eq.s32.totalorder %s21, 7
      %p296 = scmp.ne.s32.totalorder %s291, %s293
      %p297 = scmp.eq.s32.totalorder %s21, 0
      %p298 = por %p296, %p297
      %p299 = scmp.ne.s32.totalorder %s291, %s293
      %p300 = scmp.eq.s32.totalorder %s26, 7
      %p301 = por %p299, %p300
      %p302 = scmp.ne.s32.totalorder %s293, %s294
      %p303 = scmp.eq.s32.totalorder %s26, 0
      %p304 = por %p302, %p303
      %p305 = scmp.ne.s32.totalorder %s293, %s294
      %p306 = scmp.eq.s32.totalorder %s27, 7
      %p307 = por %p305, %p306
      %p309 = scmp.ne.s32.totalorder %s294, %s308
      %p310 = scmp.eq.s32.totalorder %s27, 0
      %p311 = por %p309, %p310
      %s312 = ssub.s32 %s28, %s40
      %p313 = scmp.eq.s32.totalorder %s312, 0
      %s315 = sadd.s32 %s314, 1
      %s316 = scalar_select %p313, %s314, %s315
      %p319 = pneg %p313
      %p320 = scmp.eq.s32.totalorder %s21, 7
      %p321 = por %p319, %p320
      %p322 = scmp.ne.s32.totalorder %s314, %s317
      %p323 = scmp.eq.s32.totalorder %s21, 0
      %p324 = por %p322, %p323
      %p325 = scmp.ne.s32.totalorder %s314, %s317
      %p326 = scmp.eq.s32.totalorder %s26, 7
      %p327 = por %p325, %p326
      %p328 = scmp.ne.s32.totalorder %s317, %s318
      %p329 = scmp.eq.s32.totalorder %s26, 0
      %p330 = por %p328, %p329
      %p331 = scmp.ne.s32.totalorder %s317, %s318
      %p332 = scmp.eq.s32.totalorder %s27, 7
      %p333 = por %p331, %p332
      %p335 = scmp.ne.s32.totalorder %s318, %s334
      %p336 = scmp.eq.s32.totalorder %s27, 0
      %p337 = por %p335, %p336
      %p338 = scmp.le.s32.totalorder 1, %s21
      %p339 = scmp.lt.s32.totalorder %s21, 9
      %p340 = pnand %p338, %p339
      %p341 = pneg %p340
      // Predicated region
      $region9: #{tpu_custom_call.1} parent=5 // pred_check
        _
      $region10: #{tpu_custom_call.1} parent=5 // pred_check_branch
        %343 = sbr.rel (%p340) target = $region12
      $region11: #{tpu_custom_call.1} parent=5 // pred_region
        %s344 = ssub.s32 %s21, 1
        // Predicated region
        $region13: #{tpu_custom_call.1} parent=11 // pred_check
          %p345 = pneg %p136
        $region14: #{tpu_custom_call.1} parent=11 // pred_check_branch
          %347 = sbr.rel (%p345) target = $region16
        $region15: #{tpu_custom_call.1} parent=11 // pred_region
          _
        $region16: #{tpu_custom_call.1} parent=11 // pred_fallthru
          _
        // Predicated region
        $region17: #{tpu_custom_call.1} parent=11 // pred_check
          %p348 = pneg %p157
        $region18: #{tpu_custom_call.1} parent=11 // pred_check_branch
          %350 = sbr.rel (%p348) target = $region20
        $region19: #{tpu_custom_call.1} parent=11 // pred_region
          _
        $region20: #{tpu_custom_call.1} parent=11 // pred_fallthru
          _
        // Predicated region
        $region21: #{tpu_custom_call.1} parent=11 // pred_check
          %p351 = pneg %p178
        $region22: #{tpu_custom_call.1} parent=11 // pred_check_branch
          %353 = sbr.rel (%p351) target = $region24
        $region23: #{tpu_custom_call.1} parent=11 // pred_region
          _
        $region24: #{tpu_custom_call.1} parent=11 // pred_fallthru
          _
        // Predicated region
        $region25: #{tpu_custom_call.1} parent=11 // pred_check
          %p354 = pneg %p199
        $region26: #{tpu_custom_call.1} parent=11 // pred_check_branch
          %356 = sbr.rel (%p354) target = $region28
        $region27: #{tpu_custom_call.1} parent=11 // pred_region
          _
        $region28: #{tpu_custom_call.1} parent=11 // pred_fallthru
          _
        // Predicated region
        $region29: #{tpu_custom_call.1} parent=11 // pred_check
          %p357 = pneg %p220
        $region30: #{tpu_custom_call.1} parent=11 // pred_check_branch
          %359 = sbr.rel (%p357) target = $region32
        $region31: #{tpu_custom_call.1} parent=11 // pred_region
          _
        $region32: #{tpu_custom_call.1} parent=11 // pred_fallthru
          _
        // Predicated region
        $region33: #{tpu_custom_call.1} parent=11 // pred_check
          %p360 = pneg %p241
        $region34: #{tpu_custom_call.1} parent=11 // pred_check_branch
          %362 = sbr.rel (%p360) target = $region36
        $region35: #{tpu_custom_call.1} parent=11 // pred_region
          _
        $region36: #{tpu_custom_call.1} parent=11 // pred_fallthru
          _
        // Predicated region
        $region37: #{tpu_custom_call.1} parent=11 // pred_check
          %p363 = pneg %p262
        $region38: #{tpu_custom_call.1} parent=11 // pred_check_branch
          %365 = sbr.rel (%p363) target = $region40
        $region39: #{tpu_custom_call.1} parent=11 // pred_region
          _
        $region40: #{tpu_custom_call.1} parent=11 // pred_fallthru
          _
        // Predicated region
        $region41: #{tpu_custom_call.1} parent=11 // pred_check
          %p366 = pneg %p283
        $region42: #{tpu_custom_call.1} parent=11 // pred_check_branch
          %368 = sbr.rel (%p366) target = $region44
        $region43: #{tpu_custom_call.1} parent=11 // pred_region
          _
        $region44: #{tpu_custom_call.1} parent=11 // pred_fallthru
          _
        // Predicated region
        $region45: #{tpu_custom_call.1} parent=11 // pred_check
          %p369 = pneg %p304
        $region46: #{tpu_custom_call.1} parent=11 // pred_check_branch
          %371 = sbr.rel (%p369) target = $region48
        $region47: #{tpu_custom_call.1} parent=11 // pred_region
          _
        $region48: #{tpu_custom_call.1} parent=11 // pred_fallthru
          _
      $region12: #{tpu_custom_call.1} parent=5 // pred_fallthru
        _
      %p372 = scmp.lt.s32.totalorder %s21, 8
      // Predicated region
      $region49: #{tpu_custom_call.1} parent=5 // pred_check
        %p373 = pneg %p372
      $region50: #{tpu_custom_call.1} parent=5 // pred_check_branch
        %375 = sbr.rel (%p373) target = $region52
      $region51: #{tpu_custom_call.1} parent=5 // pred_region
        // Predicated region
        $region53: #{tpu_custom_call.1} parent=51 // pred_check
          %p376 = pneg %p53
        $region54: #{tpu_custom_call.1} parent=51 // pred_check_branch
          %378 = sbr.rel (%p376) target = $region56
        $region55: #{tpu_custom_call.1} parent=51 // pred_region
          %s379 = smul.u32 16, %s28
          %p380 = scmp.lt.s32.totalorder %s379, 31
          %s381 = scalar_select %p380, %s379, 31
          %s382 = smul.addr %s381, 8
          %s383 = scalar_lea.vmem %s0, %s382
          %s384 = smul.u32 16, %s28
        $region56: #{tpu_custom_call.1} parent=51 // pred_fallthru
          _
        // Predicated region
        $region57: #{tpu_custom_call.1} parent=51 // pred_check
          %p385 = pneg %p81
        $region58: #{tpu_custom_call.1} parent=51 // pred_check_branch
          %387 = sbr.rel (%p385) target = $region60
        $region59: #{tpu_custom_call.1} parent=51 // pred_region
          %s388 = smul.u32 16, %s28
          %p389 = scmp.lt.s32.totalorder %s29, 3
          %s390 = scalar_select %p389, %s29, 3
          %p391 = scmp.lt.s32.totalorder %s388, 31
          %s392 = scalar_select %p391, %s388, 31
          %s393 = smul.addr %s390, 32
          %s394 = sadd.s32 %s392, %s393
          %s395 = smul.addr %s394, 8
          %s396 = scalar_lea.vmem %s1, %s395
          %s397 = smul.u32 16, %s28
        $region60: #{tpu_custom_call.1} parent=51 // pred_fallthru
          _
        // Predicated region
        $region61: #{tpu_custom_call.1} parent=51 // pred_check
          %p398 = pneg %p109
        $region62: #{tpu_custom_call.1} parent=51 // pred_check_branch
          %400 = sbr.rel (%p398) target = $region64
        $region63: #{tpu_custom_call.1} parent=51 // pred_region
          %s401 = smul.u32 16, %s28
          %p402 = scmp.lt.s32.totalorder %s29, 3
          %s403 = scalar_select %p402, %s29, 3
          %p404 = scmp.lt.s32.totalorder %s401, 31
          %s405 = scalar_select %p404, %s401, 31
          %s406 = smul.addr %s403, 32
          %s407 = sadd.s32 %s405, %s406
          %s408 = smul.addr %s407, 8
          %s409 = scalar_lea.vmem %s2, %s408
          %s410 = smul.u32 16, %s28
        $region64: #{tpu_custom_call.1} parent=51 // pred_fallthru
          _
      $region52: #{tpu_custom_call.1} parent=5 // pred_fallthru
        _
      %p411 = scmp.le.s32.totalorder 1, %s21
      %p412 = scmp.lt.s32.totalorder %s21, 9
      %p413 = pnand %p411, %p412
      %p414 = pneg %p413
      // Predicated region
      $region65: #{tpu_custom_call.1} parent=5 // pred_check
        _
      $region66: #{tpu_custom_call.1} parent=5 // pred_check_branch
        %416 = sbr.rel (%p413) target = $region68
      $region67: #{tpu_custom_call.1} parent=5 // pred_region
        %s417 = ssub.s32 %s21, 1
        %s418 = smul.u32 16, %s30
        %p419 = scmp.lt.s32.totalorder %s418, 31
        %s420 = scalar_select %p419, %s418, 31
        %s421 = smul.addr %s420, 8
        %s422 = scalar_lea.vmem %s0, %s421
        %p423 = pneg %p59
        %p424 = pneg %p56
        %s425 = smul.u32 16, %s30
        %p426 = scmp.lt.s32.totalorder %s31, 3
        %s427 = scalar_select %p426, %s31, 3
        %p428 = scmp.lt.s32.totalorder %s425, 31
        %s429 = scalar_select %p428, %s425, 31
        %s430 = smul.addr %s427, 32
        %s431 = sadd.s32 %s429, %s430
        %s432 = smul.addr %s431, 8
        %s433 = scalar_lea.vmem %s1, %s432
        %p434 = pneg %p87
        %p435 = pneg %p84
        %s436 = smul.u32 16, %s30
        %p437 = scmp.lt.s32.totalorder %s31, 3
        %s438 = scalar_select %p437, %s31, 3
        %p439 = scmp.lt.s32.totalorder %s436, 31
        %s440 = scalar_select %p439, %s436, 31
        %s441 = smul.addr %s438, 32
        %s442 = sadd.s32 %s440, %s441
        %s443 = smul.addr %s442, 8
        %s444 = scalar_lea.vmem %s2, %s443
        %p445 = pneg %p115
        %p446 = pneg %p112
        %p447 = pneg %p136
        %p448 = pneg %p133
        %p449 = pneg %p157
        %p450 = pneg %p154
        %p451 = pneg %p178
        %p452 = pneg %p175
        %p453 = pneg %p199
        %p454 = pneg %p196
        %p455 = pneg %p220
        %p456 = pneg %p217
        %p457 = pneg %p241
        %p458 = pneg %p238
        %p459 = pneg %p262
        %p460 = pneg %p259
        %p461 = pneg %p283
        %p462 = pneg %p280
        %p463 = pneg %p304
        %p464 = pneg %p301
        %p465 = pneg %p330
        %p466 = pneg %p327
        %s467 = sand.u32 %s317, 1
        %s468 = scalar_lea.sflag [#allocation8], %s467
        %s469 = sand.u32 %s317, 1
        %s470 = scalar_lea.vmem [#allocation7], %s469
        %s471 = smul.u32 16, %s30
        %p472 = scmp.lt.s32.totalorder %s471, 31
        %s473 = scalar_select %p472, %s471, 31
        %s474 = smul.addr %s473, 8
        %s475 = scalar_lea.vmem %s0, %s474
        %s476 = smul.u32 16, %s30
        %s477 = smul.u32 16, %s30
        %p478 = scmp.lt.s32.totalorder %s31, 3
        %s479 = scalar_select %p478, %s31, 3
        %p480 = scmp.lt.s32.totalorder %s477, 31
        %s481 = scalar_select %p480, %s477, 31
        %s482 = smul.addr %s479, 32
        %s483 = sadd.s32 %s481, %s482
        %s484 = smul.addr %s483, 8
        %s485 = scalar_lea.vmem %s1, %s484
        %s486 = smul.u32 16, %s30
        %s487 = smul.u32 16, %s30
        %p488 = scmp.lt.s32.totalorder %s31, 3
        %s489 = scalar_select %p488, %s31, 3
        %p490 = scmp.lt.s32.totalorder %s487, 31
        %s491 = scalar_select %p490, %s487, 31
        %s492 = smul.addr %s489, 32
        %s493 = sadd.s32 %s491, %s492
        %s494 = smul.addr %s493, 8
        %s495 = scalar_lea.vmem %s2, %s494
        %s496 = smul.u32 16, %s30
        %p497 = scmp.eq.s32.totalorder %s31, 0
        // Predicated region
        $region69: #{tpu_custom_call.1} parent=67 // pred_check
          %p498 = pneg %p497
        $region70: #{tpu_custom_call.1} parent=67 // pred_check_branch
          %500 = sbr.rel (%p498) target = $region72
        $region71: #{tpu_custom_call.1} parent=67 // pred_region
          %v501 = vld [vmem:[%s475] sm:$0xff]
          %v502 = vld [vmem:[%s475 + $0x8] sm:$0xff]
          %v503 = vld [vmem:[%s475 + $0x10] sm:$0xff]
          %v504 = vld [vmem:[%s475 + $0x18] sm:$0xff]
          %v505 = vld [vmem:[%s475 + $0x20] sm:$0xff]
          %v506 = vld [vmem:[%s475 + $0x28] sm:$0xff]
          %v507 = vld [vmem:[%s475 + $0x30] sm:$0xff]
          %v508 = vld [vmem:[%s475 + $0x38] sm:$0xff]
          %v509 = vld [vmem:[%s475 + $0x40] sm:$0xff]
          %v510 = vld [vmem:[%s475 + $0x48] sm:$0xff]
          %v511 = vld [vmem:[%s475 + $0x50] sm:$0xff]
          %v512 = vld [vmem:[%s475 + $0x58] sm:$0xff]
          %v513 = vld [vmem:[%s475 + $0x60] sm:$0xff]
          %v514 = vld [vmem:[%s475 + $0x68] sm:$0xff]
          %v515 = vld [vmem:[%s475 + $0x70] sm:$0xff]
          %v516 = vld [vmem:[%s475 + $0x78] sm:$0xff]
          %v517 = vld [vmem:[%s3] sm:$0xff]
          %v518 = vld [vmem:[%s3 + $0x8] sm:$0xff]
          %v519 = vld [vmem:[%s3 + $0x10] sm:$0xff]
          %v520 = vld [vmem:[%s3 + $0x18] sm:$0xff]
          %v521 = vld [vmem:[%s3 + $0x20] sm:$0xff]
          %v522 = vld [vmem:[%s3 + $0x28] sm:$0xff]
          %v523 = vld [vmem:[%s4] sm:$0x3]
          %v525 = vperm.slane %v523, 0
          %v526 = vperm.slane %v523, 1
          %vm529 = vcmask 195584
          %v531 = vsel %vm529, %v501, 0
          %v534 = vsel %vm529, %v502, 0
          %v537 = vsel %vm529, %v503, 0
          %v540 = vsel %vm529, %v504, 0
          %v543 = vsel %vm529, %v505, 0
          %v546 = vsel %vm529, %v506, 0
          %v549 = vsel %vm529, %v507, 0
          %v552 = vsel %vm529, %v508, 0
          %v555 = vsel %vm529, %v509, 0
          %v558 = vsel %vm529, %v510, 0
          %v561 = vsel %vm529, %v511, 0
          %v564 = vsel %vm529, %v512, 0
          %v567 = vsel %vm529, %v513, 0
          %v570 = vsel %vm529, %v514, 0
          %v573 = vsel %vm529, %v515, 0
          %v576 = vsel %vm529, %v516, 0
          %578 = vmatpush.msra.mxu0 0.0
          %579 = vmatpush.msra.mxu0 0.0
          %580 = vmatpush.msra.mxu0 0.0
          %581 = vmatpush.msra.mxu0 0.0
          %582 = vmatpush.msra.mxu0 0.0
          %583 = vmatpush.msra.mxu0 0.0
          %584 = vmatpush.msra.mxu0 0.0
          %585 = vmatpush.msra.mxu0 0.0
          %586 = vmatpush.msra.mxu0 0.0
          %587 = vmatpush.msra.mxu0 0.0
          %588 = vmatpush.msra.mxu0 0.0
          %589 = vmatpush.msra.mxu0 0.0
          %590 = vmatpush.msra.mxu0 0.0
          %591 = vmatpush.msra.mxu0 %v521
          %592 = vmatpush.msra.mxu0 %v519
          %593 = vmatpush.msra.mxu0 %v517
          %594 = vmatmul.f32.gmra.mxu0 %v531
          %v595 = vpop.f32.mrf.mxu0
          %v596 = vadd.f32 %v525, %v595
          %597 = vmatmul.f32.gmra.mxu0 %v534
          %v598 = vpop.f32.mrf.mxu0
          %v599 = vadd.f32 %v525, %v598
          %600 = vmatmul.f32.gmra.mxu0 %v537
          %v601 = vpop.f32.mrf.mxu0
          %v602 = vadd.f32 %v525, %v601
          %603 = vmatmul.f32.gmra.mxu0 %v540
          %v604 = vpop.f32.mrf.mxu0
          %v605 = vadd.f32 %v525, %v604
          %606 = vmatmul.f32.gmra.mxu0 %v543
          %v607 = vpop.f32.mrf.mxu0
          %v608 = vadd.f32 %v525, %v607
          %609 = vmatmul.f32.gmra.mxu0 %v546
          %v610 = vpop.f32.mrf.mxu0
          %v611 = vadd.f32 %v525, %v610
          %612 = vmatmul.f32.gmra.mxu0 %v549
          %v613 = vpop.f32.mrf.mxu0
          %v614 = vadd.f32 %v525, %v613
          %615 = vmatmul.f32.gmra.mxu0 %v552
          %v616 = vpop.f32.mrf.mxu0
          %v617 = vadd.f32 %v525, %v616
          %618 = vmatmul.f32.gmra.mxu0 %v555
          %v619 = vpop.f32.mrf.mxu0
          %v620 = vadd.f32 %v525, %v619
          %621 = vmatmul.f32.gmra.mxu0 %v558
          %v622 = vpop.f32.mrf.mxu0
          %v623 = vadd.f32 %v525, %v622
          %624 = vmatmul.f32.gmra.mxu0 %v561
          %v625 = vpop.f32.mrf.mxu0
          %v626 = vadd.f32 %v525, %v625
          %627 = vmatmul.f32.gmra.mxu0 %v564
          %v628 = vpop.f32.mrf.mxu0
          %v629 = vadd.f32 %v525, %v628
          %630 = vmatmul.f32.gmra.mxu0 %v567
          %v631 = vpop.f32.mrf.mxu0
          %v632 = vadd.f32 %v525, %v631
          %633 = vmatmul.f32.gmra.mxu0 %v570
          %v634 = vpop.f32.mrf.mxu0
          %v635 = vadd.f32 %v525, %v634
          %636 = vmatmul.f32.gmra.mxu0 %v573
          %v637 = vpop.f32.mrf.mxu0
          %v638 = vadd.f32 %v525, %v637
          %639 = vmatmul.f32.gmra.mxu0 %v576
          %v640 = vpop.f32.mrf.mxu0
          %v641 = vadd.f32 %v525, %v640
          %642 = vdwg.mxu0
          %643 = vmatpush.msra.mxu0 0.0
          %644 = vmatpush.msra.mxu0 0.0
          %645 = vmatpush.msra.mxu0 0.0
          %646 = vmatpush.msra.mxu0 0.0
          %647 = vmatpush.msra.mxu0 0.0
          %648 = vmatpush.msra.mxu0 0.0
          %649 = vmatpush.msra.mxu0 0.0
          %650 = vmatpush.msra.mxu0 0.0
          %651 = vmatpush.msra.mxu0 0.0
          %652 = vmatpush.msra.mxu0 0.0
          %653 = vmatpush.msra.mxu0 0.0
          %654 = vmatpush.msra.mxu0 0.0
          %655 = vmatpush.msra.mxu0 0.0
          %656 = vmatpush.msra.mxu0 %v522
          %657 = vmatpush.msra.mxu0 %v520
          %658 = vmatpush.msra.mxu0 %v518
          %659 = vmatmul.f32.gmra.mxu0 %v531
          %v660 = vpop.f32.mrf.mxu0
          %v661 = vadd.f32 %v526, %v660
          %662 = vmatmul.f32.gmra.mxu0 %v534
          %v663 = vpop.f32.mrf.mxu0
          %v664 = vadd.f32 %v526, %v663
          %665 = vmatmul.f32.gmra.mxu0 %v537
          %v666 = vpop.f32.mrf.mxu0
          %v667 = vadd.f32 %v526, %v666
          %668 = vmatmul.f32.gmra.mxu0 %v540
          %v669 = vpop.f32.mrf.mxu0
          %v670 = vadd.f32 %v526, %v669
          %671 = vmatmul.f32.gmra.mxu0 %v543
          %v672 = vpop.f32.mrf.mxu0
          %v673 = vadd.f32 %v526, %v672
          %674 = vmatmul.f32.gmra.mxu0 %v546
          %v675 = vpop.f32.mrf.mxu0
          %v676 = vadd.f32 %v526, %v675
          %677 = vmatmul.f32.gmra.mxu0 %v549
          %v678 = vpop.f32.mrf.mxu0
          %v679 = vadd.f32 %v526, %v678
          %680 = vmatmul.f32.gmra.mxu0 %v552
          %v681 = vpop.f32.mrf.mxu0
          %v682 = vadd.f32 %v526, %v681
          %683 = vmatmul.f32.gmra.mxu0 %v555
          %v684 = vpop.f32.mrf.mxu0
          %v685 = vadd.f32 %v526, %v684
          %686 = vmatmul.f32.gmra.mxu0 %v558
          %v687 = vpop.f32.mrf.mxu0
          %v688 = vadd.f32 %v526, %v687
          %689 = vmatmul.f32.gmra.mxu0 %v561
          %v690 = vpop.f32.mrf.mxu0
          %v691 = vadd.f32 %v526, %v690
          %692 = vmatmul.f32.gmra.mxu0 %v564
          %v693 = vpop.f32.mrf.mxu0
          %v694 = vadd.f32 %v526, %v693
          %695 = vmatmul.f32.gmra.mxu0 %v567
          %v696 = vpop.f32.mrf.mxu0
          %v697 = vadd.f32 %v526, %v696
          %698 = vmatmul.f32.gmra.mxu0 %v570
          %v699 = vpop.f32.mrf.mxu0
          %v700 = vadd.f32 %v526, %v699
          %701 = vmatmul.f32.gmra.mxu0 %v573
          %v702 = vpop.f32.mrf.mxu0
          %v703 = vadd.f32 %v526, %v702
          %704 = vmatmul.f32.gmra.mxu0 %v576
          %v705 = vpop.f32.mrf.mxu0
          %v706 = vadd.f32 %v526, %v705
          %707 = vdwg.mxu0
          %v708 = vmax.f32 %v596, 0.0
          %v709 = vmax.f32 %v661, 0.0
          %v710 = vmax.f32 %v599, 0.0
          %v711 = vmax.f32 %v664, 0.0
          %v712 = vmax.f32 %v602, 0.0
          %v713 = vmax.f32 %v667, 0.0
          %v714 = vmax.f32 %v605, 0.0
          %v715 = vmax.f32 %v670, 0.0
          %v716 = vmax.f32 %v608, 0.0
          %v717 = vmax.f32 %v673, 0.0
          %v718 = vmax.f32 %v611, 0.0
          %v719 = vmax.f32 %v676, 0.0
          %v720 = vmax.f32 %v614, 0.0
          %v721 = vmax.f32 %v679, 0.0
          %v722 = vmax.f32 %v617, 0.0
          %v723 = vmax.f32 %v682, 0.0
          %v724 = vmax.f32 %v620, 0.0
          %v725 = vmax.f32 %v685, 0.0
          %v726 = vmax.f32 %v623, 0.0
          %v727 = vmax.f32 %v688, 0.0
          %v728 = vmax.f32 %v626, 0.0
          %v729 = vmax.f32 %v691, 0.0
          %v730 = vmax.f32 %v629, 0.0
          %v731 = vmax.f32 %v694, 0.0
          %v732 = vmax.f32 %v632, 0.0
          %v733 = vmax.f32 %v697, 0.0
          %v734 = vmax.f32 %v635, 0.0
          %v735 = vmax.f32 %v700, 0.0
          %v736 = vmax.f32 %v638, 0.0
          %v737 = vmax.f32 %v703, 0.0
          %v738 = vmax.f32 %v641, 0.0
          %v739 = vmax.f32 %v706, 0.0
          %v740 = vld [vmem:[%s5] sm:$0xff]
          %v741 = vld [vmem:[%s5 + $0x8] sm:$0xff]
          %v742 = vld [vmem:[%s5 + $0x10] sm:$0xff]
          %v743 = vld [vmem:[%s5 + $0x18] sm:$0xff]
          %v744 = vld [vmem:[%s5 + $0x20] sm:$0xff]
          %v745 = vld [vmem:[%s5 + $0x28] sm:$0xff]
          %v746 = vld [vmem:[%s5 + $0x30] sm:$0xff]
          %v747 = vld [vmem:[%s5 + $0x38] sm:$0xff]
          %v748 = vld [vmem:[%s5 + $0x40] sm:$0xff]
          %v749 = vld [vmem:[%s5 + $0x48] sm:$0xff]
          %v750 = vld [vmem:[%s5 + $0x50] sm:$0xff]
          %v751 = vld [vmem:[%s5 + $0x58] sm:$0xff]
          %v752 = vld [vmem:[%s5 + $0x60] sm:$0xff]
          %v753 = vld [vmem:[%s5 + $0x68] sm:$0xff]
          %v754 = vld [vmem:[%s5 + $0x70] sm:$0xff]
          %v755 = vld [vmem:[%s5 + $0x78] sm:$0xff]
          %v756 = vld [vmem:[%s5 + $0x80] sm:$0xff]
          %v757 = vld [vmem:[%s5 + $0x88] sm:$0xff]
          %v758 = vld [vmem:[%s5 + $0x90] sm:$0xff]
          %v759 = vld [vmem:[%s5 + $0x98] sm:$0xff]
          %v760 = vld [vmem:[%s5 + $0xa0] sm:$0xff]
          %v761 = vld [vmem:[%s5 + $0xa8] sm:$0xff]
          %v762 = vld [vmem:[%s6] sm:$0x1]
          %v764 = vperm.slane %v762, 0
          %vm766 = vcmask 392192
          %v768 = vsel %vm766, %v709, 0
          %v771 = vsel %vm766, %v711, 0
          %v774 = vsel %vm766, %v713, 0
          %v777 = vsel %vm766, %v715, 0
          %v780 = vsel %vm766, %v717, 0
          %v783 = vsel %vm766, %v719, 0
          %v786 = vsel %vm766, %v721, 0
          %v789 = vsel %vm766, %v723, 0
          %v792 = vsel %vm766, %v725, 0
          %v795 = vsel %vm766, %v727, 0
          %v798 = vsel %vm766, %v729, 0
          %v801 = vsel %vm766, %v731, 0
          %v804 = vsel %vm766, %v733, 0
          %v807 = vsel %vm766, %v735, 0
          %v810 = vsel %vm766, %v737, 0
          %v813 = vsel %vm766, %v739, 0
          %815 = vmatpush.msra.mxu0 %v755
          %816 = vmatpush.msra.mxu0 %v754
          %817 = vmatpush.msra.mxu0 %v753
          %818 = vmatpush.msra.mxu0 %v752
          %819 = vmatpush.msra.mxu0 %v751
          %820 = vmatpush.msra.mxu0 %v750
          %821 = vmatpush.msra.mxu0 %v749
          %822 = vmatpush.msra.mxu0 %v748
          %823 = vmatpush.msra.mxu0 %v747
          %824 = vmatpush.msra.mxu0 %v746
          %825 = vmatpush.msra.mxu0 %v745
          %826 = vmatpush.msra.mxu0 %v744
          %827 = vmatpush.msra.mxu0 %v743
          %828 = vmatpush.msra.mxu0 %v742
          %829 = vmatpush.msra.mxu0 %v741
          %830 = vmatpush.msra.mxu0 %v740
          %831 = vmatmul.f32.gmra.mxu0 %v708
          %v832 = vpop.f32.mrf.mxu0
          %v833 = vadd.f32 %v764, %v832
          %834 = vmatmul.f32.gmra.mxu0 %v710
          %v835 = vpop.f32.mrf.mxu0
          %v836 = vadd.f32 %v764, %v835
          %837 = vmatmul.f32.gmra.mxu0 %v712
          %v838 = vpop.f32.mrf.mxu0
          %v839 = vadd.f32 %v764, %v838
          %840 = vmatmul.f32.gmra.mxu0 %v714
          %v841 = vpop.f32.mrf.mxu0
          %v842 = vadd.f32 %v764, %v841
          %843 = vmatmul.f32.gmra.mxu0 %v716
          %v844 = vpop.f32.mrf.mxu0
          %v845 = vadd.f32 %v764, %v844
          %846 = vmatmul.f32.gmra.mxu0 %v718
          %v847 = vpop.f32.mrf.mxu0
          %v848 = vadd.f32 %v764, %v847
          %849 = vmatmul.f32.gmra.mxu0 %v720
          %v850 = vpop.f32.mrf.mxu0
          %v851 = vadd.f32 %v764, %v850
          %852 = vmatmul.f32.gmra.mxu0 %v722
          %v853 = vpop.f32.mrf.mxu0
          %v854 = vadd.f32 %v764, %v853
          %855 = vmatmul.f32.gmra.mxu0 %v724
          %v856 = vpop.f32.mrf.mxu0
          %v857 = vadd.f32 %v764, %v856
          %858 = vmatmul.f32.gmra.mxu0 %v726
          %v859 = vpop.f32.mrf.mxu0
          %v860 = vadd.f32 %v764, %v859
          %861 = vmatmul.f32.gmra.mxu0 %v728
          %v862 = vpop.f32.mrf.mxu0
          %v863 = vadd.f32 %v764, %v862
          %864 = vmatmul.f32.gmra.mxu0 %v730
          %v865 = vpop.f32.mrf.mxu0
          %v866 = vadd.f32 %v764, %v865
          %867 = vmatmul.f32.gmra.mxu0 %v732
          %v868 = vpop.f32.mrf.mxu0
          %v869 = vadd.f32 %v764, %v868
          %870 = vmatmul.f32.gmra.mxu0 %v734
          %v871 = vpop.f32.mrf.mxu0
          %v872 = vadd.f32 %v764, %v871
          %873 = vmatmul.f32.gmra.mxu0 %v736
          %v874 = vpop.f32.mrf.mxu0
          %v875 = vadd.f32 %v764, %v874
          %876 = vmatmul.f32.gmra.mxu0 %v738
          %v877 = vpop.f32.mrf.mxu0
          %v878 = vadd.f32 %v764, %v877
          %879 = vdwg.mxu0
          %880 = vmatpush.msra.mxu0 0.0
          %881 = vmatpush.msra.mxu0 0.0
          %882 = vmatpush.msra.mxu0 0.0
          %883 = vmatpush.msra.mxu0 0.0
          %884 = vmatpush.msra.mxu0 0.0
          %885 = vmatpush.msra.mxu0 0.0
          %886 = vmatpush.msra.mxu0 0.0
          %887 = vmatpush.msra.mxu0 0.0
          %888 = vmatpush.msra.mxu0 0.0
          %889 = vmatpush.msra.mxu0 0.0
          %890 = vmatpush.msra.mxu0 %v761
          %891 = vmatpush.msra.mxu0 %v760
          %892 = vmatpush.msra.mxu0 %v759
          %893 = vmatpush.msra.mxu0 %v758
          %894 = vmatpush.msra.mxu0 %v757
          %895 = vmatpush.msra.mxu0 %v756
          %896 = vmatmul.f32.gmra.mxu0 %v768
          %v897 = vpop.f32.mrf.mxu0
          %v898 = vadd.f32 %v833, %v897
          %899 = vmatmul.f32.gmra.mxu0 %v771
          %v900 = vpop.f32.mrf.mxu0
          %v901 = vadd.f32 %v836, %v900
          %902 = vmatmul.f32.gmra.mxu0 %v774
          %v903 = vpop.f32.mrf.mxu0
          %v904 = vadd.f32 %v839, %v903
          %905 = vmatmul.f32.gmra.mxu0 %v777
          %v906 = vpop.f32.mrf.mxu0
          %v907 = vadd.f32 %v842, %v906
          %908 = vmatmul.f32.gmra.mxu0 %v780
          %v909 = vpop.f32.mrf.mxu0
          %v910 = vadd.f32 %v845, %v909
          %911 = vmatmul.f32.gmra.mxu0 %v783
          %v912 = vpop.f32.mrf.mxu0
          %v913 = vadd.f32 %v848, %v912
          %914 = vmatmul.f32.gmra.mxu0 %v786
          %v915 = vpop.f32.mrf.mxu0
          %v916 = vadd.f32 %v851, %v915
          %917 = vmatmul.f32.gmra.mxu0 %v789
          %v918 = vpop.f32.mrf.mxu0
          %v919 = vadd.f32 %v854, %v918
          %920 = vmatmul.f32.gmra.mxu0 %v792
          %v921 = vpop.f32.mrf.mxu0
          %v922 = vadd.f32 %v857, %v921
          %923 = vmatmul.f32.gmra.mxu0 %v795
          %v924 = vpop.f32.mrf.mxu0
          %v925 = vadd.f32 %v860, %v924
          %926 = vmatmul.f32.gmra.mxu0 %v798
          %v927 = vpop.f32.mrf.mxu0
          %v928 = vadd.f32 %v863, %v927
          %929 = vmatmul.f32.gmra.mxu0 %v801
          %v930 = vpop.f32.mrf.mxu0
          %v931 = vadd.f32 %v866, %v930
          %932 = vmatmul.f32.gmra.mxu0 %v804
          %v933 = vpop.f32.mrf.mxu0
          %v934 = vadd.f32 %v869, %v933
          %935 = vmatmul.f32.gmra.mxu0 %v807
          %v936 = vpop.f32.mrf.mxu0
          %v937 = vadd.f32 %v872, %v936
          %938 = vmatmul.f32.gmra.mxu0 %v810
          %v939 = vpop.f32.mrf.mxu0
          %v940 = vadd.f32 %v875, %v939
          %941 = vmatmul.f32.gmra.mxu0 %v813
          %v942 = vpop.f32.mrf.mxu0
          %v943 = vadd.f32 %v878, %v942
          %944 = vdwg.mxu0
          %vm945 = vcmask 523264
          %946 = vst.msk [vmem:[#allocation2] sm:$0xff] %vm945, %v898
          %947 = vst.msk [vmem:[#allocation2 + $0x8] sm:$0xff] %vm945, %v901
          %948 = vst.msk [vmem:[#allocation2 + $0x10] sm:$0xff] %vm945, %v904
          %949 = vst.msk [vmem:[#allocation2 + $0x18] sm:$0xff] %vm945, %v907
          %950 = vst.msk [vmem:[#allocation2 + $0x20] sm:$0xff] %vm945, %v910
          %951 = vst.msk [vmem:[#allocation2 + $0x28] sm:$0xff] %vm945, %v913
          %952 = vst.msk [vmem:[#allocation2 + $0x30] sm:$0xff] %vm945, %v916
          %953 = vst.msk [vmem:[#allocation2 + $0x38] sm:$0xff] %vm945, %v919
          %954 = vst.msk [vmem:[#allocation2 + $0x40] sm:$0xff] %vm945, %v922
          %955 = vst.msk [vmem:[#allocation2 + $0x48] sm:$0xff] %vm945, %v925
          %956 = vst.msk [vmem:[#allocation2 + $0x50] sm:$0xff] %vm945, %v928
          %957 = vst.msk [vmem:[#allocation2 + $0x58] sm:$0xff] %vm945, %v931
          %958 = vst.msk [vmem:[#allocation2 + $0x60] sm:$0xff] %vm945, %v934
          %959 = vst.msk [vmem:[#allocation2 + $0x68] sm:$0xff] %vm945, %v937
          %960 = vst.msk [vmem:[#allocation2 + $0x70] sm:$0xff] %vm945, %v940
          %961 = vst.msk [vmem:[#allocation2 + $0x78] sm:$0xff] %vm945, %v943
          %978 = vrot.lane.b32.xlu0 %v898, 64
          %v979 = vpop.permute.xlu0 %978
          %980 = vrot.lane.b32.xlu0 %v901, 64
          %v981 = vpop.permute.xlu0 %980
          %982 = vrot.lane.b32.xlu0 %v904, 64
          %v983 = vpop.permute.xlu0 %982
          %984 = vrot.lane.b32.xlu0 %v907, 64
          %v985 = vpop.permute.xlu0 %984
          %986 = vrot.lane.b32.xlu0 %v910, 64
          %v987 = vpop.permute.xlu0 %986
          %988 = vrot.lane.b32.xlu0 %v913, 64
          %v989 = vpop.permute.xlu0 %988
          %990 = vrot.lane.b32.xlu0 %v916, 64
          %v991 = vpop.permute.xlu0 %990
          %992 = vrot.lane.b32.xlu0 %v919, 64
          %v993 = vpop.permute.xlu0 %992
          %994 = vrot.lane.b32.xlu0 %v922, 64
          %v995 = vpop.permute.xlu0 %994
          %996 = vrot.lane.b32.xlu0 %v925, 64
          %v997 = vpop.permute.xlu0 %996
          %998 = vrot.lane.b32.xlu0 %v928, 64
          %v999 = vpop.permute.xlu0 %998
          %1000 = vrot.lane.b32.xlu0 %v931, 64
          %v1001 = vpop.permute.xlu0 %1000
          %1002 = vrot.lane.b32.xlu0 %v934, 64
          %v1003 = vpop.permute.xlu0 %1002
          %1004 = vrot.lane.b32.xlu0 %v937, 64
          %v1005 = vpop.permute.xlu0 %1004
          %1006 = vrot.lane.b32.xlu0 %v940, 64
          %v1007 = vpop.permute.xlu0 %1006
          %1008 = vrot.lane.b32.xlu0 %v943, 64
          %v1009 = vpop.permute.xlu0 %1008
          %vm1026 = vcmask 39936
          %1027 = vst.msk [vmem:[#allocation3] sm:$0xff] %vm1026, %v979
          %1028 = vst.msk [vmem:[#allocation3 + $0x8] sm:$0xff] %vm1026, %v981
          %1029 = vst.msk [vmem:[#allocation3 + $0x10] sm:$0xff] %vm1026, %v983
          %1030 = vst.msk [vmem:[#allocation3 + $0x18] sm:$0xff] %vm1026, %v985
          %1031 = vst.msk [vmem:[#allocation3 + $0x20] sm:$0xff] %vm1026, %v987
          %1032 = vst.msk [vmem:[#allocation3 + $0x28] sm:$0xff] %vm1026, %v989
          %1033 = vst.msk [vmem:[#allocation3 + $0x30] sm:$0xff] %vm1026, %v991
          %1034 = vst.msk [vmem:[#allocation3 + $0x38] sm:$0xff] %vm1026, %v993
          %1035 = vst.msk [vmem:[#allocation3 + $0x40] sm:$0xff] %vm1026, %v995
          %1036 = vst.msk [vmem:[#allocation3 + $0x48] sm:$0xff] %vm1026, %v997
          %1037 = vst.msk [vmem:[#allocation3 + $0x50] sm:$0xff] %vm1026, %v999
          %1038 = vst.msk [vmem:[#allocation3 + $0x58] sm:$0xff] %vm1026, %v1001
          %1039 = vst.msk [vmem:[#allocation3 + $0x60] sm:$0xff] %vm1026, %v1003
          %1040 = vst.msk [vmem:[#allocation3 + $0x68] sm:$0xff] %vm1026, %v1005
          %1041 = vst.msk [vmem:[#allocation3 + $0x70] sm:$0xff] %vm1026, %v1007
          %1042 = vst.msk [vmem:[#allocation3 + $0x78] sm:$0xff] %vm1026, %v1009
          %vm1043 = vcmask 31744
          %1044 = vst.msk [vmem:[#allocation4] sm:$0xff] %vm1043, -inf
          %1045 = vst.msk [vmem:[#allocation4 + $0x8] sm:$0xff] %vm1043, -inf
          %1046 = vst.msk [vmem:[#allocation4 + $0x10] sm:$0xff] %vm1043, -inf
          %1047 = vst.msk [vmem:[#allocation4 + $0x18] sm:$0xff] %vm1043, -inf
          %1048 = vst.msk [vmem:[#allocation4 + $0x20] sm:$0xff] %vm1043, -inf
          %1049 = vst.msk [vmem:[#allocation4 + $0x28] sm:$0xff] %vm1043, -inf
          %1050 = vst.msk [vmem:[#allocation4 + $0x30] sm:$0xff] %vm1043, -inf
          %1051 = vst.msk [vmem:[#allocation4 + $0x38] sm:$0xff] %vm1043, -inf
          %1052 = vst.msk [vmem:[#allocation4 + $0x40] sm:$0xff] %vm1043, -inf
          %1053 = vst.msk [vmem:[#allocation4 + $0x48] sm:$0xff] %vm1043, -inf
          %1054 = vst.msk [vmem:[#allocation4 + $0x50] sm:$0xff] %vm1043, -inf
          %1055 = vst.msk [vmem:[#allocation4 + $0x58] sm:$0xff] %vm1043, -inf
          %1056 = vst.msk [vmem:[#allocation4 + $0x60] sm:$0xff] %vm1043, -inf
          %1057 = vst.msk [vmem:[#allocation4 + $0x68] sm:$0xff] %vm1043, -inf
          %1058 = vst.msk [vmem:[#allocation4 + $0x70] sm:$0xff] %vm1043, -inf
          %1059 = vst.msk [vmem:[#allocation4 + $0x78] sm:$0xff] %vm1043, -inf
          %1060 = vst.msk [vmem:[#allocation5] sm:$0xff] %vm1043, 0.0
          %1061 = vst.msk [vmem:[#allocation5 + $0x8] sm:$0xff] %vm1043, 0.0
          %1062 = vst.msk [vmem:[#allocation5 + $0x10] sm:$0xff] %vm1043, 0.0
          %1063 = vst.msk [vmem:[#allocation5 + $0x18] sm:$0xff] %vm1043, 0.0
          %1064 = vst.msk [vmem:[#allocation5 + $0x20] sm:$0xff] %vm1043, 0.0
          %1065 = vst.msk [vmem:[#allocation5 + $0x28] sm:$0xff] %vm1043, 0.0
          %1066 = vst.msk [vmem:[#allocation5 + $0x30] sm:$0xff] %vm1043, 0.0
          %1067 = vst.msk [vmem:[#allocation5 + $0x38] sm:$0xff] %vm1043, 0.0
          %1068 = vst.msk [vmem:[#allocation5 + $0x40] sm:$0xff] %vm1043, 0.0
          %1069 = vst.msk [vmem:[#allocation5 + $0x48] sm:$0xff] %vm1043, 0.0
          %1070 = vst.msk [vmem:[#allocation5 + $0x50] sm:$0xff] %vm1043, 0.0
          %1071 = vst.msk [vmem:[#allocation5 + $0x58] sm:$0xff] %vm1043, 0.0
          %1072 = vst.msk [vmem:[#allocation5 + $0x60] sm:$0xff] %vm1043, 0.0
          %1073 = vst.msk [vmem:[#allocation5 + $0x68] sm:$0xff] %vm1043, 0.0
          %1074 = vst.msk [vmem:[#allocation5 + $0x70] sm:$0xff] %vm1043, 0.0
          %1075 = vst.msk [vmem:[#allocation5 + $0x78] sm:$0xff] %vm1043, 0.0
          %1076 = vst.msk [vmem:[#allocation6] sm:$0xff] %vm1043, 0.0
          %1077 = vst.msk [vmem:[#allocation6 + $0x8] sm:$0xff] %vm1043, 0.0
          %1078 = vst.msk [vmem:[#allocation6 + $0x10] sm:$0xff] %vm1043, 0.0
          %1079 = vst.msk [vmem:[#allocation6 + $0x18] sm:$0xff] %vm1043, 0.0
          %1080 = vst.msk [vmem:[#allocation6 + $0x20] sm:$0xff] %vm1043, 0.0
          %1081 = vst.msk [vmem:[#allocation6 + $0x28] sm:$0xff] %vm1043, 0.0
          %1082 = vst.msk [vmem:[#allocation6 + $0x30] sm:$0xff] %vm1043, 0.0
          %1083 = vst.msk [vmem:[#allocation6 + $0x38] sm:$0xff] %vm1043, 0.0
          %1084 = vst.msk [vmem:[#allocation6 + $0x40] sm:$0xff] %vm1043, 0.0
          %1085 = vst.msk [vmem:[#allocation6 + $0x48] sm:$0xff] %vm1043, 0.0
          %1086 = vst.msk [vmem:[#allocation6 + $0x50] sm:$0xff] %vm1043, 0.0
          %1087 = vst.msk [vmem:[#allocation6 + $0x58] sm:$0xff] %vm1043, 0.0
          %1088 = vst.msk [vmem:[#allocation6 + $0x60] sm:$0xff] %vm1043, 0.0
          %1089 = vst.msk [vmem:[#allocation6 + $0x68] sm:$0xff] %vm1043, 0.0
          %1090 = vst.msk [vmem:[#allocation6 + $0x70] sm:$0xff] %vm1043, 0.0
          %1091 = vst.msk [vmem:[#allocation6 + $0x78] sm:$0xff] %vm1043, 0.0
        $region72: #{tpu_custom_call.1} parent=67 // pred_fallthru
          _
        %v1092 = vld [vmem:[%s485] sm:$0xff]
        %v1093 = vld [vmem:[%s485 + $0x8] sm:$0xff]
        %v1094 = vld [vmem:[%s485 + $0x10] sm:$0xff]
        %v1095 = vld [vmem:[%s485 + $0x18] sm:$0xff]
        %v1096 = vld [vmem:[%s485 + $0x20] sm:$0xff]
        %v1097 = vld [vmem:[%s485 + $0x28] sm:$0xff]
        %v1098 = vld [vmem:[%s485 + $0x30] sm:$0xff]
        %v1099 = vld [vmem:[%s485 + $0x38] sm:$0xff]
        %v1100 = vld [vmem:[%s485 + $0x40] sm:$0xff]
        %v1101 = vld [vmem:[%s485 + $0x48] sm:$0xff]
        %v1102 = vld [vmem:[%s485 + $0x50] sm:$0xff]
        %v1103 = vld [vmem:[%s485 + $0x58] sm:$0xff]
        %v1104 = vld [vmem:[%s485 + $0x60] sm:$0xff]
        %v1105 = vld [vmem:[%s485 + $0x68] sm:$0xff]
        %v1106 = vld [vmem:[%s485 + $0x70] sm:$0xff]
        %v1107 = vld [vmem:[%s485 + $0x78] sm:$0xff]
        %v1108 = vld [vmem:[%s7] sm:$0xff]
        %v1109 = vld [vmem:[%s7 + $0x8] sm:$0xff]
        %v1110 = vld [vmem:[%s8] sm:$0x1]
        %v1112 = vperm.slane %v1110, 0
        %vm1114 = vcmask 130048
        %v1116 = vsel %vm1114, %v1092, 0
        %v1119 = vsel %vm1114, %v1093, 0
        %v1122 = vsel %vm1114, %v1094, 0
        %v1125 = vsel %vm1114, %v1095, 0
        %v1128 = vsel %vm1114, %v1096, 0
        %v1131 = vsel %vm1114, %v1097, 0
        %v1134 = vsel %vm1114, %v1098, 0
        %v1137 = vsel %vm1114, %v1099, 0
        %v1140 = vsel %vm1114, %v1100, 0
        %v1143 = vsel %vm1114, %v1101, 0
        %v1146 = vsel %vm1114, %v1102, 0
        %v1149 = vsel %vm1114, %v1103, 0
        %v1152 = vsel %vm1114, %v1104, 0
        %v1155 = vsel %vm1114, %v1105, 0
        %v1158 = vsel %vm1114, %v1106, 0
        %v1161 = vsel %vm1114, %v1107, 0
        %1163 = vmatpush.msra.mxu0 0.0
        %1164 = vmatpush.msra.mxu0 0.0
        %1165 = vmatpush.msra.mxu0 0.0
        %1166 = vmatpush.msra.mxu0 0.0
        %1167 = vmatpush.msra.mxu0 0.0
        %1168 = vmatpush.msra.mxu0 0.0
        %1169 = vmatpush.msra.mxu0 0.0
        %1170 = vmatpush.msra.mxu0 0.0
        %1171 = vmatpush.msra.mxu0 0.0
        %1172 = vmatpush.msra.mxu0 0.0
        %1173 = vmatpush.msra.mxu0 0.0
        %1174 = vmatpush.msra.mxu0 0.0
        %1175 = vmatpush.msra.mxu0 0.0
        %1176 = vmatpush.msra.mxu0 0.0
        %1177 = vmatpush.msra.mxu0 %v1109
        %1178 = vmatpush.msra.mxu0 %v1108
        %1179 = vmatmul.f32.gmra.mxu0 %v1116
        %v1180 = vpop.f32.mrf.mxu0
        %v1181 = vadd.f32 %v1112, %v1180
        %1182 = vmatmul.f32.gmra.mxu0 %v1119
        %v1183 = vpop.f32.mrf.mxu0
        %v1184 = vadd.f32 %v1112, %v1183
        %1185 = vmatmul.f32.gmra.mxu0 %v1122
        %v1186 = vpop.f32.mrf.mxu0
        %v1187 = vadd.f32 %v1112, %v1186
        %1188 = vmatmul.f32.gmra.mxu0 %v1125
        %v1189 = vpop.f32.mrf.mxu0
        %v1190 = vadd.f32 %v1112, %v1189
        %1191 = vmatmul.f32.gmra.mxu0 %v1128
        %v1192 = vpop.f32.mrf.mxu0
        %v1193 = vadd.f32 %v1112, %v1192
        %1194 = vmatmul.f32.gmra.mxu0 %v1131
        %v1195 = vpop.f32.mrf.mxu0
        %v1196 = vadd.f32 %v1112, %v1195
        %1197 = vmatmul.f32.gmra.mxu0 %v1134
        %v1198 = vpop.f32.mrf.mxu0
        %v1199 = vadd.f32 %v1112, %v1198
        %1200 = vmatmul.f32.gmra.mxu0 %v1137
        %v1201 = vpop.f32.mrf.mxu0
        %v1202 = vadd.f32 %v1112, %v1201
        %1203 = vmatmul.f32.gmra.mxu0 %v1140
        %v1204 = vpop.f32.mrf.mxu0
        %v1205 = vadd.f32 %v1112, %v1204
        %1206 = vmatmul.f32.gmra.mxu0 %v1143
        %v1207 = vpop.f32.mrf.mxu0
        %v1208 = vadd.f32 %v1112, %v1207
        %1209 = vmatmul.f32.gmra.mxu0 %v1146
        %v1210 = vpop.f32.mrf.mxu0
        %v1211 = vadd.f32 %v1112, %v1210
        %1212 = vmatmul.f32.gmra.mxu0 %v1149
        %v1213 = vpop.f32.mrf.mxu0
        %v1214 = vadd.f32 %v1112, %v1213
        %1215 = vmatmul.f32.gmra.mxu0 %v1152
        %v1216 = vpop.f32.mrf.mxu0
        %v1217 = vadd.f32 %v1112, %v1216
        %1218 = vmatmul.f32.gmra.mxu0 %v1155
        %v1219 = vpop.f32.mrf.mxu0
        %v1220 = vadd.f32 %v1112, %v1219
        %1221 = vmatmul.f32.gmra.mxu0 %v1158
        %v1222 = vpop.f32.mrf.mxu0
        %v1223 = vadd.f32 %v1112, %v1222
        %1224 = vmatmul.f32.gmra.mxu0 %v1161
        %v1225 = vpop.f32.mrf.mxu0
        %v1226 = vadd.f32 %v1112, %v1225
        %1227 = vdwg.mxu0
        %v1228 = vmax.f32 %v1181, 0.0
        %v1229 = vmax.f32 %v1184, 0.0
        %v1230 = vmax.f32 %v1187, 0.0
        %v1231 = vmax.f32 %v1190, 0.0
        %v1232 = vmax.f32 %v1193, 0.0
        %v1233 = vmax.f32 %v1196, 0.0
        %v1234 = vmax.f32 %v1199, 0.0
        %v1235 = vmax.f32 %v1202, 0.0
        %v1236 = vmax.f32 %v1205, 0.0
        %v1237 = vmax.f32 %v1208, 0.0
        %v1238 = vmax.f32 %v1211, 0.0
        %v1239 = vmax.f32 %v1214, 0.0
        %v1240 = vmax.f32 %v1217, 0.0
        %v1241 = vmax.f32 %v1220, 0.0
        %v1242 = vmax.f32 %v1223, 0.0
        %v1243 = vmax.f32 %v1226, 0.0
        %v1244 = vld [vmem:[%s9] sm:$0xff]
        %v1245 = vld [vmem:[%s9 + $0x8] sm:$0xff]
        %v1246 = vld [vmem:[%s9 + $0x10] sm:$0xff]
        %v1247 = vld [vmem:[%s9 + $0x18] sm:$0xff]
        %v1248 = vld [vmem:[%s9 + $0x20] sm:$0xff]
        %v1249 = vld [vmem:[%s9 + $0x28] sm:$0xff]
        %v1250 = vld [vmem:[%s9 + $0x30] sm:$0xff]
        %v1251 = vld [vmem:[%s9 + $0x38] sm:$0xff]
        %v1252 = vld [vmem:[%s9 + $0x40] sm:$0xff]
        %v1253 = vld [vmem:[%s9 + $0x48] sm:$0xff]
        %v1254 = vld [vmem:[%s9 + $0x50] sm:$0xff]
        %v1255 = vld [vmem:[%s9 + $0x58] sm:$0xff]
        %v1256 = vld [vmem:[%s9 + $0x60] sm:$0xff]
        %v1257 = vld [vmem:[%s9 + $0x68] sm:$0xff]
        %v1258 = vld [vmem:[%s9 + $0x70] sm:$0xff]
        %v1259 = vld [vmem:[%s9 + $0x78] sm:$0xff]
        %v1260 = vld [vmem:[%s10] sm:$0x1]
        %v1262 = vperm.slane %v1260, 0
        %1264 = vmatpush.msra.mxu0 %v1259
        %1265 = vmatpush.msra.mxu0 %v1258
        %1266 = vmatpush.msra.mxu0 %v1257
        %1267 = vmatpush.msra.mxu0 %v1256
        %1268 = vmatpush.msra.mxu0 %v1255
        %1269 = vmatpush.msra.mxu0 %v1254
        %1270 = vmatpush.msra.mxu0 %v1253
        %1271 = vmatpush.msra.mxu0 %v1252
        %1272 = vmatpush.msra.mxu0 %v1251
        %1273 = vmatpush.msra.mxu0 %v1250
        %1274 = vmatpush.msra.mxu0 %v1249
        %1275 = vmatpush.msra.mxu0 %v1248
        %1276 = vmatpush.msra.mxu0 %v1247
        %1277 = vmatpush.msra.mxu0 %v1246
        %1278 = vmatpush.msra.mxu0 %v1245
        %1279 = vmatpush.msra.mxu0 %v1244
        %1280 = vmatmul.f32.gmra.mxu0 %v1228
        %v1281 = vpop.f32.mrf.mxu0
        %v1282 = vadd.f32 %v1262, %v1281
        %1283 = vmatmul.f32.gmra.mxu0 %v1229
        %v1284 = vpop.f32.mrf.mxu0
        %v1285 = vadd.f32 %v1262, %v1284
        %1286 = vmatmul.f32.gmra.mxu0 %v1230
        %v1287 = vpop.f32.mrf.mxu0
        %v1288 = vadd.f32 %v1262, %v1287
        %1289 = vmatmul.f32.gmra.mxu0 %v1231
        %v1290 = vpop.f32.mrf.mxu0
        %v1291 = vadd.f32 %v1262, %v1290
        %1292 = vmatmul.f32.gmra.mxu0 %v1232
        %v1293 = vpop.f32.mrf.mxu0
        %v1294 = vadd.f32 %v1262, %v1293
        %1295 = vmatmul.f32.gmra.mxu0 %v1233
        %v1296 = vpop.f32.mrf.mxu0
        %v1297 = vadd.f32 %v1262, %v1296
        %1298 = vmatmul.f32.gmra.mxu0 %v1234
        %v1299 = vpop.f32.mrf.mxu0
        %v1300 = vadd.f32 %v1262, %v1299
        %1301 = vmatmul.f32.gmra.mxu0 %v1235
        %v1302 = vpop.f32.mrf.mxu0
        %v1303 = vadd.f32 %v1262, %v1302
        %1304 = vmatmul.f32.gmra.mxu0 %v1236
        %v1305 = vpop.f32.mrf.mxu0
        %v1306 = vadd.f32 %v1262, %v1305
        %1307 = vmatmul.f32.gmra.mxu0 %v1237
        %v1308 = vpop.f32.mrf.mxu0
        %v1309 = vadd.f32 %v1262, %v1308
        %1310 = vmatmul.f32.gmra.mxu0 %v1238
        %v1311 = vpop.f32.mrf.mxu0
        %v1312 = vadd.f32 %v1262, %v1311
        %1313 = vmatmul.f32.gmra.mxu0 %v1239
        %v1314 = vpop.f32.mrf.mxu0
        %v1315 = vadd.f32 %v1262, %v1314
        %1316 = vmatmul.f32.gmra.mxu0 %v1240
        %v1317 = vpop.f32.mrf.mxu0
        %v1318 = vadd.f32 %v1262, %v1317
        %1319 = vmatmul.f32.gmra.mxu0 %v1241
        %v1320 = vpop.f32.mrf.mxu0
        %v1321 = vadd.f32 %v1262, %v1320
        %1322 = vmatmul.f32.gmra.mxu0 %v1242
        %v1323 = vpop.f32.mrf.mxu0
        %v1324 = vadd.f32 %v1262, %v1323
        %1325 = vmatmul.f32.gmra.mxu0 %v1243
        %v1326 = vpop.f32.mrf.mxu0
        %v1327 = vadd.f32 %v1262, %v1326
        %1328 = vdwg.mxu0
        %v1329 = vld [vmem:[#allocation2] sm:$0xff]
        %v1330 = vld [vmem:[#allocation2 + $0x8] sm:$0xff]
        %v1331 = vld [vmem:[#allocation2 + $0x10] sm:$0xff]
        %v1332 = vld [vmem:[#allocation2 + $0x18] sm:$0xff]
        %v1333 = vld [vmem:[#allocation2 + $0x20] sm:$0xff]
        %v1334 = vld [vmem:[#allocation2 + $0x28] sm:$0xff]
        %v1335 = vld [vmem:[#allocation2 + $0x30] sm:$0xff]
        %v1336 = vld [vmem:[#allocation2 + $0x38] sm:$0xff]
        %v1337 = vld [vmem:[#allocation2 + $0x40] sm:$0xff]
        %v1338 = vld [vmem:[#allocation2 + $0x48] sm:$0xff]
        %v1339 = vld [vmem:[#allocation2 + $0x50] sm:$0xff]
        %v1340 = vld [vmem:[#allocation2 + $0x58] sm:$0xff]
        %v1341 = vld [vmem:[#allocation2 + $0x60] sm:$0xff]
        %v1342 = vld [vmem:[#allocation2 + $0x68] sm:$0xff]
        %v1343 = vld [vmem:[#allocation2 + $0x70] sm:$0xff]
        %v1344 = vld [vmem:[#allocation2 + $0x78] sm:$0xff]
        %v1345 = vmul.f32 %v1282, %v1329
        %v1346 = vmul.f32 %v1285, %v1330
        %v1347 = vmul.f32 %v1288, %v1331
        %v1348 = vmul.f32 %v1291, %v1332
        %v1349 = vmul.f32 %v1294, %v1333
        %v1350 = vmul.f32 %v1297, %v1334
        %v1351 = vmul.f32 %v1300, %v1335
        %v1352 = vmul.f32 %v1303, %v1336
        %v1353 = vmul.f32 %v1306, %v1337
        %v1354 = vmul.f32 %v1309, %v1338
        %v1355 = vmul.f32 %v1312, %v1339
        %v1356 = vmul.f32 %v1315, %v1340
        %v1357 = vmul.f32 %v1318, %v1341
        %v1358 = vmul.f32 %v1321, %v1342
        %v1359 = vmul.f32 %v1324, %v1343
        %v1360 = vmul.f32 %v1327, %v1344
        %v1361 = vld [vmem:[%s11] sm:$0xff]
        %v1362 = vld [vmem:[%s11 + $0x8] sm:$0xff]
        %v1363 = vld [vmem:[%s11 + $0x10] sm:$0xff]
        %v1364 = vld [vmem:[%s11 + $0x18] sm:$0xff]
        %v1365 = vld [vmem:[%s11 + $0x20] sm:$0xff]
        %v1366 = vld [vmem:[%s11 + $0x28] sm:$0xff]
        %v1367 = vld [vmem:[%s11 + $0x30] sm:$0xff]
        %v1368 = vld [vmem:[%s11 + $0x38] sm:$0xff]
        %vm1369 = vcmask 523264
        %v1371 = vsel %vm1369, %v1345, 0
        %v1374 = vsel %vm1369, %v1346, 0
        %v1377 = vsel %vm1369, %v1347, 0
        %v1380 = vsel %vm1369, %v1348, 0
        %v1383 = vsel %vm1369, %v1349, 0
        %v1386 = vsel %vm1369, %v1350, 0
        %v1389 = vsel %vm1369, %v1351, 0
        %v1392 = vsel %vm1369, %v1352, 0
        %v1395 = vsel %vm1369, %v1353, 0
        %v1398 = vsel %vm1369, %v1354, 0
        %v1401 = vsel %vm1369, %v1355, 0
        %v1404 = vsel %vm1369, %v1356, 0
        %v1407 = vsel %vm1369, %v1357, 0
        %v1410 = vsel %vm1369, %v1358, 0
        %v1413 = vsel %vm1369, %v1359, 0
        %v1416 = vsel %vm1369, %v1360, 0
        %1418 = vmatpush.msra.mxu0 0.0
        %1419 = vmatpush.msra.mxu0 0.0
        %1420 = vmatpush.msra.mxu0 0.0
        %1421 = vmatpush.msra.mxu0 0.0
        %1422 = vmatpush.msra.mxu0 0.0
        %1423 = vmatpush.msra.mxu0 0.0
        %1424 = vmatpush.msra.mxu0 0.0
        %1425 = vmatpush.msra.mxu0 0.0
        %1426 = vmatpush.msra.mxu0 %v1368
        %1427 = vmatpush.msra.mxu0 %v1367
        %1428 = vmatpush.msra.mxu0 %v1366
        %1429 = vmatpush.msra.mxu0 %v1365
        %1430 = vmatpush.msra.mxu0 %v1364
        %1431 = vmatpush.msra.mxu0 %v1363
        %1432 = vmatpush.msra.mxu0 %v1362
        %1433 = vmatpush.msra.mxu0 %v1361
        %1434 = vmatmul.f32.gmra.mxu0 %v1371
        %v1435 = vpop.f32.mrf.mxu0
        %v1436 = vadd.f32 0.0, %v1435
        %1437 = vmatmul.f32.gmra.mxu0 %v1374
        %v1438 = vpop.f32.mrf.mxu0
        %v1439 = vadd.f32 0.0, %v1438
        %1440 = vmatmul.f32.gmra.mxu0 %v1377
        %v1441 = vpop.f32.mrf.mxu0
        %v1442 = vadd.f32 0.0, %v1441
        %1443 = vmatmul.f32.gmra.mxu0 %v1380
        %v1444 = vpop.f32.mrf.mxu0
        %v1445 = vadd.f32 0.0, %v1444
        %1446 = vmatmul.f32.gmra.mxu0 %v1383
        %v1447 = vpop.f32.mrf.mxu0
        %v1448 = vadd.f32 0.0, %v1447
        %1449 = vmatmul.f32.gmra.mxu0 %v1386
        %v1450 = vpop.f32.mrf.mxu0
        %v1451 = vadd.f32 0.0, %v1450
        %1452 = vmatmul.f32.gmra.mxu0 %v1389
        %v1453 = vpop.f32.mrf.mxu0
        %v1454 = vadd.f32 0.0, %v1453
        %1455 = vmatmul.f32.gmra.mxu0 %v1392
        %v1456 = vpop.f32.mrf.mxu0
        %v1457 = vadd.f32 0.0, %v1456
        %1458 = vmatmul.f32.gmra.mxu0 %v1395
        %v1459 = vpop.f32.mrf.mxu0
        %v1460 = vadd.f32 0.0, %v1459
        %1461 = vmatmul.f32.gmra.mxu0 %v1398
        %v1462 = vpop.f32.mrf.mxu0
        %v1463 = vadd.f32 0.0, %v1462
        %1464 = vmatmul.f32.gmra.mxu0 %v1401
        %v1465 = vpop.f32.mrf.mxu0
        %v1466 = vadd.f32 0.0, %v1465
        %1467 = vmatmul.f32.gmra.mxu0 %v1404
        %v1468 = vpop.f32.mrf.mxu0
        %v1469 = vadd.f32 0.0, %v1468
        %1470 = vmatmul.f32.gmra.mxu0 %v1407
        %v1471 = vpop.f32.mrf.mxu0
        %v1472 = vadd.f32 0.0, %v1471
        %1473 = vmatmul.f32.gmra.mxu0 %v1410
        %v1474 = vpop.f32.mrf.mxu0
        %v1475 = vadd.f32 0.0, %v1474
        %1476 = vmatmul.f32.gmra.mxu0 %v1413
        %v1477 = vpop.f32.mrf.mxu0
        %v1478 = vadd.f32 0.0, %v1477
        %1479 = vmatmul.f32.gmra.mxu0 %v1416
        %v1480 = vpop.f32.mrf.mxu0
        %v1481 = vadd.f32 0.0, %v1480
        %1482 = vdwg.mxu0
        %v1483 = vld [vmem:[%s495] sm:$0xff]
        %v1484 = vld [vmem:[%s495 + $0x8] sm:$0xff]
        %v1485 = vld [vmem:[%s495 + $0x10] sm:$0xff]
        %v1486 = vld [vmem:[%s495 + $0x18] sm:$0xff]
        %v1487 = vld [vmem:[%s495 + $0x20] sm:$0xff]
        %v1488 = vld [vmem:[%s495 + $0x28] sm:$0xff]
        %v1489 = vld [vmem:[%s495 + $0x30] sm:$0xff]
        %v1490 = vld [vmem:[%s495 + $0x38] sm:$0xff]
        %v1491 = vld [vmem:[%s495 + $0x40] sm:$0xff]
        %v1492 = vld [vmem:[%s495 + $0x48] sm:$0xff]
        %v1493 = vld [vmem:[%s495 + $0x50] sm:$0xff]
        %v1494 = vld [vmem:[%s495 + $0x58] sm:$0xff]
        %v1495 = vld [vmem:[%s495 + $0x60] sm:$0xff]
        %v1496 = vld [vmem:[%s495 + $0x68] sm:$0xff]
        %v1497 = vld [vmem:[%s495 + $0x70] sm:$0xff]
        %v1498 = vld [vmem:[%s495 + $0x78] sm:$0xff]
        %v1499 = vld [vmem:[#allocation4] sm:$0xff]
        %v1500 = vld [vmem:[#allocation4 + $0x8] sm:$0xff]
        %v1501 = vld [vmem:[#allocation4 + $0x10] sm:$0xff]
        %v1502 = vld [vmem:[#allocation4 + $0x18] sm:$0xff]
        %v1503 = vld [vmem:[#allocation4 + $0x20] sm:$0xff]
        %v1504 = vld [vmem:[#allocation4 + $0x28] sm:$0xff]
        %v1505 = vld [vmem:[#allocation4 + $0x30] sm:$0xff]
        %v1506 = vld [vmem:[#allocation4 + $0x38] sm:$0xff]
        %v1507 = vld [vmem:[#allocation4 + $0x40] sm:$0xff]
        %v1508 = vld [vmem:[#allocation4 + $0x48] sm:$0xff]
        %v1509 = vld [vmem:[#allocation4 + $0x50] sm:$0xff]
        %v1510 = vld [vmem:[#allocation4 + $0x58] sm:$0xff]
        %v1511 = vld [vmem:[#allocation4 + $0x60] sm:$0xff]
        %v1512 = vld [vmem:[#allocation4 + $0x68] sm:$0xff]
        %v1513 = vld [vmem:[#allocation4 + $0x70] sm:$0xff]
        %v1514 = vld [vmem:[#allocation4 + $0x78] sm:$0xff]
        %v1515 = vmax.f32 %v1499, %v1436
        %v1516 = vmax.f32 %v1500, %v1439
        %v1517 = vmax.f32 %v1501, %v1442
        %v1518 = vmax.f32 %v1502, %v1445
        %v1519 = vmax.f32 %v1503, %v1448
        %v1520 = vmax.f32 %v1504, %v1451
        %v1521 = vmax.f32 %v1505, %v1454
        %v1522 = vmax.f32 %v1506, %v1457
        %v1523 = vmax.f32 %v1507, %v1460
        %v1524 = vmax.f32 %v1508, %v1463
        %v1525 = vmax.f32 %v1509, %v1466
        %v1526 = vmax.f32 %v1510, %v1469
        %v1527 = vmax.f32 %v1511, %v1472
        %v1528 = vmax.f32 %v1512, %v1475
        %v1529 = vmax.f32 %v1513, %v1478
        %v1530 = vmax.f32 %v1514, %v1481
        %v1531 = vsub.f32 %v1499, %v1515
        %v1532 = vsub.f32 %v1500, %v1516
        %v1533 = vsub.f32 %v1501, %v1517
        %v1534 = vsub.f32 %v1502, %v1518
        %v1535 = vsub.f32 %v1503, %v1519
        %v1536 = vsub.f32 %v1504, %v1520
        %v1537 = vsub.f32 %v1505, %v1521
        %v1538 = vsub.f32 %v1506, %v1522
        %v1539 = vsub.f32 %v1507, %v1523
        %v1540 = vsub.f32 %v1508, %v1524
        %v1541 = vsub.f32 %v1509, %v1525
        %v1542 = vsub.f32 %v1510, %v1526
        %v1543 = vsub.f32 %v1511, %v1527
        %v1544 = vsub.f32 %v1512, %v1528
        %v1545 = vsub.f32 %v1513, %v1529
        %v1546 = vsub.f32 %v1514, %v1530
        %v1547 = vmul.f32 %v1531, 1.442695
        %v1548 = vpow.pop %v1547
        %v1549 = vmul.f32 %v1532, 1.442695
        %v1550 = vpow.pop %v1549
        %v1551 = vmul.f32 %v1533, 1.442695
        %v1552 = vpow.pop %v1551
        %v1553 = vmul.f32 %v1534, 1.442695
        %v1554 = vpow.pop %v1553
        %v1555 = vmul.f32 %v1535, 1.442695
        %v1556 = vpow.pop %v1555
        %v1557 = vmul.f32 %v1536, 1.442695
        %v1558 = vpow.pop %v1557
        %v1559 = vmul.f32 %v1537, 1.442695
        %v1560 = vpow.pop %v1559
        %v1561 = vmul.f32 %v1538, 1.442695
        %v1562 = vpow.pop %v1561
        %v1563 = vmul.f32 %v1539, 1.442695
        %v1564 = vpow.pop %v1563
        %v1565 = vmul.f32 %v1540, 1.442695
        %v1566 = vpow.pop %v1565
        %v1567 = vmul.f32 %v1541, 1.442695
        %v1568 = vpow.pop %v1567
        %v1569 = vmul.f32 %v1542, 1.442695
        %v1570 = vpow.pop %v1569
        %v1571 = vmul.f32 %v1543, 1.442695
        %v1572 = vpow.pop %v1571
        %v1573 = vmul.f32 %v1544, 1.442695
        %v1574 = vpow.pop %v1573
        %v1575 = vmul.f32 %v1545, 1.442695
        %v1576 = vpow.pop %v1575
        %v1577 = vmul.f32 %v1546, 1.442695
        %v1578 = vpow.pop %v1577
        %v1579 = vsub.f32 %v1436, %v1515
        %v1580 = vsub.f32 %v1439, %v1516
        %v1581 = vsub.f32 %v1442, %v1517
        %v1582 = vsub.f32 %v1445, %v1518
        %v1583 = vsub.f32 %v1448, %v1519
        %v1584 = vsub.f32 %v1451, %v1520
        %v1585 = vsub.f32 %v1454, %v1521
        %v1586 = vsub.f32 %v1457, %v1522
        %v1587 = vsub.f32 %v1460, %v1523
        %v1588 = vsub.f32 %v1463, %v1524
        %v1589 = vsub.f32 %v1466, %v1525
        %v1590 = vsub.f32 %v1469, %v1526
        %v1591 = vsub.f32 %v1472, %v1527
        %v1592 = vsub.f32 %v1475, %v1528
        %v1593 = vsub.f32 %v1478, %v1529
        %v1594 = vsub.f32 %v1481, %v1530
        %v1595 = vmul.f32 %v1579, 1.442695
        %v1596 = vpow.pop %v1595
        %v1597 = vmul.f32 %v1580, 1.442695
        %v1598 = vpow.pop %v1597
        %v1599 = vmul.f32 %v1581, 1.442695
        %v1600 = vpow.pop %v1599
        %v1601 = vmul.f32 %v1582, 1.442695
        %v1602 = vpow.pop %v1601
        %v1603 = vmul.f32 %v1583, 1.442695
        %v1604 = vpow.pop %v1603
        %v1605 = vmul.f32 %v1584, 1.442695
        %v1606 = vpow.pop %v1605
        %v1607 = vmul.f32 %v1585, 1.442695
        %v1608 = vpow.pop %v1607
        %v1609 = vmul.f32 %v1586, 1.442695
        %v1610 = vpow.pop %v1609
        %v1611 = vmul.f32 %v1587, 1.442695
        %v1612 = vpow.pop %v1611
        %v1613 = vmul.f32 %v1588, 1.442695
        %v1614 = vpow.pop %v1613
        %v1615 = vmul.f32 %v1589, 1.442695
        %v1616 = vpow.pop %v1615
        %v1617 = vmul.f32 %v1590, 1.442695
        %v1618 = vpow.pop %v1617
        %v1619 = vmul.f32 %v1591, 1.442695
        %v1620 = vpow.pop %v1619
        %v1621 = vmul.f32 %v1592, 1.442695
        %v1622 = vpow.pop %v1621
        %v1623 = vmul.f32 %v1593, 1.442695
        %v1624 = vpow.pop %v1623
        %v1625 = vmul.f32 %v1594, 1.442695
        %v1626 = vpow.pop %v1625
        %v1627 = vld [vmem:[#allocation5] sm:$0xff]
        %v1628 = vld [vmem:[#allocation5 + $0x8] sm:$0xff]
        %v1629 = vld [vmem:[#allocation5 + $0x10] sm:$0xff]
        %v1630 = vld [vmem:[#allocation5 + $0x18] sm:$0xff]
        %v1631 = vld [vmem:[#allocation5 + $0x20] sm:$0xff]
        %v1632 = vld [vmem:[#allocation5 + $0x28] sm:$0xff]
        %v1633 = vld [vmem:[#allocation5 + $0x30] sm:$0xff]
        %v1634 = vld [vmem:[#allocation5 + $0x38] sm:$0xff]
        %v1635 = vld [vmem:[#allocation5 + $0x40] sm:$0xff]
        %v1636 = vld [vmem:[#allocation5 + $0x48] sm:$0xff]
        %v1637 = vld [vmem:[#allocation5 + $0x50] sm:$0xff]
        %v1638 = vld [vmem:[#allocation5 + $0x58] sm:$0xff]
        %v1639 = vld [vmem:[#allocation5 + $0x60] sm:$0xff]
        %v1640 = vld [vmem:[#allocation5 + $0x68] sm:$0xff]
        %v1641 = vld [vmem:[#allocation5 + $0x70] sm:$0xff]
        %v1642 = vld [vmem:[#allocation5 + $0x78] sm:$0xff]
        %v1643 = vmul.f32 %v1548, %v1627
        %v1644 = vmul.f32 %v1550, %v1628
        %v1645 = vmul.f32 %v1552, %v1629
        %v1646 = vmul.f32 %v1554, %v1630
        %v1647 = vmul.f32 %v1556, %v1631
        %v1648 = vmul.f32 %v1558, %v1632
        %v1649 = vmul.f32 %v1560, %v1633
        %v1650 = vmul.f32 %v1562, %v1634
        %v1651 = vmul.f32 %v1564, %v1635
        %v1652 = vmul.f32 %v1566, %v1636
        %v1653 = vmul.f32 %v1568, %v1637
        %v1654 = vmul.f32 %v1570, %v1638
        %v1655 = vmul.f32 %v1572, %v1639
        %v1656 = vmul.f32 %v1574, %v1640
        %v1657 = vmul.f32 %v1576, %v1641
        %v1658 = vmul.f32 %v1578, %v1642
        %v1659 = vadd.f32 %v1643, %v1596
        %v1660 = vadd.f32 %v1644, %v1598
        %v1661 = vadd.f32 %v1645, %v1600
        %v1662 = vadd.f32 %v1646, %v1602
        %v1663 = vadd.f32 %v1647, %v1604
        %v1664 = vadd.f32 %v1648, %v1606
        %v1665 = vadd.f32 %v1649, %v1608
        %v1666 = vadd.f32 %v1650, %v1610
        %v1667 = vadd.f32 %v1651, %v1612
        %v1668 = vadd.f32 %v1652, %v1614
        %v1669 = vadd.f32 %v1653, %v1616
        %v1670 = vadd.f32 %v1654, %v1618
        %v1671 = vadd.f32 %v1655, %v1620
        %v1672 = vadd.f32 %v1656, %v1622
        %v1673 = vadd.f32 %v1657, %v1624
        %v1674 = vadd.f32 %v1658, %v1626
        %vm1675 = vcmask 31744
        %1676 = vst.msk [vmem:[#allocation5] sm:$0xff] %vm1675, %v1659
        %1677 = vst.msk [vmem:[#allocation5 + $0x8] sm:$0xff] %vm1675, %v1660
        %1678 = vst.msk [vmem:[#allocation5 + $0x10] sm:$0xff] %vm1675, %v1661
        %1679 = vst.msk [vmem:[#allocation5 + $0x18] sm:$0xff] %vm1675, %v1662
        %1680 = vst.msk [vmem:[#allocation5 + $0x20] sm:$0xff] %vm1675, %v1663
        %1681 = vst.msk [vmem:[#allocation5 + $0x28] sm:$0xff] %vm1675, %v1664
        %1682 = vst.msk [vmem:[#allocation5 + $0x30] sm:$0xff] %vm1675, %v1665
        %1683 = vst.msk [vmem:[#allocation5 + $0x38] sm:$0xff] %vm1675, %v1666
        %1684 = vst.msk [vmem:[#allocation5 + $0x40] sm:$0xff] %vm1675, %v1667
        %1685 = vst.msk [vmem:[#allocation5 + $0x48] sm:$0xff] %vm1675, %v1668
        %1686 = vst.msk [vmem:[#allocation5 + $0x50] sm:$0xff] %vm1675, %v1669
        %1687 = vst.msk [vmem:[#allocation5 + $0x58] sm:$0xff] %vm1675, %v1670
        %1688 = vst.msk [vmem:[#allocation5 + $0x60] sm:$0xff] %vm1675, %v1671
        %1689 = vst.msk [vmem:[#allocation5 + $0x68] sm:$0xff] %vm1675, %v1672
        %1690 = vst.msk [vmem:[#allocation5 + $0x70] sm:$0xff] %vm1675, %v1673
        %1691 = vst.msk [vmem:[#allocation5 + $0x78] sm:$0xff] %vm1675, %v1674
        %v1692 = vld [vmem:[#allocation6] sm:$0xff]
        %v1693 = vld [vmem:[#allocation6 + $0x8] sm:$0xff]
        %v1694 = vld [vmem:[#allocation6 + $0x10] sm:$0xff]
        %v1695 = vld [vmem:[#allocation6 + $0x18] sm:$0xff]
        %v1696 = vld [vmem:[#allocation6 + $0x20] sm:$0xff]
        %v1697 = vld [vmem:[#allocation6 + $0x28] sm:$0xff]
        %v1698 = vld [vmem:[#allocation6 + $0x30] sm:$0xff]
        %v1699 = vld [vmem:[#allocation6 + $0x38] sm:$0xff]
        %v1700 = vld [vmem:[#allocation6 + $0x40] sm:$0xff]
        %v1701 = vld [vmem:[#allocation6 + $0x48] sm:$0xff]
        %v1702 = vld [vmem:[#allocation6 + $0x50] sm:$0xff]
        %v1703 = vld [vmem:[#allocation6 + $0x58] sm:$0xff]
        %v1704 = vld [vmem:[#allocation6 + $0x60] sm:$0xff]
        %v1705 = vld [vmem:[#allocation6 + $0x68] sm:$0xff]
        %v1706 = vld [vmem:[#allocation6 + $0x70] sm:$0xff]
        %v1707 = vld [vmem:[#allocation6 + $0x78] sm:$0xff]
        %v1708 = vmul.f32 %v1548, %v1692
        %v1709 = vmul.f32 %v1550, %v1693
        %v1710 = vmul.f32 %v1552, %v1694
        %v1711 = vmul.f32 %v1554, %v1695
        %v1712 = vmul.f32 %v1556, %v1696
        %v1713 = vmul.f32 %v1558, %v1697
        %v1714 = vmul.f32 %v1560, %v1698
        %v1715 = vmul.f32 %v1562, %v1699
        %v1716 = vmul.f32 %v1564, %v1700
        %v1717 = vmul.f32 %v1566, %v1701
        %v1718 = vmul.f32 %v1568, %v1702
        %v1719 = vmul.f32 %v1570, %v1703
        %v1720 = vmul.f32 %v1572, %v1704
        %v1721 = vmul.f32 %v1574, %v1705
        %v1722 = vmul.f32 %v1576, %v1706
        %v1723 = vmul.f32 %v1578, %v1707
        %1725 = vset.pattern.permute.xlu0 0
        %1726 = vperm.xlu0 %1725, %v1483
        %v1727 = vpop.permute.xlu0 %1726
        %1730 = vset.pattern.permute.xlu0 0
        %1731 = vperm.xlu0 %1730, %v1484
        %v1732 = vpop.permute.xlu0 %1731
        %1735 = vset.pattern.permute.xlu0 0
        %1736 = vperm.xlu0 %1735, %v1485
        %v1737 = vpop.permute.xlu0 %1736
        %1740 = vset.pattern.permute.xlu0 0
        %1741 = vperm.xlu0 %1740, %v1486
        %v1742 = vpop.permute.xlu0 %1741
        %1745 = vset.pattern.permute.xlu0 0
        %1746 = vperm.xlu0 %1745, %v1487
        %v1747 = vpop.permute.xlu0 %1746
        %1750 = vset.pattern.permute.xlu0 0
        %1751 = vperm.xlu0 %1750, %v1488
        %v1752 = vpop.permute.xlu0 %1751
        %1755 = vset.pattern.permute.xlu0 0
        %1756 = vperm.xlu0 %1755, %v1489
        %v1757 = vpop.permute.xlu0 %1756
        %1760 = vset.pattern.permute.xlu0 0
        %1761 = vperm.xlu0 %1760, %v1490
        %v1762 = vpop.permute.xlu0 %1761
        %1765 = vset.pattern.permute.xlu0 0
        %1766 = vperm.xlu0 %1765, %v1491
        %v1767 = vpop.permute.xlu0 %1766
        %1770 = vset.pattern.permute.xlu0 0
        %1771 = vperm.xlu0 %1770, %v1492
        %v1772 = vpop.permute.xlu0 %1771
        %1775 = vset.pattern.permute.xlu0 0
        %1776 = vperm.xlu0 %1775, %v1493
        %v1777 = vpop.permute.xlu0 %1776
        %1780 = vset.pattern.permute.xlu0 0
        %1781 = vperm.xlu0 %1780, %v1494
        %v1782 = vpop.permute.xlu0 %1781
        %1785 = vset.pattern.permute.xlu0 0
        %1786 = vperm.xlu0 %1785, %v1495
        %v1787 = vpop.permute.xlu0 %1786
        %1790 = vset.pattern.permute.xlu0 0
        %1791 = vperm.xlu0 %1790, %v1496
        %v1792 = vpop.permute.xlu0 %1791
        %1795 = vset.pattern.permute.xlu0 0
        %1796 = vperm.xlu0 %1795, %v1497
        %v1797 = vpop.permute.xlu0 %1796
        %1800 = vset.pattern.permute.xlu0 0
        %1801 = vperm.xlu0 %1800, %v1498
        %v1802 = vpop.permute.xlu0 %1801
        %v1804 = vmul.f32 %v1596, %v1727
        %v1805 = vmul.f32 %v1598, %v1732
        %v1806 = vmul.f32 %v1600, %v1737
        %v1807 = vmul.f32 %v1602, %v1742
        %v1808 = vmul.f32 %v1604, %v1747
        %v1809 = vmul.f32 %v1606, %v1752
        %v1810 = vmul.f32 %v1608, %v1757
        %v1811 = vmul.f32 %v1610, %v1762
        %v1812 = vmul.f32 %v1612, %v1767
        %v1813 = vmul.f32 %v1614, %v1772
        %v1814 = vmul.f32 %v1616, %v1777
        %v1815 = vmul.f32 %v1618, %v1782
        %v1816 = vmul.f32 %v1620, %v1787
        %v1817 = vmul.f32 %v1622, %v1792
        %v1818 = vmul.f32 %v1624, %v1797
        %v1819 = vmul.f32 %v1626, %v1802
        %v1820 = vadd.f32 %v1708, %v1804
        %v1821 = vadd.f32 %v1709, %v1805
        %v1822 = vadd.f32 %v1710, %v1806
        %v1823 = vadd.f32 %v1711, %v1807
        %v1824 = vadd.f32 %v1712, %v1808
        %v1825 = vadd.f32 %v1713, %v1809
        %v1826 = vadd.f32 %v1714, %v1810
        %v1827 = vadd.f32 %v1715, %v1811
        %v1828 = vadd.f32 %v1716, %v1812
        %v1829 = vadd.f32 %v1717, %v1813
        %v1830 = vadd.f32 %v1718, %v1814
        %v1831 = vadd.f32 %v1719, %v1815
        %v1832 = vadd.f32 %v1720, %v1816
        %v1833 = vadd.f32 %v1721, %v1817
        %v1834 = vadd.f32 %v1722, %v1818
        %v1835 = vadd.f32 %v1723, %v1819
        %1836 = vst.msk [vmem:[#allocation6] sm:$0xff] %vm1675, %v1820
        %1837 = vst.msk [vmem:[#allocation6 + $0x8] sm:$0xff] %vm1675, %v1821
        %1838 = vst.msk [vmem:[#allocation6 + $0x10] sm:$0xff] %vm1675, %v1822
        %1839 = vst.msk [vmem:[#allocation6 + $0x18] sm:$0xff] %vm1675, %v1823
        %1840 = vst.msk [vmem:[#allocation6 + $0x20] sm:$0xff] %vm1675, %v1824
        %1841 = vst.msk [vmem:[#allocation6 + $0x28] sm:$0xff] %vm1675, %v1825
        %1842 = vst.msk [vmem:[#allocation6 + $0x30] sm:$0xff] %vm1675, %v1826
        %1843 = vst.msk [vmem:[#allocation6 + $0x38] sm:$0xff] %vm1675, %v1827
        %1844 = vst.msk [vmem:[#allocation6 + $0x40] sm:$0xff] %vm1675, %v1828
        %1845 = vst.msk [vmem:[#allocation6 + $0x48] sm:$0xff] %vm1675, %v1829
        %1846 = vst.msk [vmem:[#allocation6 + $0x50] sm:$0xff] %vm1675, %v1830
        %1847 = vst.msk [vmem:[#allocation6 + $0x58] sm:$0xff] %vm1675, %v1831
        %1848 = vst.msk [vmem:[#allocation6 + $0x60] sm:$0xff] %vm1675, %v1832
        %1849 = vst.msk [vmem:[#allocation6 + $0x68] sm:$0xff] %vm1675, %v1833
        %1850 = vst.msk [vmem:[#allocation6 + $0x70] sm:$0xff] %vm1675, %v1834
        %1851 = vst.msk [vmem:[#allocation6 + $0x78] sm:$0xff] %vm1675, %v1835
        %1852 = vst.msk [vmem:[#allocation4] sm:$0xff] %vm1675, %v1515
        %1853 = vst.msk [vmem:[#allocation4 + $0x8] sm:$0xff] %vm1675, %v1516
        %1854 = vst.msk [vmem:[#allocation4 + $0x10] sm:$0xff] %vm1675, %v1517
        %1855 = vst.msk [vmem:[#allocation4 + $0x18] sm:$0xff] %vm1675, %v1518
        %1856 = vst.msk [vmem:[#allocation4 + $0x20] sm:$0xff] %vm1675, %v1519
        %1857 = vst.msk [vmem:[#allocation4 + $0x28] sm:$0xff] %vm1675, %v1520
        %1858 = vst.msk [vmem:[#allocation4 + $0x30] sm:$0xff] %vm1675, %v1521
        %1859 = vst.msk [vmem:[#allocation4 + $0x38] sm:$0xff] %vm1675, %v1522
        %1860 = vst.msk [vmem:[#allocation4 + $0x40] sm:$0xff] %vm1675, %v1523
        %1861 = vst.msk [vmem:[#allocation4 + $0x48] sm:$0xff] %vm1675, %v1524
        %1862 = vst.msk [vmem:[#allocation4 + $0x50] sm:$0xff] %vm1675, %v1525
        %1863 = vst.msk [vmem:[#allocation4 + $0x58] sm:$0xff] %vm1675, %v1526
        %1864 = vst.msk [vmem:[#allocation4 + $0x60] sm:$0xff] %vm1675, %v1527
        %1865 = vst.msk [vmem:[#allocation4 + $0x68] sm:$0xff] %vm1675, %v1528
        %1866 = vst.msk [vmem:[#allocation4 + $0x70] sm:$0xff] %vm1675, %v1529
        %1867 = vst.msk [vmem:[#allocation4 + $0x78] sm:$0xff] %vm1675, %v1530
        %p1868 = scmp.eq.s32.totalorder %s31, 3
        // Predicated region
        $region73: #{tpu_custom_call.1} parent=67 // pred_check
          %p1869 = pneg %p1868
        $region74: #{tpu_custom_call.1} parent=67 // pred_check_branch
          %1871 = sbr.rel (%p1869) target = $region76
        $region75: #{tpu_custom_call.1} parent=67 // pred_region
          %v1872 = vld [vmem:[#allocation6] sm:$0xff]
          %v1873 = vld [vmem:[#allocation6 + $0x8] sm:$0xff]
          %v1874 = vld [vmem:[#allocation6 + $0x10] sm:$0xff]
          %v1875 = vld [vmem:[#allocation6 + $0x18] sm:$0xff]
          %v1876 = vld [vmem:[#allocation6 + $0x20] sm:$0xff]
          %v1877 = vld [vmem:[#allocation6 + $0x28] sm:$0xff]
          %v1878 = vld [vmem:[#allocation6 + $0x30] sm:$0xff]
          %v1879 = vld [vmem:[#allocation6 + $0x38] sm:$0xff]
          %v1880 = vld [vmem:[#allocation6 + $0x40] sm:$0xff]
          %v1881 = vld [vmem:[#allocation6 + $0x48] sm:$0xff]
          %v1882 = vld [vmem:[#allocation6 + $0x50] sm:$0xff]
          %v1883 = vld [vmem:[#allocation6 + $0x58] sm:$0xff]
          %v1884 = vld [vmem:[#allocation6 + $0x60] sm:$0xff]
          %v1885 = vld [vmem:[#allocation6 + $0x68] sm:$0xff]
          %v1886 = vld [vmem:[#allocation6 + $0x70] sm:$0xff]
          %v1887 = vld [vmem:[#allocation6 + $0x78] sm:$0xff]
          %v1888 = vld [vmem:[#allocation5] sm:$0xff]
          %v1889 = vld [vmem:[#allocation5 + $0x8] sm:$0xff]
          %v1890 = vld [vmem:[#allocation5 + $0x10] sm:$0xff]
          %v1891 = vld [vmem:[#allocation5 + $0x18] sm:$0xff]
          %v1892 = vld [vmem:[#allocation5 + $0x20] sm:$0xff]
          %v1893 = vld [vmem:[#allocation5 + $0x28] sm:$0xff]
          %v1894 = vld [vmem:[#allocation5 + $0x30] sm:$0xff]
          %v1895 = vld [vmem:[#allocation5 + $0x38] sm:$0xff]
          %v1896 = vld [vmem:[#allocation5 + $0x40] sm:$0xff]
          %v1897 = vld [vmem:[#allocation5 + $0x48] sm:$0xff]
          %v1898 = vld [vmem:[#allocation5 + $0x50] sm:$0xff]
          %v1899 = vld [vmem:[#allocation5 + $0x58] sm:$0xff]
          %v1900 = vld [vmem:[#allocation5 + $0x60] sm:$0xff]
          %v1901 = vld [vmem:[#allocation5 + $0x68] sm:$0xff]
          %v1902 = vld [vmem:[#allocation5 + $0x70] sm:$0xff]
          %v1903 = vld [vmem:[#allocation5 + $0x78] sm:$0xff]
          %v1904 = vrcp.pop %v1888
          %v1905 = vmul.f32 %v1888, %v1904
          %v1906 = vsub.f32 1.0, %v1905
          %v1907 = vmul.f32 %v1904, %v1906
          %v1908 = vadd.f32 %v1904, %v1907
          %vm1909 = vweird.f32 %v1888
          %vm1910 = vweird.f32 %v1904
          %vm1911 = vmor %vm1909, %vm1910
          %v1912 = vsel %vm1911, %v1904, %v1908
          %v1913 = vand.u32 2147483647, %v1888
          %vm1914 = vcmp.eq.f32.partialorder %v1913, 8.507059e+37
          %v1915 = vand.u32 %v1888, 2147483648
          %v1916 = vor.u32 1.1754944e-38, %v1915
          %v1917 = vsel %vm1914, %v1916, %v1912
          %v1918 = vrcp.pop %v1889
          %v1919 = vmul.f32 %v1889, %v1918
          %v1920 = vsub.f32 1.0, %v1919
          %v1921 = vmul.f32 %v1918, %v1920
          %v1922 = vadd.f32 %v1918, %v1921
          %vm1923 = vweird.f32 %v1889
          %vm1924 = vweird.f32 %v1918
          %vm1925 = vmor %vm1923, %vm1924
          %v1926 = vsel %vm1925, %v1918, %v1922
          %v1927 = vand.u32 2147483647, %v1889
          %vm1928 = vcmp.eq.f32.partialorder %v1927, 8.507059e+37
          %v1929 = vand.u32 %v1889, 2147483648
          %v1930 = vor.u32 1.1754944e-38, %v1929
          %v1931 = vsel %vm1928, %v1930, %v1926
          %v1932 = vrcp.pop %v1890
          %v1933 = vmul.f32 %v1890, %v1932
          %v1934 = vsub.f32 1.0, %v1933
          %v1935 = vmul.f32 %v1932, %v1934
          %v1936 = vadd.f32 %v1932, %v1935
          %vm1937 = vweird.f32 %v1890
          %vm1938 = vweird.f32 %v1932
          %vm1939 = vmor %vm1937, %vm1938
          %v1940 = vsel %vm1939, %v1932, %v1936
          %v1941 = vand.u32 2147483647, %v1890
          %vm1942 = vcmp.eq.f32.partialorder %v1941, 8.507059e+37
          %v1943 = vand.u32 %v1890, 2147483648
          %v1944 = vor.u32 1.1754944e-38, %v1943
          %v1945 = vsel %vm1942, %v1944, %v1940
          %v1946 = vrcp.pop %v1891
          %v1947 = vmul.f32 %v1891, %v1946
          %v1948 = vsub.f32 1.0, %v1947
          %v1949 = vmul.f32 %v1946, %v1948
          %v1950 = vadd.f32 %v1946, %v1949
          %vm1951 = vweird.f32 %v1891
          %vm1952 = vweird.f32 %v1946
          %vm1953 = vmor %vm1951, %vm1952
          %v1954 = vsel %vm1953, %v1946, %v1950
          %v1955 = vand.u32 2147483647, %v1891
          %vm1956 = vcmp.eq.f32.partialorder %v1955, 8.507059e+37
          %v1957 = vand.u32 %v1891, 2147483648
          %v1958 = vor.u32 1.1754944e-38, %v1957
          %v1959 = vsel %vm1956, %v1958, %v1954
          %v1960 = vrcp.pop %v1892
          %v1961 = vmul.f32 %v1892, %v1960
          %v1962 = vsub.f32 1.0, %v1961
          %v1963 = vmul.f32 %v1960, %v1962
          %v1964 = vadd.f32 %v1960, %v1963
          %vm1965 = vweird.f32 %v1892
          %vm1966 = vweird.f32 %v1960
          %vm1967 = vmor %vm1965, %vm1966
          %v1968 = vsel %vm1967, %v1960, %v1964
          %v1969 = vand.u32 2147483647, %v1892
          %vm1970 = vcmp.eq.f32.partialorder %v1969, 8.507059e+37
          %v1971 = vand.u32 %v1892, 2147483648
          %v1972 = vor.u32 1.1754944e-38, %v1971
          %v1973 = vsel %vm1970, %v1972, %v1968
          %v1974 = vrcp.pop %v1893
          %v1975 = vmul.f32 %v1893, %v1974
          %v1976 = vsub.f32 1.0, %v1975
          %v1977 = vmul.f32 %v1974, %v1976
          %v1978 = vadd.f32 %v1974, %v1977
          %vm1979 = vweird.f32 %v1893
          %vm1980 = vweird.f32 %v1974
          %vm1981 = vmor %vm1979, %vm1980
          %v1982 = vsel %vm1981, %v1974, %v1978
          %v1983 = vand.u32 2147483647, %v1893
          %vm1984 = vcmp.eq.f32.partialorder %v1983, 8.507059e+37
          %v1985 = vand.u32 %v1893, 2147483648
          %v1986 = vor.u32 1.1754944e-38, %v1985
          %v1987 = vsel %vm1984, %v1986, %v1982
          %v1988 = vrcp.pop %v1894
          %v1989 = vmul.f32 %v1894, %v1988
          %v1990 = vsub.f32 1.0, %v1989
          %v1991 = vmul.f32 %v1988, %v1990
          %v1992 = vadd.f32 %v1988, %v1991
          %vm1993 = vweird.f32 %v1894
          %vm1994 = vweird.f32 %v1988
          %vm1995 = vmor %vm1993, %vm1994
          %v1996 = vsel %vm1995, %v1988, %v1992
          %v1997 = vand.u32 2147483647, %v1894
          %vm1998 = vcmp.eq.f32.partialorder %v1997, 8.507059e+37
          %v1999 = vand.u32 %v1894, 2147483648
          %v2000 = vor.u32 1.1754944e-38, %v1999
          %v2001 = vsel %vm1998, %v2000, %v1996
          %v2002 = vrcp.pop %v1895
          %v2003 = vmul.f32 %v1895, %v2002
          %v2004 = vsub.f32 1.0, %v2003
          %v2005 = vmul.f32 %v2002, %v2004
          %v2006 = vadd.f32 %v2002, %v2005
          %vm2007 = vweird.f32 %v1895
          %vm2008 = vweird.f32 %v2002
          %vm2009 = vmor %vm2007, %vm2008
          %v2010 = vsel %vm2009, %v2002, %v2006
          %v2011 = vand.u32 2147483647, %v1895
          %vm2012 = vcmp.eq.f32.partialorder %v2011, 8.507059e+37
          %v2013 = vand.u32 %v1895, 2147483648
          %v2014 = vor.u32 1.1754944e-38, %v2013
          %v2015 = vsel %vm2012, %v2014, %v2010
          %v2016 = vrcp.pop %v1896
          %v2017 = vmul.f32 %v1896, %v2016
          %v2018 = vsub.f32 1.0, %v2017
          %v2019 = vmul.f32 %v2016, %v2018
          %v2020 = vadd.f32 %v2016, %v2019
          %vm2021 = vweird.f32 %v1896
          %vm2022 = vweird.f32 %v2016
          %vm2023 = vmor %vm2021, %vm2022
          %v2024 = vsel %vm2023, %v2016, %v2020
          %v2025 = vand.u32 2147483647, %v1896
          %vm2026 = vcmp.eq.f32.partialorder %v2025, 8.507059e+37
          %v2027 = vand.u32 %v1896, 2147483648
          %v2028 = vor.u32 1.1754944e-38, %v2027
          %v2029 = vsel %vm2026, %v2028, %v2024
          %v2030 = vrcp.pop %v1897
          %v2031 = vmul.f32 %v1897, %v2030
          %v2032 = vsub.f32 1.0, %v2031
          %v2033 = vmul.f32 %v2030, %v2032
          %v2034 = vadd.f32 %v2030, %v2033
          %vm2035 = vweird.f32 %v1897
          %vm2036 = vweird.f32 %v2030
          %vm2037 = vmor %vm2035, %vm2036
          %v2038 = vsel %vm2037, %v2030, %v2034
          %v2039 = vand.u32 2147483647, %v1897
          %vm2040 = vcmp.eq.f32.partialorder %v2039, 8.507059e+37
          %v2041 = vand.u32 %v1897, 2147483648
          %v2042 = vor.u32 1.1754944e-38, %v2041
          %v2043 = vsel %vm2040, %v2042, %v2038
          %v2044 = vrcp.pop %v1898
          %v2045 = vmul.f32 %v1898, %v2044
          %v2046 = vsub.f32 1.0, %v2045
          %v2047 = vmul.f32 %v2044, %v2046
          %v2048 = vadd.f32 %v2044, %v2047
          %vm2049 = vweird.f32 %v1898
          %vm2050 = vweird.f32 %v2044
          %vm2051 = vmor %vm2049, %vm2050
          %v2052 = vsel %vm2051, %v2044, %v2048
          %v2053 = vand.u32 2147483647, %v1898
          %vm2054 = vcmp.eq.f32.partialorder %v2053, 8.507059e+37
          %v2055 = vand.u32 %v1898, 2147483648
          %v2056 = vor.u32 1.1754944e-38, %v2055
          %v2057 = vsel %vm2054, %v2056, %v2052
          %v2058 = vrcp.pop %v1899
          %v2059 = vmul.f32 %v1899, %v2058
          %v2060 = vsub.f32 1.0, %v2059
          %v2061 = vmul.f32 %v2058, %v2060
          %v2062 = vadd.f32 %v2058, %v2061
          %vm2063 = vweird.f32 %v1899
          %vm2064 = vweird.f32 %v2058
          %vm2065 = vmor %vm2063, %vm2064
          %v2066 = vsel %vm2065, %v2058, %v2062
          %v2067 = vand.u32 2147483647, %v1899
          %vm2068 = vcmp.eq.f32.partialorder %v2067, 8.507059e+37
          %v2069 = vand.u32 %v1899, 2147483648
          %v2070 = vor.u32 1.1754944e-38, %v2069
          %v2071 = vsel %vm2068, %v2070, %v2066
          %v2072 = vrcp.pop %v1900
          %v2073 = vmul.f32 %v1900, %v2072
          %v2074 = vsub.f32 1.0, %v2073
          %v2075 = vmul.f32 %v2072, %v2074
          %v2076 = vadd.f32 %v2072, %v2075
          %vm2077 = vweird.f32 %v1900
          %vm2078 = vweird.f32 %v2072
          %vm2079 = vmor %vm2077, %vm2078
          %v2080 = vsel %vm2079, %v2072, %v2076
          %v2081 = vand.u32 2147483647, %v1900
          %vm2082 = vcmp.eq.f32.partialorder %v2081, 8.507059e+37
          %v2083 = vand.u32 %v1900, 2147483648
          %v2084 = vor.u32 1.1754944e-38, %v2083
          %v2085 = vsel %vm2082, %v2084, %v2080
          %v2086 = vrcp.pop %v1901
          %v2087 = vmul.f32 %v1901, %v2086
          %v2088 = vsub.f32 1.0, %v2087
          %v2089 = vmul.f32 %v2086, %v2088
          %v2090 = vadd.f32 %v2086, %v2089
          %vm2091 = vweird.f32 %v1901
          %vm2092 = vweird.f32 %v2086
          %vm2093 = vmor %vm2091, %vm2092
          %v2094 = vsel %vm2093, %v2086, %v2090
          %v2095 = vand.u32 2147483647, %v1901
          %vm2096 = vcmp.eq.f32.partialorder %v2095, 8.507059e+37
          %v2097 = vand.u32 %v1901, 2147483648
          %v2098 = vor.u32 1.1754944e-38, %v2097
          %v2099 = vsel %vm2096, %v2098, %v2094
          %v2100 = vrcp.pop %v1902
          %v2101 = vmul.f32 %v1902, %v2100
          %v2102 = vsub.f32 1.0, %v2101
          %v2103 = vmul.f32 %v2100, %v2102
          %v2104 = vadd.f32 %v2100, %v2103
          %vm2105 = vweird.f32 %v1902
          %vm2106 = vweird.f32 %v2100
          %vm2107 = vmor %vm2105, %vm2106
          %v2108 = vsel %vm2107, %v2100, %v2104
          %v2109 = vand.u32 2147483647, %v1902
          %vm2110 = vcmp.eq.f32.partialorder %v2109, 8.507059e+37
          %v2111 = vand.u32 %v1902, 2147483648
          %v2112 = vor.u32 1.1754944e-38, %v2111
          %v2113 = vsel %vm2110, %v2112, %v2108
          %v2114 = vrcp.pop %v1903
          %v2115 = vmul.f32 %v1903, %v2114
          %v2116 = vsub.f32 1.0, %v2115
          %v2117 = vmul.f32 %v2114, %v2116
          %v2118 = vadd.f32 %v2114, %v2117
          %vm2119 = vweird.f32 %v1903
          %vm2120 = vweird.f32 %v2114
          %vm2121 = vmor %vm2119, %vm2120
          %v2122 = vsel %vm2121, %v2114, %v2118
          %v2123 = vand.u32 2147483647, %v1903
          %vm2124 = vcmp.eq.f32.partialorder %v2123, 8.507059e+37
          %v2125 = vand.u32 %v1903, 2147483648
          %v2126 = vor.u32 1.1754944e-38, %v2125
          %v2127 = vsel %vm2124, %v2126, %v2122
          %v2128 = vmul.f32 %v1872, %v1917
          %v2129 = vmul.f32 %v1873, %v1931
          %v2130 = vmul.f32 %v1874, %v1945
          %v2131 = vmul.f32 %v1875, %v1959
          %v2132 = vmul.f32 %v1876, %v1973
          %v2133 = vmul.f32 %v1877, %v1987
          %v2134 = vmul.f32 %v1878, %v2001
          %v2135 = vmul.f32 %v1879, %v2015
          %v2136 = vmul.f32 %v1880, %v2029
          %v2137 = vmul.f32 %v1881, %v2043
          %v2138 = vmul.f32 %v1882, %v2057
          %v2139 = vmul.f32 %v1883, %v2071
          %v2140 = vmul.f32 %v1884, %v2085
          %v2141 = vmul.f32 %v1885, %v2099
          %v2142 = vmul.f32 %v1886, %v2113
          %v2143 = vmul.f32 %v1887, %v2127
          %v2144 = vld [vmem:[#allocation3] sm:$0xff]
          %v2145 = vld [vmem:[#allocation3 + $0x8] sm:$0xff]
          %v2146 = vld [vmem:[#allocation3 + $0x10] sm:$0xff]
          %v2147 = vld [vmem:[#allocation3 + $0x18] sm:$0xff]
          %v2148 = vld [vmem:[#allocation3 + $0x20] sm:$0xff]
          %v2149 = vld [vmem:[#allocation3 + $0x28] sm:$0xff]
          %v2150 = vld [vmem:[#allocation3 + $0x30] sm:$0xff]
          %v2151 = vld [vmem:[#allocation3 + $0x38] sm:$0xff]
          %v2152 = vld [vmem:[#allocation3 + $0x40] sm:$0xff]
          %v2153 = vld [vmem:[#allocation3 + $0x48] sm:$0xff]
          %v2154 = vld [vmem:[#allocation3 + $0x50] sm:$0xff]
          %v2155 = vld [vmem:[#allocation3 + $0x58] sm:$0xff]
          %v2156 = vld [vmem:[#allocation3 + $0x60] sm:$0xff]
          %v2157 = vld [vmem:[#allocation3 + $0x68] sm:$0xff]
          %v2158 = vld [vmem:[#allocation3 + $0x70] sm:$0xff]
          %v2159 = vld [vmem:[#allocation3 + $0x78] sm:$0xff]
          %v2160 = vmul.f32 %v2144, %v2128
          %v2161 = vmul.f32 %v2145, %v2129
          %v2162 = vmul.f32 %v2146, %v2130
          %v2163 = vmul.f32 %v2147, %v2131
          %v2164 = vmul.f32 %v2148, %v2132
          %v2165 = vmul.f32 %v2149, %v2133
          %v2166 = vmul.f32 %v2150, %v2134
          %v2167 = vmul.f32 %v2151, %v2135
          %v2168 = vmul.f32 %v2152, %v2136
          %v2169 = vmul.f32 %v2153, %v2137
          %v2170 = vmul.f32 %v2154, %v2138
          %v2171 = vmul.f32 %v2155, %v2139
          %v2172 = vmul.f32 %v2156, %v2140
          %v2173 = vmul.f32 %v2157, %v2141
          %v2174 = vmul.f32 %v2158, %v2142
          %v2175 = vmul.f32 %v2159, %v2143
          %v2176 = vsel %vm1675, %v2160, %v2144
          %v2177 = vsel %vm1675, %v2161, %v2145
          %v2178 = vsel %vm1675, %v2162, %v2146
          %v2179 = vsel %vm1675, %v2163, %v2147
          %v2180 = vsel %vm1675, %v2164, %v2148
          %v2181 = vsel %vm1675, %v2165, %v2149
          %v2182 = vsel %vm1675, %v2166, %v2150
          %v2183 = vsel %vm1675, %v2167, %v2151
          %v2184 = vsel %vm1675, %v2168, %v2152
          %v2185 = vsel %vm1675, %v2169, %v2153
          %v2186 = vsel %vm1675, %v2170, %v2154
          %v2187 = vsel %vm1675, %v2171, %v2155
          %v2188 = vsel %vm1675, %v2172, %v2156
          %v2189 = vsel %vm1675, %v2173, %v2157
          %v2190 = vsel %vm1675, %v2174, %v2158
          %v2191 = vsel %vm1675, %v2175, %v2159
          %vm2192 = vcmask 39936
          %v2194 = vsel %vm2192, 1.0, 0
          %v2197 = vsel %vm2192, %v2176, 0
          %v2200 = vsel %vm2192, %v2177, 0
          %v2203 = vsel %vm2192, %v2178, 0
          %v2206 = vsel %vm2192, %v2179, 0
          %v2209 = vsel %vm2192, %v2180, 0
          %v2212 = vsel %vm2192, %v2181, 0
          %v2215 = vsel %vm2192, %v2182, 0
          %v2218 = vsel %vm2192, %v2183, 0
          %v2221 = vsel %vm2192, %v2184, 0
          %v2224 = vsel %vm2192, %v2185, 0
          %v2227 = vsel %vm2192, %v2186, 0
          %v2230 = vsel %vm2192, %v2187, 0
          %v2233 = vsel %vm2192, %v2188, 0
          %v2236 = vsel %vm2192, %v2189, 0
          %v2239 = vsel %vm2192, %v2190, 0
          %v2242 = vsel %vm2192, %v2191, 0
          %2244 = vmatpush.xpose.msra.mxu0 %v2242
          %2245 = vmatpush.xpose.msra.mxu0 %v2239
          %2246 = vmatpush.xpose.msra.mxu0 %v2236
          %2247 = vmatpush.xpose.msra.mxu0 %v2233
          %2248 = vmatpush.xpose.msra.mxu0 %v2230
          %2249 = vmatpush.xpose.msra.mxu0 %v2227
          %2250 = vmatpush.xpose.msra.mxu0 %v2224
          %2251 = vmatpush.xpose.msra.mxu0 %v2221
          %2252 = vmatpush.xpose.msra.mxu0 %v2218
          %2253 = vmatpush.xpose.msra.mxu0 %v2215
          %2254 = vmatpush.xpose.msra.mxu0 %v2212
          %2255 = vmatpush.xpose.msra.mxu0 %v2209
          %2256 = vmatpush.xpose.msra.mxu0 %v2206
          %2257 = vmatpush.xpose.msra.mxu0 %v2203
          %2258 = vmatpush.xpose.msra.mxu0 %v2200
          %2259 = vmatpush.xpose.msra.mxu0 %v2197
          %2260 = vmatmul.f32.gmra.mxu0 %v2194
          %v2261 = vpop.f32.mrf.mxu0
          %v2262 = vadd.f32 0.0, %v2261
          %2263 = vdwg.mxu0
          %2264 = vst [vmem:[%s470] sm:$0x1] %v2262
        $region76: #{tpu_custom_call.1} parent=67 // pred_fallthru
          _
        %s2265 = sand.u32 %s317, 1
        %s2266 = scalar_lea.sflag [#allocation8], %s2265
        %s2267 = sand.u32 %s317, 1
        %s2268 = scalar_lea.vmem [#allocation7], %s2267
        // Predicated region
        $region77: #{tpu_custom_call.1} parent=67 // pred_check
          %p2269 = pneg %p327
        $region78: #{tpu_custom_call.1} parent=67 // pred_check_branch
          %2271 = sbr.rel (%p2269) target = $region80
        $region79: #{tpu_custom_call.1} parent=67 // pred_region
          %2273 = vsyncadd %s2266, 0
          %s2274 = scalar_lea.hbm %s12, %s30
          %s2276 = sshll.u32 %s2268, 4
          %s2277 = int_to_ptr.vmem [resolvable:$true] %s2276
          %s2278 = sshll.u32 %s2274, 4
          %s2279 = int_to_ptr.hbm [resolvable:$true] %s2278
          %2281 = dma.vmem_to_hbm [thread:$0]  %s2277, 16, %s2279, %s2266
        $region80: #{tpu_custom_call.1} parent=67 // pred_fallthru
          _
      $region68: #{tpu_custom_call.1} parent=5 // pred_fallthru
        _
      %p2282 = scmp.le.s32.totalorder 2, %s21
      // Predicated region
      $region81: #{tpu_custom_call.1} parent=5 // pred_check
        %p2283 = pneg %p2282
      $region82: #{tpu_custom_call.1} parent=5 // pred_check_branch
        %2285 = sbr.rel (%p2283) target = $region84
      $region83: #{tpu_custom_call.1} parent=5 // pred_region
        %s2286 = ssub.s32 %s21, 2
        // Predicated region
        $region85: #{tpu_custom_call.1} parent=83 // pred_check
          %p2287 = pneg %p333
        $region86: #{tpu_custom_call.1} parent=83 // pred_check_branch
          %2289 = sbr.rel (%p2287) target = $region88
        $region87: #{tpu_custom_call.1} parent=83 // pred_region
          %s2290 = sand.u32 %s318, 1
          %s2291 = scalar_lea.sflag [#allocation8], %s2290
          %s2292 = sand.u32 %s318, 1
          %s2293 = scalar_lea.vmem [#allocation7], %s2292
          %2295 = dma.done %s2291, 16
        $region88: #{tpu_custom_call.1} parent=83 // pred_fallthru
          _
      $region84: #{tpu_custom_call.1} parent=5 // pred_fallthru
        _
    $region6: #{tpu_custom_call.1} parent=1 // loop_footer
      %s25 = sadd.s32 1, %s21
    $region7: #{tpu_custom_call.1} parent=1 // loop_footer_branch
      %20 = sbr.rel target = $region3
    $region8: #{tpu_custom_call.1} parent=1 // loop_exit
      _
    %2296 = vsyncpa [#allocation8], 1
    %s2297 = scalar_lea.sflag [#allocation8], 1
    %2298 = vsyncpa %s2297, 1

// kernel: tpu_custom_call.1
$region0: #{tpu_custom_call.1}
  #allocation0 [shape = 'u32[]', space=smem, size = 0x4, offset = 0x4, fixed_abs, tag = 'smem constant byte address 0x4 - core index']
  #allocation1 [shape = 'u32[72,128]{1,0:T(1,128)}', space=vmem, size = 0x9000, scoped, tag = 'internal scratch']
  #allocation2 [shape = 'f32[128,64]{1,0:T(8,128)}', space=vmem, size = 0x10000, scoped, tag = 'scratch operand']
  #allocation3 [shape = 'f32[128,5]{1,0:T(8,128)}', space=vmem, size = 0x10000, scoped, tag = 'scratch operand']
  #allocation4 [shape = 'f32[128,4]{1,0:T(8,128)}', space=vmem, size = 0x10000, scoped, tag = 'scratch operand']
  #allocation5 [shape = 'f32[128,4]{1,0:T(8,128)}', space=vmem, size = 0x10000, scoped, tag = 'scratch operand']
  #allocation6 [shape = 'f32[128,4]{1,0:T(8,128)}', space=vmem, size = 0x10000, scoped, tag = 'scratch operand']
  %s0 = inlined_call_operand.vmem [shape: f32[256,24], index: 0, kind: input, shape index: {}]
  %s1 = inlined_call_operand.vmem [shape: f32[4,256,16], index: 1, kind: input, shape index: {}]
  %s2 = inlined_call_operand.vmem [shape: f32[4,256,1], index: 2, kind: input, shape index: {}]
  %s3 = inlined_call_operand.vmem [shape: f32[24,176], index: 3, kind: input, shape index: {}]
  %s4 = inlined_call_operand.vmem [shape: f32[1,176], index: 4, kind: input, shape index: {}]
  %s5 = inlined_call_operand.vmem [shape: f32[176,69], index: 5, kind: input, shape index: {}]
  %s6 = inlined_call_operand.vmem [shape: f32[1,69], index: 6, kind: input, shape index: {}]
  %s7 = inlined_call_operand.vmem [shape: f32[16,128], index: 7, kind: input, shape index: {}]
  %s8 = inlined_call_operand.vmem [shape: f32[1,128], index: 8, kind: input, shape index: {}]
  %s9 = inlined_call_operand.vmem [shape: f32[128,64], index: 9, kind: input, shape index: {}]
  %s10 = inlined_call_operand.vmem [shape: f32[1,64], index: 10, kind: input, shape index: {}]
  %s11 = inlined_call_operand.vmem [shape: f32[64,4], index: 11, kind: input, shape index: {}]
  %s12 = inlined_call_operand.hbm [shape: f32[2,1,128], index: 12, kind: output, shape index: {}]
  %s13 = sld [smem:[#allocation0]]
  $region89: #{tpu_custom_call.1} parent=0
    _
  %s15 = ssub.s32 1, %s13
  %s16 = scalar_select 0, %s15, %s13
  $region1: #{tpu_custom_call.1} parent=0
    #allocation7 [shape = 'u8[1024]{0}', space=vmem, size = 0x400, scoped, tag = 'output window, operand 0']
    #allocation8 [shape = 's32[2]{0}', space=sflag, size = 0x8, scoped, tag = 'scoped memory for tpu_custom_call.1']
    %17 = vsyncpa [#allocation8], 0
    %s18 = scalar_lea.sflag [#allocation8], 1
    %19 = vsyncpa %s18, 0
    loop: start=0, step=1, limit=10
    $region2: #{tpu_custom_call.1} parent=1 // loop_pre_header
      _
    $region3: #{tpu_custom_call.1} parent=1 // loop_header
      %s21 = sphi 0, %s25
      %p22 = scmp.ge.s32.totalorder %s21, 10
      %s28 = sphi 0, %s40
      %s29 = sphi 0, %s36
      %s30 = sphi 0, %s28
      %s31 = sphi 0, %s29
      %s32 = sphi 0, %s30
      %s33 = sphi 0, %s31
      %s43 = sphi 0, %s45
      %s46 = sphi 0, %s43
      %s47 = sphi 0, %s46
      %s63 = sphi 0, %s47
      %s71 = sphi 0, %s73
      %s74 = sphi 0, %s71
      %s75 = sphi 0, %s74
      %s91 = sphi 0, %s75
      %s99 = sphi 0, %s101
      %s102 = sphi 0, %s99
      %s103 = sphi 0, %s102
      %s119 = sphi 0, %s103
      %s123 = sphi 0, %s123
      %s125 = sphi 0, %s123
      %s126 = sphi 0, %s125
      %s140 = sphi 0, %s126
      %s144 = sphi 0, %s144
      %s146 = sphi 0, %s144
      %s147 = sphi 0, %s146
      %s161 = sphi 0, %s147
      %s165 = sphi 0, %s165
      %s167 = sphi 0, %s165
      %s168 = sphi 0, %s167
      %s182 = sphi 0, %s168
      %s186 = sphi 0, %s186
      %s188 = sphi 0, %s186
      %s189 = sphi 0, %s188
      %s203 = sphi 0, %s189
      %s207 = sphi 0, %s207
      %s209 = sphi 0, %s207
      %s210 = sphi 0, %s209
      %s224 = sphi 0, %s210
      %s228 = sphi 0, %s228
      %s230 = sphi 0, %s228
      %s231 = sphi 0, %s230
      %s245 = sphi 0, %s231
      %s249 = sphi 0, %s249
      %s251 = sphi 0, %s249
      %s252 = sphi 0, %s251
      %s266 = sphi 0, %s252
      %s270 = sphi 0, %s270
      %s272 = sphi 0, %s270
      %s273 = sphi 0, %s272
      %s287 = sphi 0, %s273
      %s291 = sphi 0, %s291
      %s293 = sphi 0, %s291
      %s294 = sphi 0, %s293
      %s308 = sphi 0, %s294
      %s314 = sphi 0, %s316
      %s317 = sphi 0, %s314
      %s318 = sphi 0, %s317
      %s334 = sphi 0, %s318
    $region4: #{tpu_custom_call.1} parent=1 // loop_header_branch
      %24 = sbr.rel (%p22) target = $region8
    $region5: #{tpu_custom_call.1} parent=1 // loop_body
      %s26 = ssub.s32 %s21, 1
      %s27 = ssub.s32 %s21, 2
      %s34 = sadd.s32 1, %s29
      %p35 = scmp.ge.s32.totalorder %s34, 4
      %s36 = scalar_select %p35, 0, %s34
      %s37 = sadd.s32 1, %s28
      %s38 = scalar_select %p35, %s37, %s28
      %p39 = scmp.ge.s32.totalorder %s38, 2
      %s40 = scalar_select %p39, 0, %s38
      %s41 = ssub.s32 %s28, %s40
      %p42 = scmp.eq.s32.totalorder %s41, 0
      %s44 = sadd.s32 %s43, 1
      %s45 = scalar_select %p42, %s43, %s44
      %p48 = pneg %p42
      %p49 = scmp.eq.s32.totalorder %s21, 7
      %p50 = por %p48, %p49
      %p51 = scmp.ne.s32.totalorder %s43, %s46
      %p52 = scmp.eq.s32.totalorder %s21, 0
      %p53 = por %p51, %p52
      %p54 = scmp.ne.s32.totalorder %s43, %s46
      %p55 = scmp.eq.s32.totalorder %s26, 7
      %p56 = por %p54, %p55
      %p57 = scmp.ne.s32.totalorder %s46, %s47
      %p58 = scmp.eq.s32.totalorder %s26, 0
      %p59 = por %p57, %p58
      %p60 = scmp.ne.s32.totalorder %s46, %s47
      %p61 = scmp.eq.s32.totalorder %s27, 7
      %p62 = por %p60, %p61
      %p64 = scmp.ne.s32.totalorder %s47, %s63
      %p65 = scmp.eq.s32.totalorder %s27, 0
      %p66 = por %p64, %p65
      %s67 = ssub.s32 %s29, %s36
      %s68 = ssub.s32 %s28, %s40
      %s69 = sor.u32 %s67, %s68
      %p70 = scmp.eq.s32.totalorder %s69, 0
      %s72 = sadd.s32 %s71, 1
      %s73 = scalar_select %p70, %s71, %s72
      %p76 = pneg %p70
      %p77 = scmp.eq.s32.totalorder %s21, 7
      %p78 = por %p76, %p77
      %p79 = scmp.ne.s32.totalorder %s71, %s74
      %p80 = scmp.eq.s32.totalorder %s21, 0
      %p81 = por %p79, %p80
      %p82 = scmp.ne.s32.totalorder %s71, %s74
      %p83 = scmp.eq.s32.totalorder %s26, 7
      %p84 = por %p82, %p83
      %p85 = scmp.ne.s32.totalorder %s74, %s75
      %p86 = scmp.eq.s32.totalorder %s26, 0
      %p87 = por %p85, %p86
      %p88 = scmp.ne.s32.totalorder %s74, %s75
      %p89 = scmp.eq.s32.totalorder %s27, 7
      %p90 = por %p88, %p89
      %p92 = scmp.ne.s32.totalorder %s75, %s91
      %p93 = scmp.eq.s32.totalorder %s27, 0
      %p94 = por %p92, %p93
      %s95 = ssub.s32 %s29, %s36
      %s96 = ssub.s32 %s28, %s40
      %s97 = sor.u32 %s95, %s96
      %p98 = scmp.eq.s32.totalorder %s97, 0
      %s100 = sadd.s32 %s99, 1
      %s101 = scalar_select %p98, %s99, %s100
      %p104 = pneg %p98
      %p105 = scmp.eq.s32.totalorder %s21, 7
      %p106 = por %p104, %p105
      %p107 = scmp.ne.s32.totalorder %s99, %s102
      %p108 = scmp.eq.s32.totalorder %s21, 0
      %p109 = por %p107, %p108
      %p110 = scmp.ne.s32.totalorder %s99, %s102
      %p111 = scmp.eq.s32.totalorder %s26, 7
      %p112 = por %p110, %p111
      %p113 = scmp.ne.s32.totalorder %s102, %s103
      %p114 = scmp.eq.s32.totalorder %s26, 0
      %p115 = por %p113, %p114
      %p116 = scmp.ne.s32.totalorder %s102, %s103
      %p117 = scmp.eq.s32.totalorder %s27, 7
      %p118 = por %p116, %p117
      %p120 = scmp.ne.s32.totalorder %s103, %s119
      %p121 = scmp.eq.s32.totalorder %s27, 0
      %p122 = por %p120, %p121
      %s124 = sadd.s32 %s123, 1
      %p127 = scmp.eq.s32.totalorder %s21, 7
      %p128 = scmp.ne.s32.totalorder %s123, %s125
      %p129 = scmp.eq.s32.totalorder %s21, 0
      %p130 = por %p128, %p129
      %p131 = scmp.ne.s32.totalorder %s123, %s125
      %p132 = scmp.eq.s32.totalorder %s26, 7
      %p133 = por %p131, %p132
      %p134 = scmp.ne.s32.totalorder %s125, %s126
      %p135 = scmp.eq.s32.totalorder %s26, 0
      %p136 = por %p134, %p135
      %p137 = scmp.ne.s32.totalorder %s125, %s126
      %p138 = scmp.eq.s32.totalorder %s27, 7
      %p139 = por %p137, %p138
      %p141 = scmp.ne.s32.totalorder %s126, %s140
      %p142 = scmp.eq.s32.totalorder %s27, 0
      %p143 = por %p141, %p142
      %s145 = sadd.s32 %s144, 1
      %p148 = scmp.eq.s32.totalorder %s21, 7
      %p149 = scmp.ne.s32.totalorder %s144, %s146
      %p150 = scmp.eq.s32.totalorder %s21, 0
      %p151 = por %p149, %p150
      %p152 = scmp.ne.s32.totalorder %s144, %s146
      %p153 = scmp.eq.s32.totalorder %s26, 7
      %p154 = por %p152, %p153
      %p155 = scmp.ne.s32.totalorder %s146, %s147
      %p156 = scmp.eq.s32.totalorder %s26, 0
      %p157 = por %p155, %p156
      %p158 = scmp.ne.s32.totalorder %s146, %s147
      %p159 = scmp.eq.s32.totalorder %s27, 7
      %p160 = por %p158, %p159
      %p162 = scmp.ne.s32.totalorder %s147, %s161
      %p163 = scmp.eq.s32.totalorder %s27, 0
      %p164 = por %p162, %p163
      %s166 = sadd.s32 %s165, 1
      %p169 = scmp.eq.s32.totalorder %s21, 7
      %p170 = scmp.ne.s32.totalorder %s165, %s167
      %p171 = scmp.eq.s32.totalorder %s21, 0
      %p172 = por %p170, %p171
      %p173 = scmp.ne.s32.totalorder %s165, %s167
      %p174 = scmp.eq.s32.totalorder %s26, 7
      %p175 = por %p173, %p174
      %p176 = scmp.ne.s32.totalorder %s167, %s168
      %p177 = scmp.eq.s32.totalorder %s26, 0
      %p178 = por %p176, %p177
      %p179 = scmp.ne.s32.totalorder %s167, %s168
      %p180 = scmp.eq.s32.totalorder %s27, 7
      %p181 = por %p179, %p180
      %p183 = scmp.ne.s32.totalorder %s168, %s182
      %p184 = scmp.eq.s32.totalorder %s27, 0
      %p185 = por %p183, %p184
      %s187 = sadd.s32 %s186, 1
      %p190 = scmp.eq.s32.totalorder %s21, 7
      %p191 = scmp.ne.s32.totalorder %s186, %s188
      %p192 = scmp.eq.s32.totalorder %s21, 0
      %p193 = por %p191, %p192
      %p194 = scmp.ne.s32.totalorder %s186, %s188
      %p195 = scmp.eq.s32.totalorder %s26, 7
      %p196 = por %p194, %p195
      %p197 = scmp.ne.s32.totalorder %s188, %s189
      %p198 = scmp.eq.s32.totalorder %s26, 0
      %p199 = por %p197, %p198
      %p200 = scmp.ne.s32.totalorder %s188, %s189
      %p201 = scmp.eq.s32.totalorder %s27, 7
      %p202 = por %p200, %p201
      %p204 = scmp.ne.s32.totalorder %s189, %s203
      %p205 = scmp.eq.s32.totalorder %s27, 0
      %p206 = por %p204, %p205
      %s208 = sadd.s32 %s207, 1
      %p211 = scmp.eq.s32.totalorder %s21, 7
      %p212 = scmp.ne.s32.totalorder %s207, %s209
      %p213 = scmp.eq.s32.totalorder %s21, 0
      %p214 = por %p212, %p213
      %p215 = scmp.ne.s32.totalorder %s207, %s209
      %p216 = scmp.eq.s32.totalorder %s26, 7
      %p217 = por %p215, %p216
      %p218 = scmp.ne.s32.totalorder %s209, %s210
      %p219 = scmp.eq.s32.totalorder %s26, 0
      %p220 = por %p218, %p219
      %p221 = scmp.ne.s32.totalorder %s209, %s210
      %p222 = scmp.eq.s32.totalorder %s27, 7
      %p223 = por %p221, %p222
      %p225 = scmp.ne.s32.totalorder %s210, %s224
      %p226 = scmp.eq.s32.totalorder %s27, 0
      %p227 = por %p225, %p226
      %s229 = sadd.s32 %s228, 1
      %p232 = scmp.eq.s32.totalorder %s21, 7
      %p233 = scmp.ne.s32.totalorder %s228, %s230
      %p234 = scmp.eq.s32.totalorder %s21, 0
      %p235 = por %p233, %p234
      %p236 = scmp.ne.s32.totalorder %s228, %s230
      %p237 = scmp.eq.s32.totalorder %s26, 7
      %p238 = por %p236, %p237
      %p239 = scmp.ne.s32.totalorder %s230, %s231
      %p240 = scmp.eq.s32.totalorder %s26, 0
      %p241 = por %p239, %p240
      %p242 = scmp.ne.s32.totalorder %s230, %s231
      %p243 = scmp.eq.s32.totalorder %s27, 7
      %p244 = por %p242, %p243
      %p246 = scmp.ne.s32.totalorder %s231, %s245
      %p247 = scmp.eq.s32.totalorder %s27, 0
      %p248 = por %p246, %p247
      %s250 = sadd.s32 %s249, 1
      %p253 = scmp.eq.s32.totalorder %s21, 7
      %p254 = scmp.ne.s32.totalorder %s249, %s251
      %p255 = scmp.eq.s32.totalorder %s21, 0
      %p256 = por %p254, %p255
      %p257 = scmp.ne.s32.totalorder %s249, %s251
      %p258 = scmp.eq.s32.totalorder %s26, 7
      %p259 = por %p257, %p258
      %p260 = scmp.ne.s32.totalorder %s251, %s252
      %p261 = scmp.eq.s32.totalorder %s26, 0
      %p262 = por %p260, %p261
      %p263 = scmp.ne.s32.totalorder %s251, %s252
      %p264 = scmp.eq.s32.totalorder %s27, 7
      %p265 = por %p263, %p264
      %p267 = scmp.ne.s32.totalorder %s252, %s266
      %p268 = scmp.eq.s32.totalorder %s27, 0
      %p269 = por %p267, %p268
      %s271 = sadd.s32 %s270, 1
      %p274 = scmp.eq.s32.totalorder %s21, 7
      %p275 = scmp.ne.s32.totalorder %s270, %s272
      %p276 = scmp.eq.s32.totalorder %s21, 0
      %p277 = por %p275, %p276
      %p278 = scmp.ne.s32.totalorder %s270, %s272
      %p279 = scmp.eq.s32.totalorder %s26, 7
      %p280 = por %p278, %p279
      %p281 = scmp.ne.s32.totalorder %s272, %s273
      %p282 = scmp.eq.s32.totalorder %s26, 0
      %p283 = por %p281, %p282
      %p284 = scmp.ne.s32.totalorder %s272, %s273
      %p285 = scmp.eq.s32.totalorder %s27, 7
      %p286 = por %p284, %p285
      %p288 = scmp.ne.s32.totalorder %s273, %s287
      %p289 = scmp.eq.s32.totalorder %s27, 0
      %p290 = por %p288, %p289
      %s292 = sadd.s32 %s291, 1
      %p295 = scmp.eq.s32.totalorder %s21, 7
      %p296 = scmp.ne.s32.totalorder %s291, %s293
      %p297 = scmp.eq.s32.totalorder %s21, 0
      %p298 = por %p296, %p297
      %p299 = scmp.ne.s32.totalorder %s291, %s293
      %p300 = scmp.eq.s32.totalorder %s26, 7
      %p301 = por %p299, %p300
      %p302 = scmp.ne.s32.totalorder %s293, %s294
      %p303 = scmp.eq.s32.totalorder %s26, 0
      %p304 = por %p302, %p303
      %p305 = scmp.ne.s32.totalorder %s293, %s294
      %p306 = scmp.eq.s32.totalorder %s27, 7
      %p307 = por %p305, %p306
      %p309 = scmp.ne.s32.totalorder %s294, %s308
      %p310 = scmp.eq.s32.totalorder %s27, 0
      %p311 = por %p309, %p310
      %s312 = ssub.s32 %s28, %s40
      %p313 = scmp.eq.s32.totalorder %s312, 0
      %s315 = sadd.s32 %s314, 1
      %s316 = scalar_select %p313, %s314, %s315
      %p319 = pneg %p313
      %p320 = scmp.eq.s32.totalorder %s21, 7
      %p321 = por %p319, %p320
      %p322 = scmp.ne.s32.totalorder %s314, %s317
      %p323 = scmp.eq.s32.totalorder %s21, 0
      %p324 = por %p322, %p323
      %p325 = scmp.ne.s32.totalorder %s314, %s317
      %p326 = scmp.eq.s32.totalorder %s26, 7
      %p327 = por %p325, %p326
      %p328 = scmp.ne.s32.totalorder %s317, %s318
      %p329 = scmp.eq.s32.totalorder %s26, 0
      %p330 = por %p328, %p329
      %p331 = scmp.ne.s32.totalorder %s317, %s318
      %p332 = scmp.eq.s32.totalorder %s27, 7
      %p333 = por %p331, %p332
      %p335 = scmp.ne.s32.totalorder %s318, %s334
      %p336 = scmp.eq.s32.totalorder %s27, 0
      %p337 = por %p335, %p336
      %p338 = scmp.le.s32.totalorder 1, %s21
      %p339 = scmp.lt.s32.totalorder %s21, 9
      %p340 = pnand %p338, %p339
      %p341 = pneg %p340
      // Predicated region
      $region9: #{tpu_custom_call.1} parent=5 // pred_check
        _
      $region10: #{tpu_custom_call.1} parent=5 // pred_check_branch
        %343 = sbr.rel (%p340) target = $region12
      $region11: #{tpu_custom_call.1} parent=5 // pred_region
        %s344 = ssub.s32 %s21, 1
        // Predicated region
        $region13: #{tpu_custom_call.1} parent=11 // pred_check
          %p345 = pneg %p136
        $region14: #{tpu_custom_call.1} parent=11 // pred_check_branch
          %347 = sbr.rel (%p345) target = $region16
        $region15: #{tpu_custom_call.1} parent=11 // pred_region
          _
        $region16: #{tpu_custom_call.1} parent=11 // pred_fallthru
          _
        // Predicated region
        $region17: #{tpu_custom_call.1} parent=11 // pred_check
          %p348 = pneg %p157
        $region18: #{tpu_custom_call.1} parent=11 // pred_check_branch
          %350 = sbr.rel (%p348) target = $region20
        $region19: #{tpu_custom_call.1} parent=11 // pred_region
          _
        $region20: #{tpu_custom_call.1} parent=11 // pred_fallthru
          _
        // Predicated region
        $region21: #{tpu_custom_call.1} parent=11 // pred_check
          %p351 = pneg %p178
        $region22: #{tpu_custom_call.1} parent=11 // pred_check_branch
          %353 = sbr.rel (%p351) target = $region24
        $region23: #{tpu_custom_call.1} parent=11 // pred_region
          _
        $region24: #{tpu_custom_call.1} parent=11 // pred_fallthru
          _
        // Predicated region
        $region25: #{tpu_custom_call.1} parent=11 // pred_check
          %p354 = pneg %p199
        $region26: #{tpu_custom_call.1} parent=11 // pred_check_branch
          %356 = sbr.rel (%p354) target = $region28
        $region27: #{tpu_custom_call.1} parent=11 // pred_region
          _
        $region28: #{tpu_custom_call.1} parent=11 // pred_fallthru
          _
        // Predicated region
        $region29: #{tpu_custom_call.1} parent=11 // pred_check
          %p357 = pneg %p220
        $region30: #{tpu_custom_call.1} parent=11 // pred_check_branch
          %359 = sbr.rel (%p357) target = $region32
        $region31: #{tpu_custom_call.1} parent=11 // pred_region
          _
        $region32: #{tpu_custom_call.1} parent=11 // pred_fallthru
          _
        // Predicated region
        $region33: #{tpu_custom_call.1} parent=11 // pred_check
          %p360 = pneg %p241
        $region34: #{tpu_custom_call.1} parent=11 // pred_check_branch
          %362 = sbr.rel (%p360) target = $region36
        $region35: #{tpu_custom_call.1} parent=11 // pred_region
          _
        $region36: #{tpu_custom_call.1} parent=11 // pred_fallthru
          _
        // Predicated region
        $region37: #{tpu_custom_call.1} parent=11 // pred_check
          %p363 = pneg %p262
        $region38: #{tpu_custom_call.1} parent=11 // pred_check_branch
          %365 = sbr.rel (%p363) target = $region40
        $region39: #{tpu_custom_call.1} parent=11 // pred_region
          _
        $region40: #{tpu_custom_call.1} parent=11 // pred_fallthru
          _
        // Predicated region
        $region41: #{tpu_custom_call.1} parent=11 // pred_check
          %p366 = pneg %p283
        $region42: #{tpu_custom_call.1} parent=11 // pred_check_branch
          %368 = sbr.rel (%p366) target = $region44
        $region43: #{tpu_custom_call.1} parent=11 // pred_region
          _
        $region44: #{tpu_custom_call.1} parent=11 // pred_fallthru
          _
        // Predicated region
        $region45: #{tpu_custom_call.1} parent=11 // pred_check
          %p369 = pneg %p304
        $region46: #{tpu_custom_call.1} parent=11 // pred_check_branch
          %371 = sbr.rel (%p369) target = $region48
        $region47: #{tpu_custom_call.1} parent=11 // pred_region
          _
        $region48: #{tpu_custom_call.1} parent=11 // pred_fallthru
          _
      $region12: #{tpu_custom_call.1} parent=5 // pred_fallthru
        _
      %p372 = scmp.lt.s32.totalorder %s21, 8
      // Predicated region
      $region49: #{tpu_custom_call.1} parent=5 // pred_check
        %p373 = pneg %p372
      $region50: #{tpu_custom_call.1} parent=5 // pred_check_branch
        %375 = sbr.rel (%p373) target = $region52
      $region51: #{tpu_custom_call.1} parent=5 // pred_region
        // Predicated region
        $region53: #{tpu_custom_call.1} parent=51 // pred_check
          %p376 = pneg %p53
        $region54: #{tpu_custom_call.1} parent=51 // pred_check_branch
          %378 = sbr.rel (%p376) target = $region56
        $region55: #{tpu_custom_call.1} parent=51 // pred_region
          %s379 = smul.u32 16, %s28
          %p380 = scmp.lt.s32.totalorder %s379, 31
          %s381 = scalar_select %p380, %s379, 31
          %s382 = smul.addr %s381, 8
          %s383 = scalar_lea.vmem %s0, %s382
          %s384 = smul.u32 16, %s28
        $region56: #{tpu_custom_call.1} parent=51 // pred_fallthru
          _
        // Predicated region
        $region57: #{tpu_custom_call.1} parent=51 // pred_check
          %p385 = pneg %p81
        $region58: #{tpu_custom_call.1} parent=51 // pred_check_branch
          %387 = sbr.rel (%p385) target = $region60
        $region59: #{tpu_custom_call.1} parent=51 // pred_region
          %s388 = smul.u32 16, %s28
          %p389 = scmp.lt.s32.totalorder %s29, 3
          %s390 = scalar_select %p389, %s29, 3
          %p391 = scmp.lt.s32.totalorder %s388, 31
          %s392 = scalar_select %p391, %s388, 31
          %s393 = smul.addr %s390, 32
          %s394 = sadd.s32 %s392, %s393
          %s395 = smul.addr %s394, 8
          %s396 = scalar_lea.vmem %s1, %s395
          %s397 = smul.u32 16, %s28
        $region60: #{tpu_custom_call.1} parent=51 // pred_fallthru
          _
        // Predicated region
        $region61: #{tpu_custom_call.1} parent=51 // pred_check
          %p398 = pneg %p109
        $region62: #{tpu_custom_call.1} parent=51 // pred_check_branch
          %400 = sbr.rel (%p398) target = $region64
        $region63: #{tpu_custom_call.1} parent=51 // pred_region
          %s401 = smul.u32 16, %s28
          %p402 = scmp.lt.s32.totalorder %s29, 3
          %s403 = scalar_select %p402, %s29, 3
          %p404 = scmp.lt.s32.totalorder %s401, 31
          %s405 = scalar_select %p404, %s401, 31
          %s406 = smul.addr %s403, 32
          %s407 = sadd.s32 %s405, %s406
          %s408 = smul.addr %s407, 8
          %s409 = scalar_lea.vmem %s2, %s408
          %s410 = smul.u32 16, %s28
        $region64: #{tpu_custom_call.1} parent=51 // pred_fallthru
          _
      $region52: #{tpu_custom_call.1} parent=5 // pred_fallthru
        _
      %p411 = scmp.le.s32.totalorder 1, %s21
      %p412 = scmp.lt.s32.totalorder %s21, 9
      %p413 = pnand %p411, %p412
      %p414 = pneg %p413
      // Predicated region
      $region65: #{tpu_custom_call.1} parent=5 // pred_check
        _
      $region66: #{tpu_custom_call.1} parent=5 // pred_check_branch
        %416 = sbr.rel (%p413) target = $region68
      $region67: #{tpu_custom_call.1} parent=5 // pred_region
        %s417 = ssub.s32 %s21, 1
        %s418 = smul.u32 16, %s30
        %p419 = scmp.lt.s32.totalorder %s418, 31
        %s420 = scalar_select %p419, %s418, 31
        %s421 = smul.addr %s420, 8
        %s422 = scalar_lea.vmem %s0, %s421
        %p423 = pneg %p59
        %p424 = pneg %p56
        %s425 = smul.u32 16, %s30
        %p426 = scmp.lt.s32.totalorder %s31, 3
        %s427 = scalar_select %p426, %s31, 3
        %p428 = scmp.lt.s32.totalorder %s425, 31
        %s429 = scalar_select %p428, %s425, 31
        %s430 = smul.addr %s427, 32
        %s431 = sadd.s32 %s429, %s430
        %s432 = smul.addr %s431, 8
        %s433 = scalar_lea.vmem %s1, %s432
        %p434 = pneg %p87
        %p435 = pneg %p84
        %s436 = smul.u32 16, %s30
        %p437 = scmp.lt.s32.totalorder %s31, 3
        %s438 = scalar_select %p437, %s31, 3
        %p439 = scmp.lt.s32.totalorder %s436, 31
        %s440 = scalar_select %p439, %s436, 31
        %s441 = smul.addr %s438, 32
        %s442 = sadd.s32 %s440, %s441
        %s443 = smul.addr %s442, 8
        %s444 = scalar_lea.vmem %s2, %s443
        %p445 = pneg %p115
        %p446 = pneg %p112
        %p447 = pneg %p136
        %p448 = pneg %p133
        %p449 = pneg %p157
        %p450 = pneg %p154
        %p451 = pneg %p178
        %p452 = pneg %p175
        %p453 = pneg %p199
        %p454 = pneg %p196
        %p455 = pneg %p220
        %p456 = pneg %p217
        %p457 = pneg %p241
        %p458 = pneg %p238
        %p459 = pneg %p262
        %p460 = pneg %p259
        %p461 = pneg %p283
        %p462 = pneg %p280
        %p463 = pneg %p304
        %p464 = pneg %p301
        %p465 = pneg %p330
        %p466 = pneg %p327
        %s467 = sand.u32 %s317, 1
        %s468 = scalar_lea.sflag [#allocation8], %s467
        %s469 = sand.u32 %s317, 1
        %s470 = scalar_lea.vmem [#allocation7], %s469
        %s471 = smul.u32 16, %s30
        %p472 = scmp.lt.s32.totalorder %s471, 31
        %s473 = scalar_select %p472, %s471, 31
        %s474 = smul.addr %s473, 8
        %s475 = scalar_lea.vmem %s0, %s474
        %s476 = smul.u32 16, %s30
        %s477 = smul.u32 16, %s30
        %p478 = scmp.lt.s32.totalorder %s31, 3
        %s479 = scalar_select %p478, %s31, 3
        %p480 = scmp.lt.s32.totalorder %s477, 31
        %s481 = scalar_select %p480, %s477, 31
        %s482 = smul.addr %s479, 32
        %s483 = sadd.s32 %s481, %s482
        %s484 = smul.addr %s483, 8
        %s485 = scalar_lea.vmem %s1, %s484
        %s486 = smul.u32 16, %s30
        %s487 = smul.u32 16, %s30
        %p488 = scmp.lt.s32.totalorder %s31, 3
        %s489 = scalar_select %p488, %s31, 3
        %p490 = scmp.lt.s32.totalorder %s487, 31
        %s491 = scalar_select %p490, %s487, 31
        %s492 = smul.addr %s489, 32
        %s493 = sadd.s32 %s491, %s492
        %s494 = smul.addr %s493, 8
        %s495 = scalar_lea.vmem %s2, %s494
        %s496 = smul.u32 16, %s30
        %p497 = scmp.eq.s32.totalorder %s31, 0
        // Predicated region
        $region69: #{tpu_custom_call.1} parent=67 // pred_check
          %p498 = pneg %p497
        $region70: #{tpu_custom_call.1} parent=67 // pred_check_branch
          %500 = sbr.rel (%p498) target = $region72
        $region71: #{tpu_custom_call.1} parent=67 // pred_region
          %v501 = vld [vmem:[%s475] sm:$0xff]
          %v502 = vld [vmem:[%s475 + $0x8] sm:$0xff]
          %v503 = vld [vmem:[%s475 + $0x10] sm:$0xff]
          %v504 = vld [vmem:[%s475 + $0x18] sm:$0xff]
          %v505 = vld [vmem:[%s475 + $0x20] sm:$0xff]
          %v506 = vld [vmem:[%s475 + $0x28] sm:$0xff]
          %v507 = vld [vmem:[%s475 + $0x30] sm:$0xff]
          %v508 = vld [vmem:[%s475 + $0x38] sm:$0xff]
          %v509 = vld [vmem:[%s475 + $0x40] sm:$0xff]
          %v510 = vld [vmem:[%s475 + $0x48] sm:$0xff]
          %v511 = vld [vmem:[%s475 + $0x50] sm:$0xff]
          %v512 = vld [vmem:[%s475 + $0x58] sm:$0xff]
          %v513 = vld [vmem:[%s475 + $0x60] sm:$0xff]
          %v514 = vld [vmem:[%s475 + $0x68] sm:$0xff]
          %v515 = vld [vmem:[%s475 + $0x70] sm:$0xff]
          %v516 = vld [vmem:[%s475 + $0x78] sm:$0xff]
          %v517 = vld [vmem:[%s3] sm:$0xff]
          %v518 = vld [vmem:[%s3 + $0x8] sm:$0xff]
          %v519 = vld [vmem:[%s3 + $0x10] sm:$0xff]
          %v520 = vld [vmem:[%s3 + $0x18] sm:$0xff]
          %v521 = vld [vmem:[%s3 + $0x20] sm:$0xff]
          %v522 = vld [vmem:[%s3 + $0x28] sm:$0xff]
          %v523 = vld [vmem:[%s4] sm:$0x3]
          %v525 = vperm.slane %v523, 0
          %v526 = vperm.slane %v523, 1
          %vm529 = vcmask 195584
          %v531 = vsel %vm529, %v501, 0
          %v534 = vsel %vm529, %v502, 0
          %v537 = vsel %vm529, %v503, 0
          %v540 = vsel %vm529, %v504, 0
          %v543 = vsel %vm529, %v505, 0
          %v546 = vsel %vm529, %v506, 0
          %v549 = vsel %vm529, %v507, 0
          %v552 = vsel %vm529, %v508, 0
          %v555 = vsel %vm529, %v509, 0
          %v558 = vsel %vm529, %v510, 0
          %v561 = vsel %vm529, %v511, 0
          %v564 = vsel %vm529, %v512, 0
          %v567 = vsel %vm529, %v513, 0
          %v570 = vsel %vm529, %v514, 0
          %v573 = vsel %vm529, %v515, 0
          %v576 = vsel %vm529, %v516, 0
          %578 = vmatpush.msra.mxu0 0.0
          %579 = vmatpush.msra.mxu0 0.0
          %580 = vmatpush.msra.mxu0 0.0
          %581 = vmatpush.msra.mxu0 0.0
          %582 = vmatpush.msra.mxu0 0.0
          %583 = vmatpush.msra.mxu0 0.0
          %584 = vmatpush.msra.mxu0 0.0
          %585 = vmatpush.msra.mxu0 0.0
          %586 = vmatpush.msra.mxu0 0.0
          %587 = vmatpush.msra.mxu0 0.0
          %588 = vmatpush.msra.mxu0 0.0
          %589 = vmatpush.msra.mxu0 0.0
          %590 = vmatpush.msra.mxu0 0.0
          %591 = vmatpush.msra.mxu0 %v521
          %592 = vmatpush.msra.mxu0 %v519
          %593 = vmatpush.msra.mxu0 %v517
          %594 = vmatmul.f32.gmra.mxu0 %v531
          %v595 = vpop.f32.mrf.mxu0
          %v596 = vadd.f32 %v525, %v595
          %597 = vmatmul.f32.gmra.mxu0 %v534
          %v598 = vpop.f32.mrf.mxu0
          %v599 = vadd.f32 %v525, %v598
          %600 = vmatmul.f32.gmra.mxu0 %v537
          %v601 = vpop.f32.mrf.mxu0
          %v602 = vadd.f32 %v525, %v601
          %603 = vmatmul.f32.gmra.mxu0 %v540
          %v604 = vpop.f32.mrf.mxu0
          %v605 = vadd.f32 %v525, %v604
          %606 = vmatmul.f32.gmra.mxu0 %v543
          %v607 = vpop.f32.mrf.mxu0
          %v608 = vadd.f32 %v525, %v607
          %609 = vmatmul.f32.gmra.mxu0 %v546
          %v610 = vpop.f32.mrf.mxu0
          %v611 = vadd.f32 %v525, %v610
          %612 = vmatmul.f32.gmra.mxu0 %v549
          %v613 = vpop.f32.mrf.mxu0
          %v614 = vadd.f32 %v525, %v613
          %615 = vmatmul.f32.gmra.mxu0 %v552
          %v616 = vpop.f32.mrf.mxu0
          %v617 = vadd.f32 %v525, %v616
          %618 = vmatmul.f32.gmra.mxu0 %v555
          %v619 = vpop.f32.mrf.mxu0
          %v620 = vadd.f32 %v525, %v619
          %621 = vmatmul.f32.gmra.mxu0 %v558
          %v622 = vpop.f32.mrf.mxu0
          %v623 = vadd.f32 %v525, %v622
          %624 = vmatmul.f32.gmra.mxu0 %v561
          %v625 = vpop.f32.mrf.mxu0
          %v626 = vadd.f32 %v525, %v625
          %627 = vmatmul.f32.gmra.mxu0 %v564
          %v628 = vpop.f32.mrf.mxu0
          %v629 = vadd.f32 %v525, %v628
          %630 = vmatmul.f32.gmra.mxu0 %v567
          %v631 = vpop.f32.mrf.mxu0
          %v632 = vadd.f32 %v525, %v631
          %633 = vmatmul.f32.gmra.mxu0 %v570
          %v634 = vpop.f32.mrf.mxu0
          %v635 = vadd.f32 %v525, %v634
          %636 = vmatmul.f32.gmra.mxu0 %v573
          %v637 = vpop.f32.mrf.mxu0
          %v638 = vadd.f32 %v525, %v637
          %639 = vmatmul.f32.gmra.mxu0 %v576
          %v640 = vpop.f32.mrf.mxu0
          %v641 = vadd.f32 %v525, %v640
          %642 = vdwg.mxu0
          %643 = vmatpush.msra.mxu0 0.0
          %644 = vmatpush.msra.mxu0 0.0
          %645 = vmatpush.msra.mxu0 0.0
          %646 = vmatpush.msra.mxu0 0.0
          %647 = vmatpush.msra.mxu0 0.0
          %648 = vmatpush.msra.mxu0 0.0
          %649 = vmatpush.msra.mxu0 0.0
          %650 = vmatpush.msra.mxu0 0.0
          %651 = vmatpush.msra.mxu0 0.0
          %652 = vmatpush.msra.mxu0 0.0
          %653 = vmatpush.msra.mxu0 0.0
          %654 = vmatpush.msra.mxu0 0.0
          %655 = vmatpush.msra.mxu0 0.0
          %656 = vmatpush.msra.mxu0 %v522
          %657 = vmatpush.msra.mxu0 %v520
          %658 = vmatpush.msra.mxu0 %v518
          %659 = vmatmul.f32.gmra.mxu0 %v531
          %v660 = vpop.f32.mrf.mxu0
          %v661 = vadd.f32 %v526, %v660
          %662 = vmatmul.f32.gmra.mxu0 %v534
          %v663 = vpop.f32.mrf.mxu0
          %v664 = vadd.f32 %v526, %v663
          %665 = vmatmul.f32.gmra.mxu0 %v537
          %v666 = vpop.f32.mrf.mxu0
          %v667 = vadd.f32 %v526, %v666
          %668 = vmatmul.f32.gmra.mxu0 %v540
          %v669 = vpop.f32.mrf.mxu0
          %v670 = vadd.f32 %v526, %v669
          %671 = vmatmul.f32.gmra.mxu0 %v543
          %v672 = vpop.f32.mrf.mxu0
          %v673 = vadd.f32 %v526, %v672
          %674 = vmatmul.f32.gmra.mxu0 %v546
          %v675 = vpop.f32.mrf.mxu0
          %v676 = vadd.f32 %v526, %v675
          %677 = vmatmul.f32.gmra.mxu0 %v549
          %v678 = vpop.f32.mrf.mxu0
          %v679 = vadd.f32 %v526, %v678
          %680 = vmatmul.f32.gmra.mxu0 %v552
          %v681 = vpop.f32.mrf.mxu0
          %v682 = vadd.f32 %v526, %v681
          %683 = vmatmul.f32.gmra.mxu0 %v555
          %v684 = vpop.f32.mrf.mxu0
          %v685 = vadd.f32 %v526, %v684
          %686 = vmatmul.f32.gmra.mxu0 %v558
          %v687 = vpop.f32.mrf.mxu0
          %v688 = vadd.f32 %v526, %v687
          %689 = vmatmul.f32.gmra.mxu0 %v561
          %v690 = vpop.f32.mrf.mxu0
          %v691 = vadd.f32 %v526, %v690
          %692 = vmatmul.f32.gmra.mxu0 %v564
          %v693 = vpop.f32.mrf.mxu0
          %v694 = vadd.f32 %v526, %v693
          %695 = vmatmul.f32.gmra.mxu0 %v567
          %v696 = vpop.f32.mrf.mxu0
          %v697 = vadd.f32 %v526, %v696
          %698 = vmatmul.f32.gmra.mxu0 %v570
          %v699 = vpop.f32.mrf.mxu0
          %v700 = vadd.f32 %v526, %v699
          %701 = vmatmul.f32.gmra.mxu0 %v573
          %v702 = vpop.f32.mrf.mxu0
          %v703 = vadd.f32 %v526, %v702
          %704 = vmatmul.f32.gmra.mxu0 %v576
          %v705 = vpop.f32.mrf.mxu0
          %v706 = vadd.f32 %v526, %v705
          %707 = vdwg.mxu0
          %v708 = vmax.f32 %v596, 0.0
          %v709 = vmax.f32 %v661, 0.0
          %v710 = vmax.f32 %v599, 0.0
          %v711 = vmax.f32 %v664, 0.0
          %v712 = vmax.f32 %v602, 0.0
          %v713 = vmax.f32 %v667, 0.0
          %v714 = vmax.f32 %v605, 0.0
          %v715 = vmax.f32 %v670, 0.0
          %v716 = vmax.f32 %v608, 0.0
          %v717 = vmax.f32 %v673, 0.0
          %v718 = vmax.f32 %v611, 0.0
          %v719 = vmax.f32 %v676, 0.0
          %v720 = vmax.f32 %v614, 0.0
          %v721 = vmax.f32 %v679, 0.0
          %v722 = vmax.f32 %v617, 0.0
          %v723 = vmax.f32 %v682, 0.0
          %v724 = vmax.f32 %v620, 0.0
          %v725 = vmax.f32 %v685, 0.0
          %v726 = vmax.f32 %v623, 0.0
          %v727 = vmax.f32 %v688, 0.0
          %v728 = vmax.f32 %v626, 0.0
          %v729 = vmax.f32 %v691, 0.0
          %v730 = vmax.f32 %v629, 0.0
          %v731 = vmax.f32 %v694, 0.0
          %v732 = vmax.f32 %v632, 0.0
          %v733 = vmax.f32 %v697, 0.0
          %v734 = vmax.f32 %v635, 0.0
          %v735 = vmax.f32 %v700, 0.0
          %v736 = vmax.f32 %v638, 0.0
          %v737 = vmax.f32 %v703, 0.0
          %v738 = vmax.f32 %v641, 0.0
          %v739 = vmax.f32 %v706, 0.0
          %v740 = vld [vmem:[%s5] sm:$0xff]
          %v741 = vld [vmem:[%s5 + $0x8] sm:$0xff]
          %v742 = vld [vmem:[%s5 + $0x10] sm:$0xff]
          %v743 = vld [vmem:[%s5 + $0x18] sm:$0xff]
          %v744 = vld [vmem:[%s5 + $0x20] sm:$0xff]
          %v745 = vld [vmem:[%s5 + $0x28] sm:$0xff]
          %v746 = vld [vmem:[%s5 + $0x30] sm:$0xff]
          %v747 = vld [vmem:[%s5 + $0x38] sm:$0xff]
          %v748 = vld [vmem:[%s5 + $0x40] sm:$0xff]
          %v749 = vld [vmem:[%s5 + $0x48] sm:$0xff]
          %v750 = vld [vmem:[%s5 + $0x50] sm:$0xff]
          %v751 = vld [vmem:[%s5 + $0x58] sm:$0xff]
          %v752 = vld [vmem:[%s5 + $0x60] sm:$0xff]
          %v753 = vld [vmem:[%s5 + $0x68] sm:$0xff]
          %v754 = vld [vmem:[%s5 + $0x70] sm:$0xff]
          %v755 = vld [vmem:[%s5 + $0x78] sm:$0xff]
          %v756 = vld [vmem:[%s5 + $0x80] sm:$0xff]
          %v757 = vld [vmem:[%s5 + $0x88] sm:$0xff]
          %v758 = vld [vmem:[%s5 + $0x90] sm:$0xff]
          %v759 = vld [vmem:[%s5 + $0x98] sm:$0xff]
          %v760 = vld [vmem:[%s5 + $0xa0] sm:$0xff]
          %v761 = vld [vmem:[%s5 + $0xa8] sm:$0xff]
          %v762 = vld [vmem:[%s6] sm:$0x1]
          %v764 = vperm.slane %v762, 0
          %vm766 = vcmask 392192
          %v768 = vsel %vm766, %v709, 0
          %v771 = vsel %vm766, %v711, 0
          %v774 = vsel %vm766, %v713, 0
          %v777 = vsel %vm766, %v715, 0
          %v780 = vsel %vm766, %v717, 0
          %v783 = vsel %vm766, %v719, 0
          %v786 = vsel %vm766, %v721, 0
          %v789 = vsel %vm766, %v723, 0
          %v792 = vsel %vm766, %v725, 0
          %v795 = vsel %vm766, %v727, 0
          %v798 = vsel %vm766, %v729, 0
          %v801 = vsel %vm766, %v731, 0
          %v804 = vsel %vm766, %v733, 0
          %v807 = vsel %vm766, %v735, 0
          %v810 = vsel %vm766, %v737, 0
          %v813 = vsel %vm766, %v739, 0
          %815 = vmatpush.msra.mxu0 %v755
          %816 = vmatpush.msra.mxu0 %v754
          %817 = vmatpush.msra.mxu0 %v753
          %818 = vmatpush.msra.mxu0 %v752
          %819 = vmatpush.msra.mxu0 %v751
          %820 = vmatpush.msra.mxu0 %v750
          %821 = vmatpush.msra.mxu0 %v749
          %822 = vmatpush.msra.mxu0 %v748
          %823 = vmatpush.msra.mxu0 %v747
          %824 = vmatpush.msra.mxu0 %v746
          %825 = vmatpush.msra.mxu0 %v745
          %826 = vmatpush.msra.mxu0 %v744
          %827 = vmatpush.msra.mxu0 %v743
          %828 = vmatpush.msra.mxu0 %v742
          %829 = vmatpush.msra.mxu0 %v741
          %830 = vmatpush.msra.mxu0 %v740
          %831 = vmatmul.f32.gmra.mxu0 %v708
          %v832 = vpop.f32.mrf.mxu0
          %v833 = vadd.f32 %v764, %v832
          %834 = vmatmul.f32.gmra.mxu0 %v710
          %v835 = vpop.f32.mrf.mxu0
          %v836 = vadd.f32 %v764, %v835
          %837 = vmatmul.f32.gmra.mxu0 %v712
          %v838 = vpop.f32.mrf.mxu0
          %v839 = vadd.f32 %v764, %v838
          %840 = vmatmul.f32.gmra.mxu0 %v714
          %v841 = vpop.f32.mrf.mxu0
          %v842 = vadd.f32 %v764, %v841
          %843 = vmatmul.f32.gmra.mxu0 %v716
          %v844 = vpop.f32.mrf.mxu0
          %v845 = vadd.f32 %v764, %v844
          %846 = vmatmul.f32.gmra.mxu0 %v718
          %v847 = vpop.f32.mrf.mxu0
          %v848 = vadd.f32 %v764, %v847
          %849 = vmatmul.f32.gmra.mxu0 %v720
          %v850 = vpop.f32.mrf.mxu0
          %v851 = vadd.f32 %v764, %v850
          %852 = vmatmul.f32.gmra.mxu0 %v722
          %v853 = vpop.f32.mrf.mxu0
          %v854 = vadd.f32 %v764, %v853
          %855 = vmatmul.f32.gmra.mxu0 %v724
          %v856 = vpop.f32.mrf.mxu0
          %v857 = vadd.f32 %v764, %v856
          %858 = vmatmul.f32.gmra.mxu0 %v726
          %v859 = vpop.f32.mrf.mxu0
          %v860 = vadd.f32 %v764, %v859
          %861 = vmatmul.f32.gmra.mxu0 %v728
          %v862 = vpop.f32.mrf.mxu0
          %v863 = vadd.f32 %v764, %v862
          %864 = vmatmul.f32.gmra.mxu0 %v730
          %v865 = vpop.f32.mrf.mxu0
          %v866 = vadd.f32 %v764, %v865
          %867 = vmatmul.f32.gmra.mxu0 %v732
          %v868 = vpop.f32.mrf.mxu0
          %v869 = vadd.f32 %v764, %v868
          %870 = vmatmul.f32.gmra.mxu0 %v734
          %v871 = vpop.f32.mrf.mxu0
          %v872 = vadd.f32 %v764, %v871
          %873 = vmatmul.f32.gmra.mxu0 %v736
          %v874 = vpop.f32.mrf.mxu0
          %v875 = vadd.f32 %v764, %v874
          %876 = vmatmul.f32.gmra.mxu0 %v738
          %v877 = vpop.f32.mrf.mxu0
          %v878 = vadd.f32 %v764, %v877
          %879 = vdwg.mxu0
          %880 = vmatpush.msra.mxu0 0.0
          %881 = vmatpush.msra.mxu0 0.0
          %882 = vmatpush.msra.mxu0 0.0
          %883 = vmatpush.msra.mxu0 0.0
          %884 = vmatpush.msra.mxu0 0.0
          %885 = vmatpush.msra.mxu0 0.0
          %886 = vmatpush.msra.mxu0 0.0
          %887 = vmatpush.msra.mxu0 0.0
          %888 = vmatpush.msra.mxu0 0.0
          %889 = vmatpush.msra.mxu0 0.0
          %890 = vmatpush.msra.mxu0 %v761
          %891 = vmatpush.msra.mxu0 %v760
          %892 = vmatpush.msra.mxu0 %v759
          %893 = vmatpush.msra.mxu0 %v758
          %894 = vmatpush.msra.mxu0 %v757
          %895 = vmatpush.msra.mxu0 %v756
          %896 = vmatmul.f32.gmra.mxu0 %v768
          %v897 = vpop.f32.mrf.mxu0
          %v898 = vadd.f32 %v833, %v897
          %899 = vmatmul.f32.gmra.mxu0 %v771
          %v900 = vpop.f32.mrf.mxu0
          %v901 = vadd.f32 %v836, %v900
          %902 = vmatmul.f32.gmra.mxu0 %v774
          %v903 = vpop.f32.mrf.mxu0
          %v904 = vadd.f32 %v839, %v903
          %905 = vmatmul.f32.gmra.mxu0 %v777
          %v906 = vpop.f32.mrf.mxu0
          %v907 = vadd.f32 %v842, %v906
          %908 = vmatmul.f32.gmra.mxu0 %v780
          %v909 = vpop.f32.mrf.mxu0
          %v910 = vadd.f32 %v845, %v909
          %911 = vmatmul.f32.gmra.mxu0 %v783
          %v912 = vpop.f32.mrf.mxu0
          %v913 = vadd.f32 %v848, %v912
          %914 = vmatmul.f32.gmra.mxu0 %v786
          %v915 = vpop.f32.mrf.mxu0
          %v916 = vadd.f32 %v851, %v915
          %917 = vmatmul.f32.gmra.mxu0 %v789
          %v918 = vpop.f32.mrf.mxu0
          %v919 = vadd.f32 %v854, %v918
          %920 = vmatmul.f32.gmra.mxu0 %v792
          %v921 = vpop.f32.mrf.mxu0
          %v922 = vadd.f32 %v857, %v921
          %923 = vmatmul.f32.gmra.mxu0 %v795
          %v924 = vpop.f32.mrf.mxu0
          %v925 = vadd.f32 %v860, %v924
          %926 = vmatmul.f32.gmra.mxu0 %v798
          %v927 = vpop.f32.mrf.mxu0
          %v928 = vadd.f32 %v863, %v927
          %929 = vmatmul.f32.gmra.mxu0 %v801
          %v930 = vpop.f32.mrf.mxu0
          %v931 = vadd.f32 %v866, %v930
          %932 = vmatmul.f32.gmra.mxu0 %v804
          %v933 = vpop.f32.mrf.mxu0
          %v934 = vadd.f32 %v869, %v933
          %935 = vmatmul.f32.gmra.mxu0 %v807
          %v936 = vpop.f32.mrf.mxu0
          %v937 = vadd.f32 %v872, %v936
          %938 = vmatmul.f32.gmra.mxu0 %v810
          %v939 = vpop.f32.mrf.mxu0
          %v940 = vadd.f32 %v875, %v939
          %941 = vmatmul.f32.gmra.mxu0 %v813
          %v942 = vpop.f32.mrf.mxu0
          %v943 = vadd.f32 %v878, %v942
          %944 = vdwg.mxu0
          %vm945 = vcmask 523264
          %946 = vst.msk [vmem:[#allocation2] sm:$0xff] %vm945, %v898
          %947 = vst.msk [vmem:[#allocation2 + $0x8] sm:$0xff] %vm945, %v901
          %948 = vst.msk [vmem:[#allocation2 + $0x10] sm:$0xff] %vm945, %v904
          %949 = vst.msk [vmem:[#allocation2 + $0x18] sm:$0xff] %vm945, %v907
          %950 = vst.msk [vmem:[#allocation2 + $0x20] sm:$0xff] %vm945, %v910
          %951 = vst.msk [vmem:[#allocation2 + $0x28] sm:$0xff] %vm945, %v913
          %952 = vst.msk [vmem:[#allocation2 + $0x30] sm:$0xff] %vm945, %v916
          %953 = vst.msk [vmem:[#allocation2 + $0x38] sm:$0xff] %vm945, %v919
          %954 = vst.msk [vmem:[#allocation2 + $0x40] sm:$0xff] %vm945, %v922
          %955 = vst.msk [vmem:[#allocation2 + $0x48] sm:$0xff] %vm945, %v925
          %956 = vst.msk [vmem:[#allocation2 + $0x50] sm:$0xff] %vm945, %v928
          %957 = vst.msk [vmem:[#allocation2 + $0x58] sm:$0xff] %vm945, %v931
          %958 = vst.msk [vmem:[#allocation2 + $0x60] sm:$0xff] %vm945, %v934
          %959 = vst.msk [vmem:[#allocation2 + $0x68] sm:$0xff] %vm945, %v937
          %960 = vst.msk [vmem:[#allocation2 + $0x70] sm:$0xff] %vm945, %v940
          %961 = vst.msk [vmem:[#allocation2 + $0x78] sm:$0xff] %vm945, %v943
          %978 = vrot.lane.b32.xlu0 %v898, 64
          %v979 = vpop.permute.xlu0 %978
          %980 = vrot.lane.b32.xlu0 %v901, 64
          %v981 = vpop.permute.xlu0 %980
          %982 = vrot.lane.b32.xlu0 %v904, 64
          %v983 = vpop.permute.xlu0 %982
          %984 = vrot.lane.b32.xlu0 %v907, 64
          %v985 = vpop.permute.xlu0 %984
          %986 = vrot.lane.b32.xlu0 %v910, 64
          %v987 = vpop.permute.xlu0 %986
          %988 = vrot.lane.b32.xlu0 %v913, 64
          %v989 = vpop.permute.xlu0 %988
          %990 = vrot.lane.b32.xlu0 %v916, 64
          %v991 = vpop.permute.xlu0 %990
          %992 = vrot.lane.b32.xlu0 %v919, 64
          %v993 = vpop.permute.xlu0 %992
          %994 = vrot.lane.b32.xlu0 %v922, 64
          %v995 = vpop.permute.xlu0 %994
          %996 = vrot.lane.b32.xlu0 %v925, 64
          %v997 = vpop.permute.xlu0 %996
          %998 = vrot.lane.b32.xlu0 %v928, 64
          %v999 = vpop.permute.xlu0 %998
          %1000 = vrot.lane.b32.xlu0 %v931, 64
          %v1001 = vpop.permute.xlu0 %1000
          %1002 = vrot.lane.b32.xlu0 %v934, 64
          %v1003 = vpop.permute.xlu0 %1002
          %1004 = vrot.lane.b32.xlu0 %v937, 64
          %v1005 = vpop.permute.xlu0 %1004
          %1006 = vrot.lane.b32.xlu0 %v940, 64
          %v1007 = vpop.permute.xlu0 %1006
          %1008 = vrot.lane.b32.xlu0 %v943, 64
          %v1009 = vpop.permute.xlu0 %1008
          %vm1026 = vcmask 39936
          %1027 = vst.msk [vmem:[#allocation3] sm:$0xff] %vm1026, %v979
          %1028 = vst.msk [vmem:[#allocation3 + $0x8] sm:$0xff] %vm1026, %v981
          %1029 = vst.msk [vmem:[#allocation3 + $0x10] sm:$0xff] %vm1026, %v983
          %1030 = vst.msk [vmem:[#allocation3 + $0x18] sm:$0xff] %vm1026, %v985
          %1031 = vst.msk [vmem:[#allocation3 + $0x20] sm:$0xff] %vm1026, %v987
          %1032 = vst.msk [vmem:[#allocation3 + $0x28] sm:$0xff] %vm1026, %v989
          %1033 = vst.msk [vmem:[#allocation3 + $0x30] sm:$0xff] %vm1026, %v991
          %1034 = vst.msk [vmem:[#allocation3 + $0x38] sm:$0xff] %vm1026, %v993
          %1035 = vst.msk [vmem:[#allocation3 + $0x40] sm:$0xff] %vm1026, %v995
          %1036 = vst.msk [vmem:[#allocation3 + $0x48] sm:$0xff] %vm1026, %v997
          %1037 = vst.msk [vmem:[#allocation3 + $0x50] sm:$0xff] %vm1026, %v999
          %1038 = vst.msk [vmem:[#allocation3 + $0x58] sm:$0xff] %vm1026, %v1001
          %1039 = vst.msk [vmem:[#allocation3 + $0x60] sm:$0xff] %vm1026, %v1003
          %1040 = vst.msk [vmem:[#allocation3 + $0x68] sm:$0xff] %vm1026, %v1005
          %1041 = vst.msk [vmem:[#allocation3 + $0x70] sm:$0xff] %vm1026, %v1007
          %1042 = vst.msk [vmem:[#allocation3 + $0x78] sm:$0xff] %vm1026, %v1009
          %vm1043 = vcmask 31744
          %1044 = vst.msk [vmem:[#allocation4] sm:$0xff] %vm1043, -inf
          %1045 = vst.msk [vmem:[#allocation4 + $0x8] sm:$0xff] %vm1043, -inf
          %1046 = vst.msk [vmem:[#allocation4 + $0x10] sm:$0xff] %vm1043, -inf
          %1047 = vst.msk [vmem:[#allocation4 + $0x18] sm:$0xff] %vm1043, -inf
          %1048 = vst.msk [vmem:[#allocation4 + $0x20] sm:$0xff] %vm1043, -inf
          %1049 = vst.msk [vmem:[#allocation4 + $0x28] sm:$0xff] %vm1043, -inf
          %1050 = vst.msk [vmem:[#allocation4 + $0x30] sm:$0xff] %vm1043, -inf
          %1051 = vst.msk [vmem:[#allocation4 + $0x38] sm:$0xff] %vm1043, -inf
          %1052 = vst.msk [vmem:[#allocation4 + $0x40] sm:$0xff] %vm1043, -inf
          %1053 = vst.msk [vmem:[#allocation4 + $0x48] sm:$0xff] %vm1043, -inf
          %1054 = vst.msk [vmem:[#allocation4 + $0x50] sm:$0xff] %vm1043, -inf
          %1055 = vst.msk [vmem:[#allocation4 + $0x58] sm:$0xff] %vm1043, -inf
          %1056 = vst.msk [vmem:[#allocation4 + $0x60] sm:$0xff] %vm1043, -inf
          %1057 = vst.msk [vmem:[#allocation4 + $0x68] sm:$0xff] %vm1043, -inf
          %1058 = vst.msk [vmem:[#allocation4 + $0x70] sm:$0xff] %vm1043, -inf
          %1059 = vst.msk [vmem:[#allocation4 + $0x78] sm:$0xff] %vm1043, -inf
          %1060 = vst.msk [vmem:[#allocation5] sm:$0xff] %vm1043, 0.0
          %1061 = vst.msk [vmem:[#allocation5 + $0x8] sm:$0xff] %vm1043, 0.0
          %1062 = vst.msk [vmem:[#allocation5 + $0x10] sm:$0xff] %vm1043, 0.0
          %1063 = vst.msk [vmem:[#allocation5 + $0x18] sm:$0xff] %vm1043, 0.0
          %1064 = vst.msk [vmem:[#allocation5 + $0x20] sm:$0xff] %vm1043, 0.0
          %1065 = vst.msk [vmem:[#allocation5 + $0x28] sm:$0xff] %vm1043, 0.0
          %1066 = vst.msk [vmem:[#allocation5 + $0x30] sm:$0xff] %vm1043, 0.0
          %1067 = vst.msk [vmem:[#allocation5 + $0x38] sm:$0xff] %vm1043, 0.0
          %1068 = vst.msk [vmem:[#allocation5 + $0x40] sm:$0xff] %vm1043, 0.0
          %1069 = vst.msk [vmem:[#allocation5 + $0x48] sm:$0xff] %vm1043, 0.0
          %1070 = vst.msk [vmem:[#allocation5 + $0x50] sm:$0xff] %vm1043, 0.0
          %1071 = vst.msk [vmem:[#allocation5 + $0x58] sm:$0xff] %vm1043, 0.0
          %1072 = vst.msk [vmem:[#allocation5 + $0x60] sm:$0xff] %vm1043, 0.0
          %1073 = vst.msk [vmem:[#allocation5 + $0x68] sm:$0xff] %vm1043, 0.0
          %1074 = vst.msk [vmem:[#allocation5 + $0x70] sm:$0xff] %vm1043, 0.0
          %1075 = vst.msk [vmem:[#allocation5 + $0x78] sm:$0xff] %vm1043, 0.0
          %1076 = vst.msk [vmem:[#allocation6] sm:$0xff] %vm1043, 0.0
          %1077 = vst.msk [vmem:[#allocation6 + $0x8] sm:$0xff] %vm1043, 0.0
          %1078 = vst.msk [vmem:[#allocation6 + $0x10] sm:$0xff] %vm1043, 0.0
          %1079 = vst.msk [vmem:[#allocation6 + $0x18] sm:$0xff] %vm1043, 0.0
          %1080 = vst.msk [vmem:[#allocation6 + $0x20] sm:$0xff] %vm1043, 0.0
          %1081 = vst.msk [vmem:[#allocation6 + $0x28] sm:$0xff] %vm1043, 0.0
          %1082 = vst.msk [vmem:[#allocation6 + $0x30] sm:$0xff] %vm1043, 0.0
          %1083 = vst.msk [vmem:[#allocation6 + $0x38] sm:$0xff] %vm1043, 0.0
          %1084 = vst.msk [vmem:[#allocation6 + $0x40] sm:$0xff] %vm1043, 0.0
          %1085 = vst.msk [vmem:[#allocation6 + $0x48] sm:$0xff] %vm1043, 0.0
          %1086 = vst.msk [vmem:[#allocation6 + $0x50] sm:$0xff] %vm1043, 0.0
          %1087 = vst.msk [vmem:[#allocation6 + $0x58] sm:$0xff] %vm1043, 0.0
          %1088 = vst.msk [vmem:[#allocation6 + $0x60] sm:$0xff] %vm1043, 0.0
          %1089 = vst.msk [vmem:[#allocation6 + $0x68] sm:$0xff] %vm1043, 0.0
          %1090 = vst.msk [vmem:[#allocation6 + $0x70] sm:$0xff] %vm1043, 0.0
          %1091 = vst.msk [vmem:[#allocation6 + $0x78] sm:$0xff] %vm1043, 0.0
        $region72: #{tpu_custom_call.1} parent=67 // pred_fallthru
          _
        %v1092 = vld [vmem:[%s485] sm:$0xff]
        %v1093 = vld [vmem:[%s485 + $0x8] sm:$0xff]
        %v1094 = vld [vmem:[%s485 + $0x10] sm:$0xff]
        %v1095 = vld [vmem:[%s485 + $0x18] sm:$0xff]
        %v1096 = vld [vmem:[%s485 + $0x20] sm:$0xff]
        %v1097 = vld [vmem:[%s485 + $0x28] sm:$0xff]
        %v1098 = vld [vmem:[%s485 + $0x30] sm:$0xff]
        %v1099 = vld [vmem:[%s485 + $0x38] sm:$0xff]
        %v1100 = vld [vmem:[%s485 + $0x40] sm:$0xff]
        %v1101 = vld [vmem:[%s485 + $0x48] sm:$0xff]
        %v1102 = vld [vmem:[%s485 + $0x50] sm:$0xff]
        %v1103 = vld [vmem:[%s485 + $0x58] sm:$0xff]
        %v1104 = vld [vmem:[%s485 + $0x60] sm:$0xff]
        %v1105 = vld [vmem:[%s485 + $0x68] sm:$0xff]
        %v1106 = vld [vmem:[%s485 + $0x70] sm:$0xff]
        %v1107 = vld [vmem:[%s485 + $0x78] sm:$0xff]
        %v1108 = vld [vmem:[%s7] sm:$0xff]
        %v1109 = vld [vmem:[%s7 + $0x8] sm:$0xff]
        %v1110 = vld [vmem:[%s8] sm:$0x1]
        %v1112 = vperm.slane %v1110, 0
        %vm1114 = vcmask 130048
        %v1116 = vsel %vm1114, %v1092, 0
        %v1119 = vsel %vm1114, %v1093, 0
        %v1122 = vsel %vm1114, %v1094, 0
        %v1125 = vsel %vm1114, %v1095, 0
        %v1128 = vsel %vm1114, %v1096, 0
        %v1131 = vsel %vm1114, %v1097, 0
        %v1134 = vsel %vm1114, %v1098, 0
        %v1137 = vsel %vm1114, %v1099, 0
        %v1140 = vsel %vm1114, %v1100, 0
        %v1143 = vsel %vm1114, %v1101, 0
        %v1146 = vsel %vm1114, %v1102, 0
        %v1149 = vsel %vm1114, %v1103, 0
        %v1152 = vsel %vm1114, %v1104, 0
        %v1155 = vsel %vm1114, %v1105, 0
        %v1158 = vsel %vm1114, %v1106, 0
        %v1161 = vsel %vm1114, %v1107, 0
        %1163 = vmatpush.msra.mxu0 0.0
        %1164 = vmatpush.msra.mxu0 0.0
        %1165 = vmatpush.msra.mxu0 0.0
        %1166 = vmatpush.msra.mxu0 0.0
        %1167 = vmatpush.msra.mxu0 0.0
        %1168 = vmatpush.msra.mxu0 0.0
        %1169 = vmatpush.msra.mxu0 0.0
        %1170 = vmatpush.msra.mxu0 0.0
        %1171 = vmatpush.msra.mxu0 0.0
        %1172 = vmatpush.msra.mxu0 0.0
        %1173 = vmatpush.msra.mxu0 0.0
        %1174 = vmatpush.msra.mxu0 0.0
        %1175 = vmatpush.msra.mxu0 0.0
        %1176 = vmatpush.msra.mxu0 0.0
        %1177 = vmatpush.msra.mxu0 %v1109
        %1178 = vmatpush.msra.mxu0 %v1108
        %1179 = vmatmul.f32.gmra.mxu0 %v1116
        %v1180 = vpop.f32.mrf.mxu0
        %v1181 = vadd.f32 %v1112, %v1180
        %1182 = vmatmul.f32.gmra.mxu0 %v1119
        %v1183 = vpop.f32.mrf.mxu0
        %v1184 = vadd.f32 %v1112, %v1183
        %1185 = vmatmul.f32.gmra.mxu0 %v1122
        %v1186 = vpop.f32.mrf.mxu0
        %v1187 = vadd.f32 %v1112, %v1186
        %1188 = vmatmul.f32.gmra.mxu0 %v1125
        %v1189 = vpop.f32.mrf.mxu0
        %v1190 = vadd.f32 %v1112, %v1189
        %1191 = vmatmul.f32.gmra.mxu0 %v1128
        %v1192 = vpop.f32.mrf.mxu0
        %v1193 = vadd.f32 %v1112, %v1192
        %1194 = vmatmul.f32.gmra.mxu0 %v1131
        %v1195 = vpop.f32.mrf.mxu0
        %v1196 = vadd.f32 %v1112, %v1195
        %1197 = vmatmul.f32.gmra.mxu0 %v1134
        %v1198 = vpop.f32.mrf.mxu0
        %v1199 = vadd.f32 %v1112, %v1198
        %1200 = vmatmul.f32.gmra.mxu0 %v1137
        %v1201 = vpop.f32.mrf.mxu0
        %v1202 = vadd.f32 %v1112, %v1201
        %1203 = vmatmul.f32.gmra.mxu0 %v1140
        %v1204 = vpop.f32.mrf.mxu0
        %v1205 = vadd.f32 %v1112, %v1204
        %1206 = vmatmul.f32.gmra.mxu0 %v1143
        %v1207 = vpop.f32.mrf.mxu0
        %v1208 = vadd.f32 %v1112, %v1207
        %1209 = vmatmul.f32.gmra.mxu0 %v1146
        %v1210 = vpop.f32.mrf.mxu0
        %v1211 = vadd.f32 %v1112, %v1210
        %1212 = vmatmul.f32.gmra.mxu0 %v1149
        %v1213 = vpop.f32.mrf.mxu0
        %v1214 = vadd.f32 %v1112, %v1213
        %1215 = vmatmul.f32.gmra.mxu0 %v1152
        %v1216 = vpop.f32.mrf.mxu0
        %v1217 = vadd.f32 %v1112, %v1216
        %1218 = vmatmul.f32.gmra.mxu0 %v1155
        %v1219 = vpop.f32.mrf.mxu0
        %v1220 = vadd.f32 %v1112, %v1219
        %1221 = vmatmul.f32.gmra.mxu0 %v1158
        %v1222 = vpop.f32.mrf.mxu0
        %v1223 = vadd.f32 %v1112, %v1222
        %1224 = vmatmul.f32.gmra.mxu0 %v1161
        %v1225 = vpop.f32.mrf.mxu0
        %v1226 = vadd.f32 %v1112, %v1225
        %1227 = vdwg.mxu0
        %v1228 = vmax.f32 %v1181, 0.0
        %v1229 = vmax.f32 %v1184, 0.0
        %v1230 = vmax.f32 %v1187, 0.0
        %v1231 = vmax.f32 %v1190, 0.0
        %v1232 = vmax.f32 %v1193, 0.0
        %v1233 = vmax.f32 %v1196, 0.0
        %v1234 = vmax.f32 %v1199, 0.0
        %v1235 = vmax.f32 %v1202, 0.0
        %v1236 = vmax.f32 %v1205, 0.0
        %v1237 = vmax.f32 %v1208, 0.0
        %v1238 = vmax.f32 %v1211, 0.0
        %v1239 = vmax.f32 %v1214, 0.0
        %v1240 = vmax.f32 %v1217, 0.0
        %v1241 = vmax.f32 %v1220, 0.0
        %v1242 = vmax.f32 %v1223, 0.0
        %v1243 = vmax.f32 %v1226, 0.0
        %v1244 = vld [vmem:[%s9] sm:$0xff]
        %v1245 = vld [vmem:[%s9 + $0x8] sm:$0xff]
        %v1246 = vld [vmem:[%s9 + $0x10] sm:$0xff]
        %v1247 = vld [vmem:[%s9 + $0x18] sm:$0xff]
        %v1248 = vld [vmem:[%s9 + $0x20] sm:$0xff]
        %v1249 = vld [vmem:[%s9 + $0x28] sm:$0xff]
        %v1250 = vld [vmem:[%s9 + $0x30] sm:$0xff]
        %v1251 = vld [vmem:[%s9 + $0x38] sm:$0xff]
        %v1252 = vld [vmem:[%s9 + $0x40] sm:$0xff]
        %v1253 = vld [vmem:[%s9 + $0x48] sm:$0xff]
        %v1254 = vld [vmem:[%s9 + $0x50] sm:$0xff]
        %v1255 = vld [vmem:[%s9 + $0x58] sm:$0xff]
        %v1256 = vld [vmem:[%s9 + $0x60] sm:$0xff]
        %v1257 = vld [vmem:[%s9 + $0x68] sm:$0xff]
        %v1258 = vld [vmem:[%s9 + $0x70] sm:$0xff]
        %v1259 = vld [vmem:[%s9 + $0x78] sm:$0xff]
        %v1260 = vld [vmem:[%s10] sm:$0x1]
        %v1262 = vperm.slane %v1260, 0
        %1264 = vmatpush.msra.mxu0 %v1259
        %1265 = vmatpush.msra.mxu0 %v1258
        %1266 = vmatpush.msra.mxu0 %v1257
        %1267 = vmatpush.msra.mxu0 %v1256
        %1268 = vmatpush.msra.mxu0 %v1255
        %1269 = vmatpush.msra.mxu0 %v1254
        %1270 = vmatpush.msra.mxu0 %v1253
        %1271 = vmatpush.msra.mxu0 %v1252
        %1272 = vmatpush.msra.mxu0 %v1251
        %1273 = vmatpush.msra.mxu0 %v1250
        %1274 = vmatpush.msra.mxu0 %v1249
        %1275 = vmatpush.msra.mxu0 %v1248
        %1276 = vmatpush.msra.mxu0 %v1247
        %1277 = vmatpush.msra.mxu0 %v1246
        %1278 = vmatpush.msra.mxu0 %v1245
        %1279 = vmatpush.msra.mxu0 %v1244
        %1280 = vmatmul.f32.gmra.mxu0 %v1228
        %v1281 = vpop.f32.mrf.mxu0
        %v1282 = vadd.f32 %v1262, %v1281
        %1283 = vmatmul.f32.gmra.mxu0 %v1229
        %v1284 = vpop.f32.mrf.mxu0
        %v1285 = vadd.f32 %v1262, %v1284
        %1286 = vmatmul.f32.gmra.mxu0 %v1230
        %v1287 = vpop.f32.mrf.mxu0
        %v1288 = vadd.f32 %v1262, %v1287
        %1289 = vmatmul.f32.gmra.mxu0 %v1231
        %v1290 = vpop.f32.mrf.mxu0
        %v1291 = vadd.f32 %v1262, %v1290
        %1292 = vmatmul.f32.gmra.mxu0 %v1232
        %v1293 = vpop.f32.mrf.mxu0
        %v1294 = vadd.f32 %v1262, %v1293
        %1295 = vmatmul.f32.gmra.mxu0 %v1233
        %v1296 = vpop.f32.mrf.mxu0
        %v1297 = vadd.f32 %v1262, %v1296
        %1298 = vmatmul.f32.gmra.mxu0 %v1234
        %v1299 = vpop.f32.mrf.mxu0
        %v1300 = vadd.f32 %v1262, %v1299
        %1301 = vmatmul.f32.gmra.mxu0 %v1235
        %v1302 = vpop.f32.mrf.mxu0
        %v1303 = vadd.f32 %v1262, %v1302
        %1304 = vmatmul.f32.gmra.mxu0 %v1236
        %v1305 = vpop.f32.mrf.mxu0
        %v1306 = vadd.f32 %v1262, %v1305
        %1307 = vmatmul.f32.gmra.mxu0 %v1237
        %v1308 = vpop.f32.mrf.mxu0
        %v1309 = vadd.f32 %v1262, %v1308
        %1310 = vmatmul.f32.gmra.mxu0 %v1238
        %v1311 = vpop.f32.mrf.mxu0
        %v1312 = vadd.f32 %v1262, %v1311
        %1313 = vmatmul.f32.gmra.mxu0 %v1239
        %v1314 = vpop.f32.mrf.mxu0
        %v1315 = vadd.f32 %v1262, %v1314
        %1316 = vmatmul.f32.gmra.mxu0 %v1240
        %v1317 = vpop.f32.mrf.mxu0
        %v1318 = vadd.f32 %v1262, %v1317
        %1319 = vmatmul.f32.gmra.mxu0 %v1241
        %v1320 = vpop.f32.mrf.mxu0
        %v1321 = vadd.f32 %v1262, %v1320
        %1322 = vmatmul.f32.gmra.mxu0 %v1242
        %v1323 = vpop.f32.mrf.mxu0
        %v1324 = vadd.f32 %v1262, %v1323
        %1325 = vmatmul.f32.gmra.mxu0 %v1243
        %v1326 = vpop.f32.mrf.mxu0
        %v1327 = vadd.f32 %v1262, %v1326
        %1328 = vdwg.mxu0
        %v1329 = vld [vmem:[#allocation2] sm:$0xff]
        %v1330 = vld [vmem:[#allocation2 + $0x8] sm:$0xff]
        %v1331 = vld [vmem:[#allocation2 + $0x10] sm:$0xff]
        %v1332 = vld [vmem:[#allocation2 + $0x18] sm:$0xff]
        %v1333 = vld [vmem:[#allocation2 + $0x20] sm:$0xff]
        %v1334 = vld [vmem:[#allocation2 + $0x28] sm:$0xff]
        %v1335 = vld [vmem:[#allocation2 + $0x30] sm:$0xff]
        %v1336 = vld [vmem:[#allocation2 + $0x38] sm:$0xff]
        %v1337 = vld [vmem:[#allocation2 + $0x40] sm:$0xff]
        %v1338 = vld [vmem:[#allocation2 + $0x48] sm:$0xff]
        %v1339 = vld [vmem:[#allocation2 + $0x50] sm:$0xff]
        %v1340 = vld [vmem:[#allocation2 + $0x58] sm:$0xff]
        %v1341 = vld [vmem:[#allocation2 + $0x60] sm:$0xff]
        %v1342 = vld [vmem:[#allocation2 + $0x68] sm:$0xff]
        %v1343 = vld [vmem:[#allocation2 + $0x70] sm:$0xff]
        %v1344 = vld [vmem:[#allocation2 + $0x78] sm:$0xff]
        %v1345 = vmul.f32 %v1282, %v1329
        %v1346 = vmul.f32 %v1285, %v1330
        %v1347 = vmul.f32 %v1288, %v1331
        %v1348 = vmul.f32 %v1291, %v1332
        %v1349 = vmul.f32 %v1294, %v1333
        %v1350 = vmul.f32 %v1297, %v1334
        %v1351 = vmul.f32 %v1300, %v1335
        %v1352 = vmul.f32 %v1303, %v1336
        %v1353 = vmul.f32 %v1306, %v1337
        %v1354 = vmul.f32 %v1309, %v1338
        %v1355 = vmul.f32 %v1312, %v1339
        %v1356 = vmul.f32 %v1315, %v1340
        %v1357 = vmul.f32 %v1318, %v1341
        %v1358 = vmul.f32 %v1321, %v1342
        %v1359 = vmul.f32 %v1324, %v1343
        %v1360 = vmul.f32 %v1327, %v1344
        %v1361 = vld [vmem:[%s11] sm:$0xff]
        %v1362 = vld [vmem:[%s11 + $0x8] sm:$0xff]
        %v1363 = vld [vmem:[%s11 + $0x10] sm:$0xff]
        %v1364 = vld [vmem:[%s11 + $0x18] sm:$0xff]
        %v1365 = vld [vmem:[%s11 + $0x20] sm:$0xff]
        %v1366 = vld [vmem:[%s11 + $0x28] sm:$0xff]
        %v1367 = vld [vmem:[%s11 + $0x30] sm:$0xff]
        %v1368 = vld [vmem:[%s11 + $0x38] sm:$0xff]
        %vm1369 = vcmask 523264
        %v1371 = vsel %vm1369, %v1345, 0
        %v1374 = vsel %vm1369, %v1346, 0
        %v1377 = vsel %vm1369, %v1347, 0
        %v1380 = vsel %vm1369, %v1348, 0
        %v1383 = vsel %vm1369, %v1349, 0
        %v1386 = vsel %vm1369, %v1350, 0
        %v1389 = vsel %vm1369, %v1351, 0
        %v1392 = vsel %vm1369, %v1352, 0
        %v1395 = vsel %vm1369, %v1353, 0
        %v1398 = vsel %vm1369, %v1354, 0
        %v1401 = vsel %vm1369, %v1355, 0
        %v1404 = vsel %vm1369, %v1356, 0
        %v1407 = vsel %vm1369, %v1357, 0
        %v1410 = vsel %vm1369, %v1358, 0
        %v1413 = vsel %vm1369, %v1359, 0
        %v1416 = vsel %vm1369, %v1360, 0
        %1418 = vmatpush.msra.mxu0 0.0
        %1419 = vmatpush.msra.mxu0 0.0
        %1420 = vmatpush.msra.mxu0 0.0
        %1421 = vmatpush.msra.mxu0 0.0
        %1422 = vmatpush.msra.mxu0 0.0
        %1423 = vmatpush.msra.mxu0 0.0
        %1424 = vmatpush.msra.mxu0 0.0
        %1425 = vmatpush.msra.mxu0 0.0
        %1426 = vmatpush.msra.mxu0 %v1368
        %1427 = vmatpush.msra.mxu0 %v1367
        %1428 = vmatpush.msra.mxu0 %v1366
        %1429 = vmatpush.msra.mxu0 %v1365
        %1430 = vmatpush.msra.mxu0 %v1364
        %1431 = vmatpush.msra.mxu0 %v1363
        %1432 = vmatpush.msra.mxu0 %v1362
        %1433 = vmatpush.msra.mxu0 %v1361
        %1434 = vmatmul.f32.gmra.mxu0 %v1371
        %v1435 = vpop.f32.mrf.mxu0
        %v1436 = vadd.f32 0.0, %v1435
        %1437 = vmatmul.f32.gmra.mxu0 %v1374
        %v1438 = vpop.f32.mrf.mxu0
        %v1439 = vadd.f32 0.0, %v1438
        %1440 = vmatmul.f32.gmra.mxu0 %v1377
        %v1441 = vpop.f32.mrf.mxu0
        %v1442 = vadd.f32 0.0, %v1441
        %1443 = vmatmul.f32.gmra.mxu0 %v1380
        %v1444 = vpop.f32.mrf.mxu0
        %v1445 = vadd.f32 0.0, %v1444
        %1446 = vmatmul.f32.gmra.mxu0 %v1383
        %v1447 = vpop.f32.mrf.mxu0
        %v1448 = vadd.f32 0.0, %v1447
        %1449 = vmatmul.f32.gmra.mxu0 %v1386
        %v1450 = vpop.f32.mrf.mxu0
        %v1451 = vadd.f32 0.0, %v1450
        %1452 = vmatmul.f32.gmra.mxu0 %v1389
        %v1453 = vpop.f32.mrf.mxu0
        %v1454 = vadd.f32 0.0, %v1453
        %1455 = vmatmul.f32.gmra.mxu0 %v1392
        %v1456 = vpop.f32.mrf.mxu0
        %v1457 = vadd.f32 0.0, %v1456
        %1458 = vmatmul.f32.gmra.mxu0 %v1395
        %v1459 = vpop.f32.mrf.mxu0
        %v1460 = vadd.f32 0.0, %v1459
        %1461 = vmatmul.f32.gmra.mxu0 %v1398
        %v1462 = vpop.f32.mrf.mxu0
        %v1463 = vadd.f32 0.0, %v1462
        %1464 = vmatmul.f32.gmra.mxu0 %v1401
        %v1465 = vpop.f32.mrf.mxu0
        %v1466 = vadd.f32 0.0, %v1465
        %1467 = vmatmul.f32.gmra.mxu0 %v1404
        %v1468 = vpop.f32.mrf.mxu0
        %v1469 = vadd.f32 0.0, %v1468
        %1470 = vmatmul.f32.gmra.mxu0 %v1407
        %v1471 = vpop.f32.mrf.mxu0
        %v1472 = vadd.f32 0.0, %v1471
        %1473 = vmatmul.f32.gmra.mxu0 %v1410
        %v1474 = vpop.f32.mrf.mxu0
        %v1475 = vadd.f32 0.0, %v1474
        %1476 = vmatmul.f32.gmra.mxu0 %v1413
        %v1477 = vpop.f32.mrf.mxu0
        %v1478 = vadd.f32 0.0, %v1477
        %1479 = vmatmul.f32.gmra.mxu0 %v1416
        %v1480 = vpop.f32.mrf.mxu0
        %v1481 = vadd.f32 0.0, %v1480
        %1482 = vdwg.mxu0
        %v1483 = vld [vmem:[%s495] sm:$0xff]
        %v1484 = vld [vmem:[%s495 + $0x8] sm:$0xff]
        %v1485 = vld [vmem:[%s495 + $0x10] sm:$0xff]
        %v1486 = vld [vmem:[%s495 + $0x18] sm:$0xff]
        %v1487 = vld [vmem:[%s495 + $0x20] sm:$0xff]
        %v1488 = vld [vmem:[%s495 + $0x28] sm:$0xff]
        %v1489 = vld [vmem:[%s495 + $0x30] sm:$0xff]
        %v1490 = vld [vmem:[%s495 + $0x38] sm:$0xff]
        %v1491 = vld [vmem:[%s495 + $0x40] sm:$0xff]
        %v1492 = vld [vmem:[%s495 + $0x48] sm:$0xff]
        %v1493 = vld [vmem:[%s495 + $0x50] sm:$0xff]
        %v1494 = vld [vmem:[%s495 + $0x58] sm:$0xff]
        %v1495 = vld [vmem:[%s495 + $0x60] sm:$0xff]
        %v1496 = vld [vmem:[%s495 + $0x68] sm:$0xff]
        %v1497 = vld [vmem:[%s495 + $0x70] sm:$0xff]
        %v1498 = vld [vmem:[%s495 + $0x78] sm:$0xff]
        %v1499 = vld [vmem:[#allocation4] sm:$0xff]
        %v1500 = vld [vmem:[#allocation4 + $0x8] sm:$0xff]
        %v1501 = vld [vmem:[#allocation4 + $0x10] sm:$0xff]
        %v1502 = vld [vmem:[#allocation4 + $0x18] sm:$0xff]
        %v1503 = vld [vmem:[#allocation4 + $0x20] sm:$0xff]
        %v1504 = vld [vmem:[#allocation4 + $0x28] sm:$0xff]
        %v1505 = vld [vmem:[#allocation4 + $0x30] sm:$0xff]
        %v1506 = vld [vmem:[#allocation4 + $0x38] sm:$0xff]
        %v1507 = vld [vmem:[#allocation4 + $0x40] sm:$0xff]
        %v1508 = vld [vmem:[#allocation4 + $0x48] sm:$0xff]
        %v1509 = vld [vmem:[#allocation4 + $0x50] sm:$0xff]
        %v1510 = vld [vmem:[#allocation4 + $0x58] sm:$0xff]
        %v1511 = vld [vmem:[#allocation4 + $0x60] sm:$0xff]
        %v1512 = vld [vmem:[#allocation4 + $0x68] sm:$0xff]
        %v1513 = vld [vmem:[#allocation4 + $0x70] sm:$0xff]
        %v1514 = vld [vmem:[#allocation4 + $0x78] sm:$0xff]
        %v1515 = vmax.f32 %v1499, %v1436
        %v1516 = vmax.f32 %v1500, %v1439
        %v1517 = vmax.f32 %v1501, %v1442
        %v1518 = vmax.f32 %v1502, %v1445
        %v1519 = vmax.f32 %v1503, %v1448
        %v1520 = vmax.f32 %v1504, %v1451
        %v1521 = vmax.f32 %v1505, %v1454
        %v1522 = vmax.f32 %v1506, %v1457
        %v1523 = vmax.f32 %v1507, %v1460
        %v1524 = vmax.f32 %v1508, %v1463
        %v1525 = vmax.f32 %v1509, %v1466
        %v1526 = vmax.f32 %v1510, %v1469
        %v1527 = vmax.f32 %v1511, %v1472
        %v1528 = vmax.f32 %v1512, %v1475
        %v1529 = vmax.f32 %v1513, %v1478
        %v1530 = vmax.f32 %v1514, %v1481
        %v1531 = vsub.f32 %v1499, %v1515
        %v1532 = vsub.f32 %v1500, %v1516
        %v1533 = vsub.f32 %v1501, %v1517
        %v1534 = vsub.f32 %v1502, %v1518
        %v1535 = vsub.f32 %v1503, %v1519
        %v1536 = vsub.f32 %v1504, %v1520
        %v1537 = vsub.f32 %v1505, %v1521
        %v1538 = vsub.f32 %v1506, %v1522
        %v1539 = vsub.f32 %v1507, %v1523
        %v1540 = vsub.f32 %v1508, %v1524
        %v1541 = vsub.f32 %v1509, %v1525
        %v1542 = vsub.f32 %v1510, %v1526
        %v1543 = vsub.f32 %v1511, %v1527
        %v1544 = vsub.f32 %v1512, %v1528
        %v1545 = vsub.f32 %v1513, %v1529
        %v1546 = vsub.f32 %v1514, %v1530
        %v1547 = vmul.f32 %v1531, 1.442695
        %v1548 = vpow.pop %v1547
        %v1549 = vmul.f32 %v1532, 1.442695
        %v1550 = vpow.pop %v1549
        %v1551 = vmul.f32 %v1533, 1.442695
        %v1552 = vpow.pop %v1551
        %v1553 = vmul.f32 %v1534, 1.442695
        %v1554 = vpow.pop %v1553
        %v1555 = vmul.f32 %v1535, 1.442695
        %v1556 = vpow.pop %v1555
        %v1557 = vmul.f32 %v1536, 1.442695
        %v1558 = vpow.pop %v1557
        %v1559 = vmul.f32 %v1537, 1.442695
        %v1560 = vpow.pop %v1559
        %v1561 = vmul.f32 %v1538, 1.442695
        %v1562 = vpow.pop %v1561
        %v1563 = vmul.f32 %v1539, 1.442695
        %v1564 = vpow.pop %v1563
        %v1565 = vmul.f32 %v1540, 1.442695
        %v1566 = vpow.pop %v1565
        %v1567 = vmul.f32 %v1541, 1.442695
        %v1568 = vpow.pop %v1567
        %v1569 = vmul.f32 %v1542, 1.442695
        %v1570 = vpow.pop %v1569
        %v1571 = vmul.f32 %v1543, 1.442695
        %v1572 = vpow.pop %v1571
        %v1573 = vmul.f32 %v1544, 1.442695
        %v1574 = vpow.pop %v1573
        %v1575 = vmul.f32 %v1545, 1.442695
        %v1576 = vpow.pop %v1575
        %v1577 = vmul.f32 %v1546, 1.442695
        %v1578 = vpow.pop %v1577
        %v1579 = vsub.f32 %v1436, %v1515
        %v1580 = vsub.f32 %v1439, %v1516
        %v1581 = vsub.f32 %v1442, %v1517
        %v1582 = vsub.f32 %v1445, %v1518
        %v1583 = vsub.f32 %v1448, %v1519
        %v1584 = vsub.f32 %v1451, %v1520
        %v1585 = vsub.f32 %v1454, %v1521
        %v1586 = vsub.f32 %v1457, %v1522
        %v1587 = vsub.f32 %v1460, %v1523
        %v1588 = vsub.f32 %v1463, %v1524
        %v1589 = vsub.f32 %v1466, %v1525
        %v1590 = vsub.f32 %v1469, %v1526
        %v1591 = vsub.f32 %v1472, %v1527
        %v1592 = vsub.f32 %v1475, %v1528
        %v1593 = vsub.f32 %v1478, %v1529
        %v1594 = vsub.f32 %v1481, %v1530
        %v1595 = vmul.f32 %v1579, 1.442695
        %v1596 = vpow.pop %v1595
        %v1597 = vmul.f32 %v1580, 1.442695
        %v1598 = vpow.pop %v1597
        %v1599 = vmul.f32 %v1581, 1.442695
        %v1600 = vpow.pop %v1599
        %v1601 = vmul.f32 %v1582, 1.442695
        %v1602 = vpow.pop %v1601
        %v1603 = vmul.f32 %v1583, 1.442695
        %v1604 = vpow.pop %v1603
        %v1605 = vmul.f32 %v1584, 1.442695
        %v1606 = vpow.pop %v1605
        %v1607 = vmul.f32 %v1585, 1.442695
        %v1608 = vpow.pop %v1607
        %v1609 = vmul.f32 %v1586, 1.442695
        %v1610 = vpow.pop %v1609
        %v1611 = vmul.f32 %v1587, 1.442695
        %v1612 = vpow.pop %v1611
        %v1613 = vmul.f32 %v1588, 1.442695
        %v1614 = vpow.pop %v1613
        %v1615 = vmul.f32 %v1589, 1.442695
        %v1616 = vpow.pop %v1615
        %v1617 = vmul.f32 %v1590, 1.442695
        %v1618 = vpow.pop %v1617
        %v1619 = vmul.f32 %v1591, 1.442695
        %v1620 = vpow.pop %v1619
        %v1621 = vmul.f32 %v1592, 1.442695
        %v1622 = vpow.pop %v1621
        %v1623 = vmul.f32 %v1593, 1.442695
        %v1624 = vpow.pop %v1623
        %v1625 = vmul.f32 %v1594, 1.442695
        %v1626 = vpow.pop %v1625
        %v1627 = vld [vmem:[#allocation5] sm:$0xff]
        %v1628 = vld [vmem:[#allocation5 + $0x8] sm:$0xff]
        %v1629 = vld [vmem:[#allocation5 + $0x10] sm:$0xff]
        %v1630 = vld [vmem:[#allocation5 + $0x18] sm:$0xff]
        %v1631 = vld [vmem:[#allocation5 + $0x20] sm:$0xff]
        %v1632 = vld [vmem:[#allocation5 + $0x28] sm:$0xff]
        %v1633 = vld [vmem:[#allocation5 + $0x30] sm:$0xff]
        %v1634 = vld [vmem:[#allocation5 + $0x38] sm:$0xff]
        %v1635 = vld [vmem:[#allocation5 + $0x40] sm:$0xff]
        %v1636 = vld [vmem:[#allocation5 + $0x48] sm:$0xff]
        %v1637 = vld [vmem:[#allocation5 + $0x50] sm:$0xff]
        %v1638 = vld [vmem:[#allocation5 + $0x58] sm:$0xff]
        %v1639 = vld [vmem:[#allocation5 + $0x60] sm:$0xff]
        %v1640 = vld [vmem:[#allocation5 + $0x68] sm:$0xff]
        %v1641 = vld [vmem:[#allocation5 + $0x70] sm:$0xff]
        %v1642 = vld [vmem:[#allocation5 + $0x78] sm:$0xff]
        %v1643 = vmul.f32 %v1548, %v1627
        %v1644 = vmul.f32 %v1550, %v1628
        %v1645 = vmul.f32 %v1552, %v1629
        %v1646 = vmul.f32 %v1554, %v1630
        %v1647 = vmul.f32 %v1556, %v1631
        %v1648 = vmul.f32 %v1558, %v1632
        %v1649 = vmul.f32 %v1560, %v1633
        %v1650 = vmul.f32 %v1562, %v1634
        %v1651 = vmul.f32 %v1564, %v1635
        %v1652 = vmul.f32 %v1566, %v1636
        %v1653 = vmul.f32 %v1568, %v1637
        %v1654 = vmul.f32 %v1570, %v1638
        %v1655 = vmul.f32 %v1572, %v1639
        %v1656 = vmul.f32 %v1574, %v1640
        %v1657 = vmul.f32 %v1576, %v1641
        %v1658 = vmul.f32 %v1578, %v1642
        %v1659 = vadd.f32 %v1643, %v1596
        %v1660 = vadd.f32 %v1644, %v1598
        %v1661 = vadd.f32 %v1645, %v1600
        %v1662 = vadd.f32 %v1646, %v1602
        %v1663 = vadd.f32 %v1647, %v1604
        %v1664 = vadd.f32 %v1648, %v1606
        %v1665 = vadd.f32 %v1649, %v1608
        %v1666 = vadd.f32 %v1650, %v1610
        %v1667 = vadd.f32 %v1651, %v1612
        %v1668 = vadd.f32 %v1652, %v1614
        %v1669 = vadd.f32 %v1653, %v1616
        %v1670 = vadd.f32 %v1654, %v1618
        %v1671 = vadd.f32 %v1655, %v1620
        %v1672 = vadd.f32 %v1656, %v1622
        %v1673 = vadd.f32 %v1657, %v1624
        %v1674 = vadd.f32 %v1658, %v1626
        %vm1675 = vcmask 31744
        %1676 = vst.msk [vmem:[#allocation5] sm:$0xff] %vm1675, %v1659
        %1677 = vst.msk [vmem:[#allocation5 + $0x8] sm:$0xff] %vm1675, %v1660
        %1678 = vst.msk [vmem:[#allocation5 + $0x10] sm:$0xff] %vm1675, %v1661
        %1679 = vst.msk [vmem:[#allocation5 + $0x18] sm:$0xff] %vm1675, %v1662
        %1680 = vst.msk [vmem:[#allocation5 + $0x20] sm:$0xff] %vm1675, %v1663
        %1681 = vst.msk [vmem:[#allocation5 + $0x28] sm:$0xff] %vm1675, %v1664
        %1682 = vst.msk [vmem:[#allocation5 + $0x30] sm:$0xff] %vm1675, %v1665
        %1683 = vst.msk [vmem:[#allocation5 + $0x38] sm:$0xff] %vm1675, %v1666
        %1684 = vst.msk [vmem:[#allocation5 + $0x40] sm:$0xff] %vm1675, %v1667
        %1685 = vst.msk [vmem:[#allocation5 + $0x48] sm:$0xff] %vm1675, %v1668
        %1686 = vst.msk [vmem:[#allocation5 + $0x50] sm:$0xff] %vm1675, %v1669
        %1687 = vst.msk [vmem:[#allocation5 + $0x58] sm:$0xff] %vm1675, %v1670
        %1688 = vst.msk [vmem:[#allocation5 + $0x60] sm:$0xff] %vm1675, %v1671
        %1689 = vst.msk [vmem:[#allocation5 + $0x68] sm:$0xff] %vm1675, %v1672
        %1690 = vst.msk [vmem:[#allocation5 + $0x70] sm:$0xff] %vm1675, %v1673
        %1691 = vst.msk [vmem:[#allocation5 + $0x78] sm:$0xff] %vm1675, %v1674
        %v1692 = vld [vmem:[#allocation6] sm:$0xff]
        %v1693 = vld [vmem:[#allocation6 + $0x8] sm:$0xff]
        %v1694 = vld [vmem:[#allocation6 + $0x10] sm:$0xff]
        %v1695 = vld [vmem:[#allocation6 + $0x18] sm:$0xff]
        %v1696 = vld [vmem:[#allocation6 + $0x20] sm:$0xff]
        %v1697 = vld [vmem:[#allocation6 + $0x28] sm:$0xff]
        %v1698 = vld [vmem:[#allocation6 + $0x30] sm:$0xff]
        %v1699 = vld [vmem:[#allocation6 + $0x38] sm:$0xff]
        %v1700 = vld [vmem:[#allocation6 + $0x40] sm:$0xff]
        %v1701 = vld [vmem:[#allocation6 + $0x48] sm:$0xff]
        %v1702 = vld [vmem:[#allocation6 + $0x50] sm:$0xff]
        %v1703 = vld [vmem:[#allocation6 + $0x58] sm:$0xff]
        %v1704 = vld [vmem:[#allocation6 + $0x60] sm:$0xff]
        %v1705 = vld [vmem:[#allocation6 + $0x68] sm:$0xff]
        %v1706 = vld [vmem:[#allocation6 + $0x70] sm:$0xff]
        %v1707 = vld [vmem:[#allocation6 + $0x78] sm:$0xff]
        %v1708 = vmul.f32 %v1548, %v1692
        %v1709 = vmul.f32 %v1550, %v1693
        %v1710 = vmul.f32 %v1552, %v1694
        %v1711 = vmul.f32 %v1554, %v1695
        %v1712 = vmul.f32 %v1556, %v1696
        %v1713 = vmul.f32 %v1558, %v1697
        %v1714 = vmul.f32 %v1560, %v1698
        %v1715 = vmul.f32 %v1562, %v1699
        %v1716 = vmul.f32 %v1564, %v1700
        %v1717 = vmul.f32 %v1566, %v1701
        %v1718 = vmul.f32 %v1568, %v1702
        %v1719 = vmul.f32 %v1570, %v1703
        %v1720 = vmul.f32 %v1572, %v1704
        %v1721 = vmul.f32 %v1574, %v1705
        %v1722 = vmul.f32 %v1576, %v1706
        %v1723 = vmul.f32 %v1578, %v1707
        %1725 = vset.pattern.permute.xlu0 0
        %1726 = vperm.xlu0 %1725, %v1483
        %v1727 = vpop.permute.xlu0 %1726
        %1730 = vset.pattern.permute.xlu0 0
        %1731 = vperm.xlu0 %1730, %v1484
        %v1732 = vpop.permute.xlu0 %1731
        %1735 = vset.pattern.permute.xlu0 0
        %1736 = vperm.xlu0 %1735, %v1485
        %v1737 = vpop.permute.xlu0 %1736
        %1740 = vset.pattern.permute.xlu0 0
        %1741 = vperm.xlu0 %1740, %v1486
        %v1742 = vpop.permute.xlu0 %1741
        %1745 = vset.pattern.permute.xlu0 0
        %1746 = vperm.xlu0 %1745, %v1487
        %v1747 = vpop.permute.xlu0 %1746
        %1750 = vset.pattern.permute.xlu0 0
        %1751 = vperm.xlu0 %1750, %v1488
        %v1752 = vpop.permute.xlu0 %1751
        %1755 = vset.pattern.permute.xlu0 0
        %1756 = vperm.xlu0 %1755, %v1489
        %v1757 = vpop.permute.xlu0 %1756
        %1760 = vset.pattern.permute.xlu0 0
        %1761 = vperm.xlu0 %1760, %v1490
        %v1762 = vpop.permute.xlu0 %1761
        %1765 = vset.pattern.permute.xlu0 0
        %1766 = vperm.xlu0 %1765, %v1491
        %v1767 = vpop.permute.xlu0 %1766
        %1770 = vset.pattern.permute.xlu0 0
        %1771 = vperm.xlu0 %1770, %v1492
        %v1772 = vpop.permute.xlu0 %1771
        %1775 = vset.pattern.permute.xlu0 0
        %1776 = vperm.xlu0 %1775, %v1493
        %v1777 = vpop.permute.xlu0 %1776
        %1780 = vset.pattern.permute.xlu0 0
        %1781 = vperm.xlu0 %1780, %v1494
        %v1782 = vpop.permute.xlu0 %1781
        %1785 = vset.pattern.permute.xlu0 0
        %1786 = vperm.xlu0 %1785, %v1495
        %v1787 = vpop.permute.xlu0 %1786
        %1790 = vset.pattern.permute.xlu0 0
        %1791 = vperm.xlu0 %1790, %v1496
        %v1792 = vpop.permute.xlu0 %1791
        %1795 = vset.pattern.permute.xlu0 0
        %1796 = vperm.xlu0 %1795, %v1497
        %v1797 = vpop.permute.xlu0 %1796
        %1800 = vset.pattern.permute.xlu0 0
        %1801 = vperm.xlu0 %1800, %v1498
        %v1802 = vpop.permute.xlu0 %1801
        %v1804 = vmul.f32 %v1596, %v1727
        %v1805 = vmul.f32 %v1598, %v1732
        %v1806 = vmul.f32 %v1600, %v1737
        %v1807 = vmul.f32 %v1602, %v1742
        %v1808 = vmul.f32 %v1604, %v1747
        %v1809 = vmul.f32 %v1606, %v1752
        %v1810 = vmul.f32 %v1608, %v1757
        %v1811 = vmul.f32 %v1610, %v1762
        %v1812 = vmul.f32 %v1612, %v1767
        %v1813 = vmul.f32 %v1614, %v1772
        %v1814 = vmul.f32 %v1616, %v1777
        %v1815 = vmul.f32 %v1618, %v1782
        %v1816 = vmul.f32 %v1620, %v1787
        %v1817 = vmul.f32 %v1622, %v1792
        %v1818 = vmul.f32 %v1624, %v1797
        %v1819 = vmul.f32 %v1626, %v1802
        %v1820 = vadd.f32 %v1708, %v1804
        %v1821 = vadd.f32 %v1709, %v1805
        %v1822 = vadd.f32 %v1710, %v1806
        %v1823 = vadd.f32 %v1711, %v1807
        %v1824 = vadd.f32 %v1712, %v1808
        %v1825 = vadd.f32 %v1713, %v1809
        %v1826 = vadd.f32 %v1714, %v1810
        %v1827 = vadd.f32 %v1715, %v1811
        %v1828 = vadd.f32 %v1716, %v1812
        %v1829 = vadd.f32 %v1717, %v1813
        %v1830 = vadd.f32 %v1718, %v1814
        %v1831 = vadd.f32 %v1719, %v1815
        %v1832 = vadd.f32 %v1720, %v1816
        %v1833 = vadd.f32 %v1721, %v1817
        %v1834 = vadd.f32 %v1722, %v1818
        %v1835 = vadd.f32 %v1723, %v1819
        %1836 = vst.msk [vmem:[#allocation6] sm:$0xff] %vm1675, %v1820
        %1837 = vst.msk [vmem:[#allocation6 + $0x8] sm:$0xff] %vm1675, %v1821
        %1838 = vst.msk [vmem:[#allocation6 + $0x10] sm:$0xff] %vm1675, %v1822
        %1839 = vst.msk [vmem:[#allocation6 + $0x18] sm:$0xff] %vm1675, %v1823
        %1840 = vst.msk [vmem:[#allocation6 + $0x20] sm:$0xff] %vm1675, %v1824
        %1841 = vst.msk [vmem:[#allocation6 + $0x28] sm:$0xff] %vm1675, %v1825
        %1842 = vst.msk [vmem:[#allocation6 + $0x30] sm:$0xff] %vm1675, %v1826
        %1843 = vst.msk [vmem:[#allocation6 + $0x38] sm:$0xff] %vm1675, %v1827
        %1844 = vst.msk [vmem:[#allocation6 + $0x40] sm:$0xff] %vm1675, %v1828
        %1845 = vst.msk [vmem:[#allocation6 + $0x48] sm:$0xff] %vm1675, %v1829
        %1846 = vst.msk [vmem:[#allocation6 + $0x50] sm:$0xff] %vm1675, %v1830
        %1847 = vst.msk [vmem:[#allocation6 + $0x58] sm:$0xff] %vm1675, %v1831
        %1848 = vst.msk [vmem:[#allocation6 + $0x60] sm:$0xff] %vm1675, %v1832
        %1849 = vst.msk [vmem:[#allocation6 + $0x68] sm:$0xff] %vm1675, %v1833
        %1850 = vst.msk [vmem:[#allocation6 + $0x70] sm:$0xff] %vm1675, %v1834
        %1851 = vst.msk [vmem:[#allocation6 + $0x78] sm:$0xff] %vm1675, %v1835
        %1852 = vst.msk [vmem:[#allocation4] sm:$0xff] %vm1675, %v1515
        %1853 = vst.msk [vmem:[#allocation4 + $0x8] sm:$0xff] %vm1675, %v1516
        %1854 = vst.msk [vmem:[#allocation4 + $0x10] sm:$0xff] %vm1675, %v1517
        %1855 = vst.msk [vmem:[#allocation4 + $0x18] sm:$0xff] %vm1675, %v1518
        %1856 = vst.msk [vmem:[#allocation4 + $0x20] sm:$0xff] %vm1675, %v1519
        %1857 = vst.msk [vmem:[#allocation4 + $0x28] sm:$0xff] %vm1675, %v1520
        %1858 = vst.msk [vmem:[#allocation4 + $0x30] sm:$0xff] %vm1675, %v1521
        %1859 = vst.msk [vmem:[#allocation4 + $0x38] sm:$0xff] %vm1675, %v1522
        %1860 = vst.msk [vmem:[#allocation4 + $0x40] sm:$0xff] %vm1675, %v1523
        %1861 = vst.msk [vmem:[#allocation4 + $0x48] sm:$0xff] %vm1675, %v1524
        %1862 = vst.msk [vmem:[#allocation4 + $0x50] sm:$0xff] %vm1675, %v1525
        %1863 = vst.msk [vmem:[#allocation4 + $0x58] sm:$0xff] %vm1675, %v1526
        %1864 = vst.msk [vmem:[#allocation4 + $0x60] sm:$0xff] %vm1675, %v1527
        %1865 = vst.msk [vmem:[#allocation4 + $0x68] sm:$0xff] %vm1675, %v1528
        %1866 = vst.msk [vmem:[#allocation4 + $0x70] sm:$0xff] %vm1675, %v1529
        %1867 = vst.msk [vmem:[#allocation4 + $0x78] sm:$0xff] %vm1675, %v1530
        %p1868 = scmp.eq.s32.totalorder %s31, 3
        // Predicated region
        $region73: #{tpu_custom_call.1} parent=67 // pred_check
          %p1869 = pneg %p1868
        $region74: #{tpu_custom_call.1} parent=67 // pred_check_branch
          %1871 = sbr.rel (%p1869) target = $region76
        $region75: #{tpu_custom_call.1} parent=67 // pred_region
          %v1872 = vld [vmem:[#allocation6] sm:$0xff]
          %v1873 = vld [vmem:[#allocation6 + $0x8] sm:$0xff]
          %v1874 = vld [vmem:[#allocation6 + $0x10] sm:$0xff]
          %v1875 = vld [vmem:[#allocation6 + $0x18] sm:$0xff]
          %v1876 = vld [vmem:[#allocation6 + $0x20] sm:$0xff]
          %v1877 = vld [vmem:[#allocation6 + $0x28] sm:$0xff]
          %v1878 = vld [vmem:[#allocation6 + $0x30] sm:$0xff]
          %v1879 = vld [vmem:[#allocation6 + $0x38] sm:$0xff]
          %v1880 = vld [vmem:[#allocation6 + $0x40] sm:$0xff]
          %v1881 = vld [vmem:[#allocation6 + $0x48] sm:$0xff]
          %v1882 = vld [vmem:[#allocation6 + $0x50] sm:$0xff]
          %v1883 = vld [vmem:[#allocation6 + $0x58] sm:$0xff]
          %v1884 = vld [vmem:[#allocation6 + $0x60] sm:$0xff]
          %v1885 = vld [vmem:[#allocation6 + $0x68] sm:$0xff]
          %v1886 = vld [vmem:[#allocation6 + $0x70] sm:$0xff]
          %v1887 = vld [vmem:[#allocation6 + $0x78] sm:$0xff]
          %v1888 = vld [vmem:[#allocation5] sm:$0xff]
          %v1889 = vld [vmem:[#allocation5 + $0x8] sm:$0xff]
          %v1890 = vld [vmem:[#allocation5 + $0x10] sm:$0xff]
          %v1891 = vld [vmem:[#allocation5 + $0x18] sm:$0xff]
          %v1892 = vld [vmem:[#allocation5 + $0x20] sm:$0xff]
          %v1893 = vld [vmem:[#allocation5 + $0x28] sm:$0xff]
          %v1894 = vld [vmem:[#allocation5 + $0x30] sm:$0xff]
          %v1895 = vld [vmem:[#allocation5 + $0x38] sm:$0xff]
          %v1896 = vld [vmem:[#allocation5 + $0x40] sm:$0xff]
          %v1897 = vld [vmem:[#allocation5 + $0x48] sm:$0xff]
          %v1898 = vld [vmem:[#allocation5 + $0x50] sm:$0xff]
          %v1899 = vld [vmem:[#allocation5 + $0x58] sm:$0xff]
          %v1900 = vld [vmem:[#allocation5 + $0x60] sm:$0xff]
          %v1901 = vld [vmem:[#allocation5 + $0x68] sm:$0xff]
          %v1902 = vld [vmem:[#allocation5 + $0x70] sm:$0xff]
          %v1903 = vld [vmem:[#allocation5 + $0x78] sm:$0xff]
          %v1904 = vrcp.pop %v1888
          %v1905 = vmul.f32 %v1888, %v1904
          %v1906 = vsub.f32 1.0, %v1905
          %v1907 = vmul.f32 %v1904, %v1906
          %v1908 = vadd.f32 %v1904, %v1907
          %vm1909 = vweird.f32 %v1888
          %vm1910 = vweird.f32 %v1904
          %vm1911 = vmor %vm1909, %vm1910
          %v1912 = vsel %vm1911, %v1904, %v1908
          %v1913 = vand.u32 2147483647, %v1888
          %vm1914 = vcmp.eq.f32.partialorder %v1913, 8.507059e+37
          %v1915 = vand.u32 %v1888, 2147483648
          %v1916 = vor.u32 1.1754944e-38, %v1915
          %v1917 = vsel %vm1914, %v1916, %v1912
          %v1918 = vrcp.pop %v1889
          %v1919 = vmul.f32 %v1889, %v1918
          %v1920 = vsub.f32 1.0, %v1919
          %v1921 = vmul.f32 %v1918, %v1920
          %v1922 = vadd.f32 %v1918, %v1921
          %vm1923 = vweird.f32 %v1889
          %vm1924 = vweird.f32 %v1918
          %vm1925 = vmor %vm1923, %vm1924
          %v1926 = vsel %vm1925, %v1918, %v1922
          %v1927 = vand.u32 2147483647, %v1889
          %vm1928 = vcmp.eq.f32.partialorder %v1927, 8.507059e+37
          %v1929 = vand.u32 %v1889, 2147483648
          %v1930 = vor.u32 1.1754944e-38, %v1929
          %v1931 = vsel %vm1928, %v1930, %v1926
          %v1932 = vrcp.pop %v1890
          %v1933 = vmul.f32 %v1890, %v1932
          %v1934 = vsub.f32 1.0, %v1933
          %v1935 = vmul.f32 %v1932, %v1934
          %v1936 = vadd.f32 %v1932, %v1935
          %vm1937 = vweird.f32 %v1890
          %vm1938 = vweird.f32 %v1932
          %vm1939 = vmor %vm1937, %vm1938
          %v1940 = vsel %vm1939, %v1932, %v1936
          %v1941 = vand.u32 2147483647, %v1890
          %vm1942 = vcmp.eq.f32.partialorder %v1941, 8.507059e+37
          %v1943 = vand.u32 %v1890, 2147483648
          %v1944 = vor.u32 1.1754944e-38, %v1943
          %v1945 = vsel %vm1942, %v1944, %v1940
          %v1946 = vrcp.pop %v1891
          %v1947 = vmul.f32 %v1891, %v1946
          %v1948 = vsub.f32 1.0, %v1947
          %v1949 = vmul.f32 %v1946, %v1948
          %v1950 = vadd.f32 %v1946, %v1949
          %vm1951 = vweird.f32 %v1891
          %vm1952 = vweird.f32 %v1946
          %vm1953 = vmor %vm1951, %vm1952
          %v1954 = vsel %vm1953, %v1946, %v1950
          %v1955 = vand.u32 2147483647, %v1891
          %vm1956 = vcmp.eq.f32.partialorder %v1955, 8.507059e+37
          %v1957 = vand.u32 %v1891, 2147483648
          %v1958 = vor.u32 1.1754944e-38, %v1957
          %v1959 = vsel %vm1956, %v1958, %v1954
          %v1960 = vrcp.pop %v1892
          %v1961 = vmul.f32 %v1892, %v1960
          %v1962 = vsub.f32 1.0, %v1961
          %v1963 = vmul.f32 %v1960, %v1962
          %v1964 = vadd.f32 %v1960, %v1963
          %vm1965 = vweird.f32 %v1892
          %vm1966 = vweird.f32 %v1960
          %vm1967 = vmor %vm1965, %vm1966
          %v1968 = vsel %vm1967, %v1960, %v1964
          %v1969 = vand.u32 2147483647, %v1892
          %vm1970 = vcmp.eq.f32.partialorder %v1969, 8.507059e+37
          %v1971 = vand.u32 %v1892, 2147483648
          %v1972 = vor.u32 1.1754944e-38, %v1971
          %v1973 = vsel %vm1970, %v1972, %v1968
          %v1974 = vrcp.pop %v1893
          %v1975 = vmul.f32 %v1893, %v1974
          %v1976 = vsub.f32 1.0, %v1975
          %v1977 = vmul.f32 %v1974, %v1976
          %v1978 = vadd.f32 %v1974, %v1977
          %vm1979 = vweird.f32 %v1893
          %vm1980 = vweird.f32 %v1974
          %vm1981 = vmor %vm1979, %vm1980
          %v1982 = vsel %vm1981, %v1974, %v1978
          %v1983 = vand.u32 2147483647, %v1893
          %vm1984 = vcmp.eq.f32.partialorder %v1983, 8.507059e+37
          %v1985 = vand.u32 %v1893, 2147483648
          %v1986 = vor.u32 1.1754944e-38, %v1985
          %v1987 = vsel %vm1984, %v1986, %v1982
          %v1988 = vrcp.pop %v1894
          %v1989 = vmul.f32 %v1894, %v1988
          %v1990 = vsub.f32 1.0, %v1989
          %v1991 = vmul.f32 %v1988, %v1990
          %v1992 = vadd.f32 %v1988, %v1991
          %vm1993 = vweird.f32 %v1894
          %vm1994 = vweird.f32 %v1988
          %vm1995 = vmor %vm1993, %vm1994
          %v1996 = vsel %vm1995, %v1988, %v1992
          %v1997 = vand.u32 2147483647, %v1894
          %vm1998 = vcmp.eq.f32.partialorder %v1997, 8.507059e+37
          %v1999 = vand.u32 %v1894, 2147483648
          %v2000 = vor.u32 1.1754944e-38, %v1999
          %v2001 = vsel %vm1998, %v2000, %v1996
          %v2002 = vrcp.pop %v1895
          %v2003 = vmul.f32 %v1895, %v2002
          %v2004 = vsub.f32 1.0, %v2003
          %v2005 = vmul.f32 %v2002, %v2004
          %v2006 = vadd.f32 %v2002, %v2005
          %vm2007 = vweird.f32 %v1895
          %vm2008 = vweird.f32 %v2002
          %vm2009 = vmor %vm2007, %vm2008
          %v2010 = vsel %vm2009, %v2002, %v2006
          %v2011 = vand.u32 2147483647, %v1895
          %vm2012 = vcmp.eq.f32.partialorder %v2011, 8.507059e+37
          %v2013 = vand.u32 %v1895, 2147483648
          %v2014 = vor.u32 1.1754944e-38, %v2013
          %v2015 = vsel %vm2012, %v2014, %v2010
          %v2016 = vrcp.pop %v1896
          %v2017 = vmul.f32 %v1896, %v2016
          %v2018 = vsub.f32 1.0, %v2017
          %v2019 = vmul.f32 %v2016, %v2018
          %v2020 = vadd.f32 %v2016, %v2019
          %vm2021 = vweird.f32 %v1896
          %vm2022 = vweird.f32 %v2016
          %vm2023 = vmor %vm2021, %vm2022
          %v2024 = vsel %vm2023, %v2016, %v2020
          %v2025 = vand.u32 2147483647, %v1896
          %vm2026 = vcmp.eq.f32.partialorder %v2025, 8.507059e+37
          %v2027 = vand.u32 %v1896, 2147483648
          %v2028 = vor.u32 1.1754944e-38, %v2027
          %v2029 = vsel %vm2026, %v2028, %v2024
          %v2030 = vrcp.pop %v1897
          %v2031 = vmul.f32 %v1897, %v2030
          %v2032 = vsub.f32 1.0, %v2031
          %v2033 = vmul.f32 %v2030, %v2032
          %v2034 = vadd.f32 %v2030, %v2033
          %vm2035 = vweird.f32 %v1897
          %vm2036 = vweird.f32 %v2030
          %vm2037 = vmor %vm2035, %vm2036
          %v2038 = vsel %vm2037, %v2030, %v2034
          %v2039 = vand.u32 2147483647, %v1897
          %vm2040 = vcmp.eq.f32.partialorder %v2039, 8.507059e+37
          %v2041 = vand.u32 %v1897, 2147483648
          %v2042 = vor.u32 1.1754944e-38, %v2041
          %v2043 = vsel %vm2040, %v2042, %v2038
          %v2044 = vrcp.pop %v1898
          %v2045 = vmul.f32 %v1898, %v2044
          %v2046 = vsub.f32 1.0, %v2045
          %v2047 = vmul.f32 %v2044, %v2046
          %v2048 = vadd.f32 %v2044, %v2047
          %vm2049 = vweird.f32 %v1898
          %vm2050 = vweird.f32 %v2044
          %vm2051 = vmor %vm2049, %vm2050
          %v2052 = vsel %vm2051, %v2044, %v2048
          %v2053 = vand.u32 2147483647, %v1898
          %vm2054 = vcmp.eq.f32.partialorder %v2053, 8.507059e+37
          %v2055 = vand.u32 %v1898, 2147483648
          %v2056 = vor.u32 1.1754944e-38, %v2055
          %v2057 = vsel %vm2054, %v2056, %v2052
          %v2058 = vrcp.pop %v1899
          %v2059 = vmul.f32 %v1899, %v2058
          %v2060 = vsub.f32 1.0, %v2059
          %v2061 = vmul.f32 %v2058, %v2060
          %v2062 = vadd.f32 %v2058, %v2061
          %vm2063 = vweird.f32 %v1899
          %vm2064 = vweird.f32 %v2058
          %vm2065 = vmor %vm2063, %vm2064
          %v2066 = vsel %vm2065, %v2058, %v2062
          %v2067 = vand.u32 2147483647, %v1899
          %vm2068 = vcmp.eq.f32.partialorder %v2067, 8.507059e+37
          %v2069 = vand.u32 %v1899, 2147483648
          %v2070 = vor.u32 1.1754944e-38, %v2069
          %v2071 = vsel %vm2068, %v2070, %v2066
          %v2072 = vrcp.pop %v1900
          %v2073 = vmul.f32 %v1900, %v2072
          %v2074 = vsub.f32 1.0, %v2073
          %v2075 = vmul.f32 %v2072, %v2074
          %v2076 = vadd.f32 %v2072, %v2075
          %vm2077 = vweird.f32 %v1900
          %vm2078 = vweird.f32 %v2072
          %vm2079 = vmor %vm2077, %vm2078
          %v2080 = vsel %vm2079, %v2072, %v2076
          %v2081 = vand.u32 2147483647, %v1900
          %vm2082 = vcmp.eq.f32.partialorder %v2081, 8.507059e+37
          %v2083 = vand.u32 %v1900, 2147483648
          %v2084 = vor.u32 1.1754944e-38, %v2083
          %v2085 = vsel %vm2082, %v2084, %v2080
          %v2086 = vrcp.pop %v1901
          %v2087 = vmul.f32 %v1901, %v2086
          %v2088 = vsub.f32 1.0, %v2087
          %v2089 = vmul.f32 %v2086, %v2088
          %v2090 = vadd.f32 %v2086, %v2089
          %vm2091 = vweird.f32 %v1901
          %vm2092 = vweird.f32 %v2086
          %vm2093 = vmor %vm2091, %vm2092
          %v2094 = vsel %vm2093, %v2086, %v2090
          %v2095 = vand.u32 2147483647, %v1901
          %vm2096 = vcmp.eq.f32.partialorder %v2095, 8.507059e+37
          %v2097 = vand.u32 %v1901, 2147483648
          %v2098 = vor.u32 1.1754944e-38, %v2097
          %v2099 = vsel %vm2096, %v2098, %v2094
          %v2100 = vrcp.pop %v1902
          %v2101 = vmul.f32 %v1902, %v2100
          %v2102 = vsub.f32 1.0, %v2101
          %v2103 = vmul.f32 %v2100, %v2102
          %v2104 = vadd.f32 %v2100, %v2103
          %vm2105 = vweird.f32 %v1902
          %vm2106 = vweird.f32 %v2100
          %vm2107 = vmor %vm2105, %vm2106
          %v2108 = vsel %vm2107, %v2100, %v2104
          %v2109 = vand.u32 2147483647, %v1902
          %vm2110 = vcmp.eq.f32.partialorder %v2109, 8.507059e+37
          %v2111 = vand.u32 %v1902, 2147483648
          %v2112 = vor.u32 1.1754944e-38, %v2111
          %v2113 = vsel %vm2110, %v2112, %v2108
          %v2114 = vrcp.pop %v1903
          %v2115 = vmul.f32 %v1903, %v2114
          %v2116 = vsub.f32 1.0, %v2115
          %v2117 = vmul.f32 %v2114, %v2116
          %v2118 = vadd.f32 %v2114, %v2117
          %vm2119 = vweird.f32 %v1903
          %vm2120 = vweird.f32 %v2114
          %vm2121 = vmor %vm2119, %vm2120
          %v2122 = vsel %vm2121, %v2114, %v2118
          %v2123 = vand.u32 2147483647, %v1903
          %vm2124 = vcmp.eq.f32.partialorder %v2123, 8.507059e+37
          %v2125 = vand.u32 %v1903, 2147483648
          %v2126 = vor.u32 1.1754944e-38, %v2125
          %v2127 = vsel %vm2124, %v2126, %v2122
          %v2128 = vmul.f32 %v1872, %v1917
          %v2129 = vmul.f32 %v1873, %v1931
          %v2130 = vmul.f32 %v1874, %v1945
          %v2131 = vmul.f32 %v1875, %v1959
          %v2132 = vmul.f32 %v1876, %v1973
          %v2133 = vmul.f32 %v1877, %v1987
          %v2134 = vmul.f32 %v1878, %v2001
          %v2135 = vmul.f32 %v1879, %v2015
          %v2136 = vmul.f32 %v1880, %v2029
          %v2137 = vmul.f32 %v1881, %v2043
          %v2138 = vmul.f32 %v1882, %v2057
          %v2139 = vmul.f32 %v1883, %v2071
          %v2140 = vmul.f32 %v1884, %v2085
          %v2141 = vmul.f32 %v1885, %v2099
          %v2142 = vmul.f32 %v1886, %v2113
          %v2143 = vmul.f32 %v1887, %v2127
          %v2144 = vld [vmem:[#allocation3] sm:$0xff]
          %v2145 = vld [vmem:[#allocation3 + $0x8] sm:$0xff]
          %v2146 = vld [vmem:[#allocation3 + $0x10] sm:$0xff]
          %v2147 = vld [vmem:[#allocation3 + $0x18] sm:$0xff]
          %v2148 = vld [vmem:[#allocation3 + $0x20] sm:$0xff]
          %v2149 = vld [vmem:[#allocation3 + $0x28] sm:$0xff]
          %v2150 = vld [vmem:[#allocation3 + $0x30] sm:$0xff]
          %v2151 = vld [vmem:[#allocation3 + $0x38] sm:$0xff]
          %v2152 = vld [vmem:[#allocation3 + $0x40] sm:$0xff]
          %v2153 = vld [vmem:[#allocation3 + $0x48] sm:$0xff]
          %v2154 = vld [vmem:[#allocation3 + $0x50] sm:$0xff]
          %v2155 = vld [vmem:[#allocation3 + $0x58] sm:$0xff]
          %v2156 = vld [vmem:[#allocation3 + $0x60] sm:$0xff]
          %v2157 = vld [vmem:[#allocation3 + $0x68] sm:$0xff]
          %v2158 = vld [vmem:[#allocation3 + $0x70] sm:$0xff]
          %v2159 = vld [vmem:[#allocation3 + $0x78] sm:$0xff]
          %v2160 = vmul.f32 %v2144, %v2128
          %v2161 = vmul.f32 %v2145, %v2129
          %v2162 = vmul.f32 %v2146, %v2130
          %v2163 = vmul.f32 %v2147, %v2131
          %v2164 = vmul.f32 %v2148, %v2132
          %v2165 = vmul.f32 %v2149, %v2133
          %v2166 = vmul.f32 %v2150, %v2134
          %v2167 = vmul.f32 %v2151, %v2135
          %v2168 = vmul.f32 %v2152, %v2136
          %v2169 = vmul.f32 %v2153, %v2137
          %v2170 = vmul.f32 %v2154, %v2138
          %v2171 = vmul.f32 %v2155, %v2139
          %v2172 = vmul.f32 %v2156, %v2140
          %v2173 = vmul.f32 %v2157, %v2141
          %v2174 = vmul.f32 %v2158, %v2142
          %v2175 = vmul.f32 %v2159, %v2143
          %v2176 = vsel %vm1675, %v2160, %v2144
          %v2177 = vsel %vm1675, %v2161, %v2145
          %v2178 = vsel %vm1675, %v2162, %v2146
          %v2179 = vsel %vm1675, %v2163, %v2147
          %v2180 = vsel %vm1675, %v2164, %v2148
          %v2181 = vsel %vm1675, %v2165, %v2149
          %v2182 = vsel %vm1675, %v2166, %v2150
          %v2183 = vsel %vm1675, %v2167, %v2151
          %v2184 = vsel %vm1675, %v2168, %v2152
          %v2185 = vsel %vm1675, %v2169, %v2153
          %v2186 = vsel %vm1675, %v2170, %v2154
          %v2187 = vsel %vm1675, %v2171, %v2155
          %v2188 = vsel %vm1675, %v2172, %v2156
          %v2189 = vsel %vm1675, %v2173, %v2157
          %v2190 = vsel %vm1675, %v2174, %v2158
          %v2191 = vsel %vm1675, %v2175, %v2159
          %vm2192 = vcmask 39936
          %v2194 = vsel %vm2192, 1.0, 0
          %v2197 = vsel %vm2192, %v2176, 0
          %v2200 = vsel %vm2192, %v2177, 0
          %v2203 = vsel %vm2192, %v2178, 0
          %v2206 = vsel %vm2192, %v2179, 0
          %v2209 = vsel %vm2192, %v2180, 0
          %v2212 = vsel %vm2192, %v2181, 0
          %v2215 = vsel %vm2192, %v2182, 0
          %v2218 = vsel %vm2192, %v2183, 0
          %v2221 = vsel %vm2192, %v2184, 0
          %v2224 = vsel %vm2192, %v2185, 0
          %v2227 = vsel %vm2192, %v2186, 0
          %v2230 = vsel %vm2192, %v2187, 0
          %v2233 = vsel %vm2192, %v2188, 0
          %v2236 = vsel %vm2192, %v2189, 0
          %v2239 = vsel %vm2192, %v2190, 0
          %v2242 = vsel %vm2192, %v2191, 0
          %2244 = vmatpush.xpose.msra.mxu0 %v2242
          %2245 = vmatpush.xpose.msra.mxu0 %v2239
          %2246 = vmatpush.xpose.msra.mxu0 %v2236
          %2247 = vmatpush.xpose.msra.mxu0 %v2233
          %2248 = vmatpush.xpose.msra.mxu0 %v2230
          %2249 = vmatpush.xpose.msra.mxu0 %v2227
          %2250 = vmatpush.xpose.msra.mxu0 %v2224
          %2251 = vmatpush.xpose.msra.mxu0 %v2221
          %2252 = vmatpush.xpose.msra.mxu0 %v2218
          %2253 = vmatpush.xpose.msra.mxu0 %v2215
          %2254 = vmatpush.xpose.msra.mxu0 %v2212
          %2255 = vmatpush.xpose.msra.mxu0 %v2209
          %2256 = vmatpush.xpose.msra.mxu0 %v2206
          %2257 = vmatpush.xpose.msra.mxu0 %v2203
          %2258 = vmatpush.xpose.msra.mxu0 %v2200
          %2259 = vmatpush.xpose.msra.mxu0 %v2197
          %2260 = vmatmul.f32.gmra.mxu0 %v2194
          %v2261 = vpop.f32.mrf.mxu0
          %v2262 = vadd.f32 0.0, %v2261
          %2263 = vdwg.mxu0
          %2264 = vst [vmem:[%s470] sm:$0x1] %v2262
        $region76: #{tpu_custom_call.1} parent=67 // pred_fallthru
          _
        %s2265 = sand.u32 %s317, 1
        %s2266 = scalar_lea.sflag [#allocation8], %s2265
        %s2267 = sand.u32 %s317, 1
        %s2268 = scalar_lea.vmem [#allocation7], %s2267
        // Predicated region
        $region77: #{tpu_custom_call.1} parent=67 // pred_check
          %p2269 = pneg %p327
        $region78: #{tpu_custom_call.1} parent=67 // pred_check_branch
          %2271 = sbr.rel (%p2269) target = $region80
        $region79: #{tpu_custom_call.1} parent=67 // pred_region
          %2273 = vsyncadd %s2266, 0
          %s2274 = scalar_lea.hbm %s12, %s30
          %s2276 = sshll.u32 %s2268, 4
          %s2277 = int_to_ptr.vmem [resolvable:$true] %s2276
          %s2278 = sshll.u32 %s2274, 4
          %s2279 = int_to_ptr.hbm [resolvable:$true] %s2278
          %2281 = dma.vmem_to_hbm [thread:$0]  %s2277, 16, %s2279, %s2266
        $region80: #{tpu_custom_call.1} parent=67 // pred_fallthru
          _
      $region68: #{tpu_custom_call.1} parent=5 // pred_fallthru
        _
      %p2282 = scmp.le.s32.totalorder 2, %s21
      // Predicated region
      $region81: #{tpu_custom_call.1} parent=5 // pred_check
        %p2283 = pneg %p2282
      $region82: #{tpu_custom_call.1} parent=5 // pred_check_branch
        %2285 = sbr.rel (%p2283) target = $region84
      $region83: #{tpu_custom_call.1} parent=5 // pred_region
        %s2286 = ssub.s32 %s21, 2
        // Predicated region
        $region85: #{tpu_custom_call.1} parent=83 // pred_check
          %p2287 = pneg %p333
        $region86: #{tpu_custom_call.1} parent=83 // pred_check_branch
          %2289 = sbr.rel (%p2287) target = $region88
        $region87: #{tpu_custom_call.1} parent=83 // pred_region
          %s2290 = sand.u32 %s318, 1
          %s2291 = scalar_lea.sflag [#allocation8], %s2290
          %s2292 = sand.u32 %s318, 1
          %s2293 = scalar_lea.vmem [#allocation7], %s2292
          %2295 = dma.done %s2291, 16
        $region88: #{tpu_custom_call.1} parent=83 // pred_fallthru
          _
      $region84: #{tpu_custom_call.1} parent=5 // pred_fallthru
        _
    $region6: #{tpu_custom_call.1} parent=1 // loop_footer
      %s25 = sadd.s32 1, %s21
    $region7: #{tpu_custom_call.1} parent=1 // loop_footer_branch
      %20 = sbr.rel target = $region3
    $region8: #{tpu_custom_call.1} parent=1 // loop_exit
      _
    %2296 = vsyncpa [#allocation8], 1
    %s2297 = scalar_lea.sflag [#allocation8], 1
    %2298 = vsyncpa %s2297, 1

</llo_original>
